<compile_context>
chip_gen: v7x
topology: tpu7x:2x2x1
jax: 0.10.0
libtpu: 0.0.40
codegen_flags: <defaults>
</compile_context>

<pallas_src>
import functools

import jax
import jax.numpy as jnp
from jax.experimental import pallas as pl
from jax.experimental.pallas import tpu as pltpu

# Synthetic stand-in for OPS_NAMES (the PIL augmentation op list).
OPS_NAMES = [f"op{i}" for i in range(16)]
N_OPS = len(OPS_NAMES)

HEAD_PAD = 128         # lane-dense padded width for the aug-param head
NEG_BIG = -1e30        # softmax pad bias -> exp underflows to exactly 0

default_config = {
    "sampling": "prob", "k_ops": 1, "delta": 0,
    "temp": 1.0, "search_d": 32, "target_d": 32,
}

# Scoped-VMEM budget: actual per-step working set is ~4 MiB at tm=64, tk=3072
# (x f32 1.5 MiB + wf bf16 0.75 MiB, double-buffered, + small scratch), leaving
# ample headroom on v5e/v6e (128 MiB) and v7x (64 MiB physical / 32 MiB scoped).
VMEM_LIMIT_BYTES = 32 * 1024 * 1024


def _pick_tm(B):
    """Batch tile: tall enough to occupy the MXU rows; prefer >=2 tiles when
    the batch allows so both v7x TensorCores get work on the parallel axis."""
    for tm in (128, 64):
        if B % tm == 0 and B // tm >= 2:
            return tm
    for tm in (128, 64, 32, 16, 8):
        if B % tm == 0:
            return tm
    return B


def _pick_tk(D, tm, hid, budget=8 * 1024 * 1024):
    """Largest reduction tile dividing D whose double-buffered x (f32) + wf
    (bf16) blocks fit the budget.  tk == D collapses the k grid to one step and
    makes wf's block index constant (DMA'd once for the whole grid)."""
    candidates = [D] + [c for c in (4096, 3072, 2048, 1536, 1024, 512, 256, 128)
                        if c < D]
    for tk in candidates:
        if D % tk:
            continue
        per_buf = tm * tk * 4 + tk * hid * 2
        if 2 * per_buf <= budget:
            return tk
    for tk in (128, 256, 512):
        if D % tk == 0:
            return tk
    return D


# ----------------------------------------------------------------------------
# Head helpers (operate on lane-dense, zero/neg padded weight blocks).
# ----------------------------------------------------------------------------
def _sigmoid_head(feat, whm, bhm):
    logits = jnp.dot(feat.astype(jnp.bfloat16), whm,
                     preferred_element_type=jnp.float32) + bhm
    return pl.reciprocal(1.0 + jnp.exp(-logits), approx=True)


def _softmax_head(feat, whw, bhw, temp):
    # Padded columns carry a -1e30 bias so their exp underflows to exactly 0
    # and the softmax over real op columns is unchanged.
    logits = (jnp.dot(feat.astype(jnp.bfloat16), whw,
                      preferred_element_type=jnp.float32) + bhw) * (1.0 / temp)
    m = jnp.max(logits, axis=-1, keepdims=True)
    e = jnp.exp(logits - m)
    return e * pl.reciprocal(jnp.sum(e, axis=-1, keepdims=True), approx=True)


# ----------------------------------------------------------------------------
# Fused predict_aug_params kernel (exploit path): gf.f -> sigmoid/softmax head
# grid = (B_tiles, D_tiles)  [D_tiles is usually 1]
# ----------------------------------------------------------------------------
def _predict_kernel(x_ref, wf_ref, bf_ref, whm_ref, bhm_ref, whw_ref, bhw_ref,
                    mag_ref, wgt_ref, feat_acc, *, temp):
    k = pl.program_id(1)
    nk = pl.num_programs(1)

    @pl.when(k == 0)
    def _():
        feat_acc[...] = jnp.zeros_like(feat_acc)

    feat_acc[...] += jnp.dot(x_ref[...].astype(jnp.bfloat16), wf_ref[...],
                             preferred_element_type=jnp.float32)

    @pl.when(k == nk - 1)
    def _():
        feat = feat_acc[...] + bf_ref[...]          # bias added exactly once
        mag_ref[...] = _sigmoid_head(feat, whm_ref[...], bhm_ref[...])
        wgt_ref[...] = _softmax_head(feat, whw_ref[...], bhw_ref[...], temp)


def fused_predict(x_flat, wf, bf, wh_mag, bh_mag, wh_wgt, bh_wgt, *, temp):
    B, D = x_flat.shape
    hid = wf.shape[1]
    pad = wh_mag.shape[1]
    tm = _pick_tm(B)
    tk = _pick_tk(D, tm, hid)
    grid = (B // tm, D // tk)

    kernel = functools.partial(_predict_kernel, temp=float(temp))
    return pl.pallas_call(
        kernel,
        out_shape=(
            jax.ShapeDtypeStruct((B, pad), jnp.float32),
            jax.ShapeDtypeStruct((B, pad), jnp.float32),
        ),
        grid_spec=pltpu.PrefetchScalarGridSpec(
            num_scalar_prefetch=0,
            grid=grid,
            in_specs=[
                pl.BlockSpec((tm, tk), lambda b, k: (b, k)),     # x (f32)
                pl.BlockSpec((tk, hid), lambda b, k: (k, 0)),    # wf (bf16)
                pl.BlockSpec((1, hid), lambda b, k: (0, 0)),     # bf
                pl.BlockSpec((hid, pad), lambda b, k: (0, 0)),   # wh_mag (padded)
                pl.BlockSpec((1, pad), lambda b, k: (0, 0)),     # bh_mag (padded)
                pl.BlockSpec((hid, pad), lambda b, k: (0, 0)),   # wh_wgt (padded)
                pl.BlockSpec((1, pad), lambda b, k: (0, 0)),     # bh_wgt (pad=-1e30)
            ],
            out_specs=(
                pl.BlockSpec((tm, pad), lambda b, k: (b, 0)),
                pl.BlockSpec((tm, pad), lambda b, k: (b, 0)),
            ),
            scratch_shapes=[pltpu.VMEM((tm, hid), jnp.float32)],
        ),
        compiler_params=pltpu.CompilerParams(
            dimension_semantics=("parallel", "arbitrary"),
            vmem_limit_bytes=VMEM_LIMIT_BYTES,
        ),
    )(x_flat, wf, bf, wh_mag, bh_mag, wh_wgt, bh_wgt)


# ----------------------------------------------------------------------------
# Fused explore kernel:  gf.f -> softmax head -> (collapsed) weighted mix
# grid = (B_tiles, D_tiles)  [single pass; D_tiles is usually 1]
# ----------------------------------------------------------------------------
def _explore_kernel(x_ref, wf_ref, bf_ref, whw_ref, bhw_ref,
                    mf_ref, feat_acc, *, temp):
    k = pl.program_id(1)
    nk = pl.num_programs(1)

    @pl.when(k == 0)
    def _():
        feat_acc[...] = jnp.zeros_like(feat_acc)

    feat_acc[...] += jnp.dot(x_ref[...].astype(jnp.bfloat16), wf_ref[...],
                             preferred_element_type=jnp.float32)

    @pl.when(k == nk - 1)
    def _():
        feat = feat_acc[...] + bf_ref[...]
        wgt = _softmax_head(feat, whw_ref[...], bhw_ref[...], temp)
        # TODO(synk): apply_augment / after_transforms are PIL-based ops with no
        # Pallas equivalent; identity augmentation is substituted (and the
        # straight-through stop_gradient only changes the backward pass), so
        # every augmented copy equals the input pixels and the per-op weighted
        # mix collapses to mixed = x * rowsum(weights).  Hence
        #   gf.f(mixed) = rowsum(weights) * (x @ wf) + bf
        # which removes the second pixel-space matmul and the second HBM read
        # of x / wf entirely.  Padded softmax lanes are exactly 0, so summing
        # over all 128 lanes is safe.
        wsum = jnp.sum(wgt, axis=-1, keepdims=True)
        mf_ref[...] = wsum * feat_acc[...] + bf_ref[...]


def fused_explore(x_flat, wf, bf, wh_wgt, bh_wgt, *, temp):
    B, D = x_flat.shape
    hid = wf.shape[1]
    pad = wh_wgt.shape[1]
    tm = _pick_tm(B)
    tk = _pick_tk(D, tm, hid)
    grid = (B // tm, D // tk)

    kernel = functools.partial(_explore_kernel, temp=float(temp))
    return pl.pallas_call(
        kernel,
        out_shape=jax.ShapeDtypeStruct((B, hid), jnp.float32),
        grid_spec=pltpu.PrefetchScalarGridSpec(
            num_scalar_prefetch=0,
            grid=grid,
            in_specs=[
                pl.BlockSpec((tm, tk), lambda b, k: (b, k)),     # x (f32)
                pl.BlockSpec((tk, hid), lambda b, k: (k, 0)),    # wf (bf16)
                pl.BlockSpec((1, hid), lambda b, k: (0, 0)),     # bf
                pl.BlockSpec((hid, pad), lambda b, k: (0, 0)),   # wh_wgt (padded)
                pl.BlockSpec((1, pad), lambda b, k: (0, 0)),     # bh_wgt (pad=-1e30)
            ],
            out_specs=pl.BlockSpec((tm, hid), lambda b, k: (b, 0)),
            scratch_shapes=[pltpu.VMEM((tm, hid), jnp.float32)],
        ),
        compiler_params=pltpu.CompilerParams(
            dimension_semantics=("parallel", "arbitrary"),
            vmem_limit_bytes=VMEM_LIMIT_BYTES,
        ),
    )(x_flat, wf, bf, wh_wgt, bh_wgt)


# ----------------------------------------------------------------------------
# MDAAug forward (JAX / Pallas)
# ----------------------------------------------------------------------------
class MDAAugJAX:
    def __init__(self, n_class, gf_params, h_params, config=default_config):
        self.ops_names = OPS_NAMES
        self.n_ops = N_OPS
        self.n_class = n_class

        wf, bf = gf_params                 # synthetic gf_model.f (linear)
        wh, bh = h_params                  # synthetic h_model (linear head)

        # bf16 weights for the MXU matmuls (f32 accumulation in-kernel).
        self.wf = wf.astype(jnp.bfloat16)
        self.bf = bf.astype(jnp.float32).reshape(1, -1)

        pad = HEAD_PAD

        def pad_cols(a, fill):
            a = jnp.asarray(a, dtype=jnp.float32)
            out = jnp.full((a.shape[0], pad), fill, dtype=jnp.float32)
            return out.at[:, :a.shape[1]].set(a)

        # Split the head into magnitude / weight column blocks, zero-padded to
        # a lane-dense 128-wide slab so the kernels never slice sub-128-lane
        # activations and the head outputs are unmasked full-lane stores.
        self.wh_mag = pad_cols(wh[:, :N_OPS], 0.0).astype(jnp.bfloat16)
        self.wh_wgt = pad_cols(wh[:, N_OPS:], 0.0).astype(jnp.bfloat16)
        self.bh_mag = pad_cols(bh[:, :N_OPS].reshape(1, -1), 0.0)
        self.bh_wgt = pad_cols(bh[:, N_OPS:].reshape(1, -1), NEG_BIG)

        self.resize = config["search_d"] != config["target_d"]
        self.search_d = config["search_d"]
        self.k_ops = config["k_ops"]
        self.sampling = config["sampling"]
        self.temp = config["temp"]
        self.delta = config["delta"]

    def _flatten(self, images):
        # Keep f32 in HBM; kernels cast to bf16 in-register for the MXU
        # (avoids a separate wrapper-side cast pass over B*C*H*W).
        return images.reshape(images.shape[0], -1).astype(jnp.float32)

    def predict_aug_params(self, images, mode):
        T = self.temp if mode == "exploit" else 1.0
        x = self._flatten(images)
        mag_pad, wgt_pad = fused_predict(
            x, self.wf, self.bf,
            self.wh_mag, self.bh_mag, self.wh_wgt, self.bh_wgt, temp=T)
        return mag_pad[:, :self.n_ops], wgt_pad[:, :self.n_ops]

    def explore(self, images):
        # Single fused, single-pass kernel: feature extraction + softmax head +
        # collapsed weighted mix.  The [B, n_ops, D] ba_imgs tensor and the
        # mixed images never exist; the magnitude head is skipped because under
        # the identity-augment placeholder it does not affect the forward value.
        x = self._flatten(images)
        return fused_explore(x, self.wf, self.bf,
                             self.wh_wgt, self.bh_wgt, temp=1.0)

    def exploit(self, images):
        # resize path: search_d == target_d in this config, so no interpolation
        magnitudes, weights = self.predict_aug_params(images, "exploit")
        # TODO(synk): get_training_aug_images needs torch.multinomial sampling +
        # PIL apply_augment; no Pallas equivalent, images returned unaugmented.
        del magnitudes, weights
        return images

    def forward(self, images, mode):
        if mode == "explore":
            return self.explore(images)
        elif mode == "exploit":
            return self.exploit(images)
        elif mode == "inference":
            return images


# ----------------------------------------------------------------------------
# main
# ----------------------------------------------------------------------------
if __name__ == "__main__":
    B, C, H, W = 128, 3, 32, 32        # search_d = 32 per the module's config
    HIDDEN = 128                        # lane-dense feature width
    D = C * H * W                       # 3072

    key = jax.random.PRNGKey(0)
    k_img, k_wf, k_bf, k_wh, k_bh = jax.random.split(key, 5)

    images = jax.random.normal(k_img, (B, C, H, W), dtype=jnp.float32)

    # deterministic synthetic parameters
    wf = jax.random.normal(k_wf, (D, HIDDEN), dtype=jnp.float32) * 0.02
    bf = jax.random.normal(k_bf, (1, HIDDEN), dtype=jnp.float32) * 0.02
    wh = jax.random.normal(k_wh, (HIDDEN, 2 * N_OPS), dtype=jnp.float32) * 0.1
    bh = jax.random.normal(k_bh, (1, 2 * N_OPS), dtype=jnp.float32) * 0.1

    model = MDAAugJAX(n_class=10, gf_params=(wf, bf), h_params=(wh, bh))

    mixed_features = model.forward(images, "explore")        # [B, HIDDEN]
    aug_imgs = model.forward(images, "exploit")               # [B, C, H, W]
    passthrough = model.forward(images, "inference")          # [B, C, H, W]
    mags, wgts = model.predict_aug_params(images, "exploit")  # [B, n_ops] each
    jax.block_until_ready((mixed_features, aug_imgs, passthrough, mags, wgts))

    # ---- pure-JAX f32 reference for the explore / predict hot paths ----
    xf32 = images.reshape(B, -1)
    feat_ref = xf32 @ wf + bf
    mag_ref = jax.nn.sigmoid(feat_ref @ wh[:, :N_OPS] + bh[:, :N_OPS])
    wgt_ref = jax.nn.softmax(feat_ref @ wh[:, N_OPS:] + bh[:, N_OPS:], axis=-1)
    mixed_ref = (wgt_ref[:, :, None] * xf32[:, None, :]).sum(axis=1)  # identity aug
    mf_ref = mixed_ref @ wf + bf

    err_feat = float(jnp.max(jnp.abs(mixed_features - mf_ref)))
    err_mag = float(jnp.max(jnp.abs(mags - mag_ref)))
    err_wgt = float(jnp.max(jnp.abs(wgts - wgt_ref)))
    assert err_feat < 0.15, f"explore mixed_features max abs err {err_feat}"
    assert err_mag < 0.08, f"magnitudes max abs err {err_mag}"
    assert err_wgt < 0.08, f"weights max abs err {err_wgt}"

    assert mixed_features.shape == (B, HIDDEN)
    assert aug_imgs.shape == (B, C, H, W)
    assert passthrough.shape == (B, C, H, W)
    assert mags.shape == (B, N_OPS) and wgts.shape == (B, N_OPS)
    print("KERNEL_OK")
</pallas_src>

<mosaic_0001>
module attributes {stable_mosaic.version = 11 : i64} {
  func.func @_explore_kernel(%arg0: i32, %arg1: i32, %arg2: memref<64x3072xf32, #tpu.memory_space<vmem>>, %arg3: memref<3072x128xbf16, #tpu.memory_space<vmem>>, %arg4: memref<1x128xf32, #tpu.memory_space<vmem>>, %arg5: memref<128x128xbf16, #tpu.memory_space<vmem>>, %arg6: memref<1x128xf32, #tpu.memory_space<vmem>>, %arg7: memref<64x128xf32, #tpu.memory_space<vmem>>, %arg8: memref<64x128xf32, #tpu.memory_space<vmem>>) attributes {dimension_semantics = [#tpu.dimension_semantics<parallel>, #tpu.dimension_semantics<arbitrary>], iteration_bounds = array<i64: 2, 1>, scalar_prefetch = 0 : i64, scratch_operands = 1 : i64, tpu.core_type = #tpu.core_type<tc>, window_params = [{transform_indices = @transform_0, window_bounds = array<i64: 64, 3072>}, {transform_indices = @transform_1, window_bounds = array<i64: 3072, 128>}, {pipeline_mode = #tpu.pipeline_mode<synchronous>, transform_indices = @transform_2, window_bounds = array<i64: 1, 128>}, {pipeline_mode = #tpu.pipeline_mode<synchronous>, transform_indices = @transform_3, window_bounds = array<i64: 128, 128>}, {pipeline_mode = #tpu.pipeline_mode<synchronous>, transform_indices = @transform_4, window_bounds = array<i64: 1, 128>}, {transform_indices = @transform_5, window_bounds = array<i64: 64, 128>}]} {
    %c0_i32 = arith.constant 0 : i32
    %0 = arith.cmpi eq, %arg1, %c0_i32 : i32
    %1 = arith.extui %0 : i1 to i32
    %c0_i32_0 = arith.constant 0 : i32
    %2 = arith.cmpi ne, %1, %c0_i32_0 : i32
    scf.if %2 {
      %cst_10 = arith.constant 0.000000e+00 : f32
      %13 = vector.broadcast %cst_10 : f32 to vector<64x128xf32>
      %c0_11 = arith.constant 0 : index
      %c0_12 = arith.constant 0 : index
      %14 = vector.load %arg8[%c0_11, %c0_12] : memref<64x128xf32, #tpu.memory_space<vmem>>, vector<64x128xf32>
      tpu.vector_store %arg8[%c0_11, %c0_12], %13 {strides = array<i32>} : memref<64x128xf32, #tpu.memory_space<vmem>>, vector<64x128xf32>,
    } else {
    }
    %c0 = arith.constant 0 : index
    %c0_1 = arith.constant 0 : index
    %3 = vector.load %arg8[%c0, %c0_1] : memref<64x128xf32, #tpu.memory_space<vmem>>, vector<64x128xf32>
    %c0_2 = arith.constant 0 : index
    %c0_3 = arith.constant 0 : index
    %4 = vector.load %arg2[%c0_2, %c0_3] : memref<64x3072xf32, #tpu.memory_space<vmem>>, vector<64x3072xf32>
    %5 = arith.truncf %4 : vector<64x3072xf32> to vector<64x3072xbf16>
    %c0_4 = arith.constant 0 : index
    %c0_5 = arith.constant 0 : index
    %6 = vector.load %arg3[%c0_4, %c0_5] : memref<3072x128xbf16, #tpu.memory_space<vmem>>, vector<3072x128xbf16>
    %cst = arith.constant dense<0.000000e+00> : vector<64x128xf32>
    %7 = tpu.matmul %5, %6, %cst {dimension_numbers = #tpu.dot_dimension_numbers<[1], [0], [0], [1], [0, 0, 1, 1], [], []>} : vector<64x3072xbf16>, vector<3072x128xbf16>, vector<64x128xf32> -> vector<64x128xf32>
    %8 = arith.addf %3, %7 : vector<64x128xf32>
    %c0_6 = arith.constant 0 : index
    %c0_7 = arith.constant 0 : index
    %9 = vector.load %arg8[%c0_6, %c0_7] : memref<64x128xf32, #tpu.memory_space<vmem>>, vector<64x128xf32>
    tpu.vector_store %arg8[%c0_6, %c0_7], %8 {strides = array<i32>} : memref<64x128xf32, #tpu.memory_space<vmem>>, vector<64x128xf32>,
    %c0_i32_8 = arith.constant 0 : i32
    %10 = arith.cmpi eq, %arg1, %c0_i32_8 : i32
    %11 = arith.extui %10 : i1 to i32
    %c0_i32_9 = arith.constant 0 : i32
    %12 = arith.cmpi ne, %11, %c0_i32_9 : i32
    scf.if %12 {
      %c0_10 = arith.constant 0 : index
      %c0_11 = arith.constant 0 : index
      %13 = vector.load %arg8[%c0_10, %c0_11] : memref<64x128xf32, #tpu.memory_space<vmem>>, vector<64x128xf32>
      %c0_12 = arith.constant 0 : index
      %c0_13 = arith.constant 0 : index
      %14 = vector.load %arg4[%c0_12, %c0_13] : memref<1x128xf32, #tpu.memory_space<vmem>>, vector<1x128xf32>
      %15 = vector.broadcast %14 : vector<1x128xf32> to vector<64x128xf32>
      %16 = arith.addf %13, %15 : vector<64x128xf32>
      %c0_14 = arith.constant 0 : index
      %c0_15 = arith.constant 0 : index
      %17 = vector.load %arg5[%c0_14, %c0_15] : memref<128x128xbf16, #tpu.memory_space<vmem>>, vector<128x128xbf16>
      %c0_16 = arith.constant 0 : index
      %c0_17 = arith.constant 0 : index
      %18 = vector.load %arg6[%c0_16, %c0_17] : memref<1x128xf32, #tpu.memory_space<vmem>>, vector<1x128xf32>
      %19 = arith.truncf %16 : vector<64x128xf32> to vector<64x128xbf16>
      %cst_18 = arith.constant dense<0.000000e+00> : vector<64x128xf32>
      %20 = tpu.matmul %19, %17, %cst_18 {dimension_numbers = #tpu.dot_dimension_numbers<[1], [0], [0], [1], [0, 0, 1, 1], [], []>} : vector<64x128xbf16>, vector<128x128xbf16>, vector<64x128xf32> -> vector<64x128xf32>
      %21 = vector.broadcast %18 : vector<1x128xf32> to vector<64x128xf32>
      %22 = arith.addf %20, %21 : vector<64x128xf32>
      %cst_19 = arith.constant 1.000000e+00 : f32
      %23 = vector.broadcast %cst_19 : f32 to vector<64x128xf32>
      %24 = arith.mulf %22, %23 : vector<64x128xf32>
      %cst_20 = arith.constant dense<0xFF800000> : vector<64xf32>
      %25 = vector.multi_reduction <maximumf>, %24, %cst_20 [1] : vector<64x128xf32> to vector<64xf32>
      %26 = vector.shape_cast %25 : vector<64xf32> to vector<64x1xf32>
      %27 = vector.broadcast %26 : vector<64x1xf32> to vector<64x128xf32>
      %28 = arith.subf %24, %27 : vector<64x128xf32>
      %29 = math.exp %28 : vector<64x128xf32>
      %cst_21 = arith.constant dense<0.000000e+00> : vector<64xf32>
      %30 = vector.multi_reduction <add>, %29, %cst_21 [1] : vector<64x128xf32> to vector<64xf32>
      %31 = vector.shape_cast %30 : vector<64xf32> to vector<64x1xf32>
      %32 = tpu.reciprocal %31 {approx = true} : vector<64x1xf32> -> vector<64x1xf32>
      %33 = vector.broadcast %32 : vector<64x1xf32> to vector<64x128xf32>
      %34 = arith.mulf %29, %33 : vector<64x128xf32>
      %cst_22 = arith.constant dense<0.000000e+00> : vector<64xf32>
      %35 = vector.multi_reduction <add>, %34, %cst_22 [1] : vector<64x128xf32> to vector<64xf32>
      %36 = vector.shape_cast %35 : vector<64xf32> to vector<64x1xf32>
      %c0_23 = arith.constant 0 : index
      %c0_24 = arith.constant 0 : index
      %37 = vector.load %arg8[%c0_23, %c0_24] : memref<64x128xf32, #tpu.memory_space<vmem>>, vector<64x128xf32>
      %38 = vector.broadcast %36 : vector<64x1xf32> to vector<64x128xf32>
      %39 = arith.mulf %38, %37 : vector<64x128xf32>
      %c0_25 = arith.constant 0 : index
      %c0_26 = arith.constant 0 : index
      %40 = vector.load %arg4[%c0_25, %c0_26] : memref<1x128xf32, #tpu.memory_space<vmem>>, vector<1x128xf32>
      %41 = vector.broadcast %40 : vector<1x128xf32> to vector<64x128xf32>
      %42 = arith.addf %39, %41 : vector<64x128xf32>
      %c0_27 = arith.constant 0 : index
      %c0_28 = arith.constant 0 : index
      %43 = vector.load %arg7[%c0_27, %c0_28] : memref<64x128xf32, #tpu.memory_space<vmem>>, vector<64x128xf32>
      tpu.vector_store %arg7[%c0_27, %c0_28], %42 {strides = array<i32>} : memref<64x128xf32, #tpu.memory_space<vmem>>, vector<64x128xf32>,
    } else {
    }
    return
  }
  func.func @transform_0(%arg0: i32, %arg1: i32) -> (i32, i32) {
    %c0_i32 = arith.constant 0 : i32
    return %arg0, %arg1 : i32, i32
  }
  func.func @transform_1(%arg0: i32, %arg1: i32) -> (i32, i32) {
    %c0_i32 = arith.constant 0 : i32
    %c0_i32_0 = arith.constant 0 : i32
    return %arg1, %c0_i32 : i32, i32
  }
  func.func @transform_2(%arg0: i32, %arg1: i32) -> (i32, i32) {
    %c0_i32 = arith.constant 0 : i32
    %c0_i32_0 = arith.constant 0 : i32
    %c0_i32_1 = arith.constant 0 : i32
    return %c0_i32, %c0_i32_0 : i32, i32
  }
  func.func @transform_3(%arg0: i32, %arg1: i32) -> (i32, i32) {
    %c0_i32 = arith.constant 0 : i32
    %c0_i32_0 = arith.constant 0 : i32
    %c0_i32_1 = arith.constant 0 : i32
    return %c0_i32, %c0_i32_0 : i32, i32
  }
  func.func @transform_4(%arg0: i32, %arg1: i32) -> (i32, i32) {
    %c0_i32 = arith.constant 0 : i32
    %c0_i32_0 = arith.constant 0 : i32
    %c0_i32_1 = arith.constant 0 : i32
    return %c0_i32, %c0_i32_0 : i32, i32
  }
  func.func @transform_5(%arg0: i32, %arg1: i32) -> (i32, i32) {
    %c0_i32 = arith.constant 0 : i32
    %c0_i32_0 = arith.constant 0 : i32
    return %arg0, %c0_i32 : i32, i32
  }
}

</mosaic_0001>

<llo_original>
// kernel: tpu_custom_call.1
$region0: #{tpu_custom_call.1}
  #allocation0 [shape = 'u32[]', space=smem, size = 0x4, offset = 0x4, fixed_abs, tag = 'smem constant byte address 0x4 - core index']
  #allocation1 [shape = 'u32[144,128]{1,0:T(1,128)}', space=vmem, size = 0x12000, scoped, tag = 'internal scratch']
  #allocation2 [shape = 'f32[64,128]{1,0:T(8,128)}', space=vmem, size = 0x8000, scoped, tag = 'scratch operand']
  %s0 = inlined_call_operand.hbm [shape: f32[128,3072], index: 0, kind: input, shape index: {}]
  %s1 = inlined_call_operand.hbm [shape: bf16[3072,128], index: 1, kind: input, shape index: {}]
  %s2 = inlined_call_operand.hbm [shape: f32[1,128], index: 2, kind: input, shape index: {}]
  %s3 = inlined_call_operand.hbm [shape: bf16[128,128], index: 3, kind: input, shape index: {}]
  %s4 = inlined_call_operand.hbm [shape: f32[1,128], index: 4, kind: input, shape index: {}]
  %s5 = inlined_call_operand.hbm [shape: f32[128,128], index: 5, kind: output, shape index: {}]
  %s6 = sld [smem:[#allocation0]]
  $region81: #{tpu_custom_call.1} parent=0
    _
  %s8 = ssub.s32 1, %s6
  %s9 = scalar_select 0, %s8, %s6
  $region1: #{tpu_custom_call.1} parent=0
    #allocation3 [shape = 'u8[1572864]{0}', space=vmem, size = 0x180000, scoped, tag = 'input window, operand 0']
    #allocation4 [shape = 's32[2]{0}', space=sflag, size = 0x8, scoped, tag = 'scoped memory for tpu_custom_call.1']
    #allocation5 [shape = 's32[2]{0}', space=sflag, size = 0x8, scoped, tag = 'scoped memory for tpu_custom_call.1']
    #allocation6 [shape = 'u8[786432]{0}', space=vmem, size = 0xc0000, scoped, tag = 'input window, operand 1, single buffered']
    #allocation7 [shape = 's32[1]{0}', space=sflag, size = 0x4, scoped, tag = 'scoped memory for tpu_custom_call.1']
    #allocation8 [shape = 'u8[512]{0}', space=vmem, size = 0x400, scoped, tag = 'input window, operand 2, single buffered']
    #allocation9 [shape = 'u8[32768]{0}', space=vmem, size = 0x8000, scoped, tag = 'input window, operand 3, single buffered']
    #allocation10 [shape = 's32[1]{0}', space=sflag, size = 0x4, scoped, tag = 'scoped memory for tpu_custom_call.1']
    #allocation11 [shape = 'u8[512]{0}', space=vmem, size = 0x400, scoped, tag = 'input window, operand 4, single buffered']
    #allocation12 [shape = 'u8[65536]{0}', space=vmem, size = 0x10000, scoped, tag = 'output window, operand 0']
    %10 = vsyncpa [#allocation4], 0
    %s11 = scalar_lea.sflag [#allocation4], 1
    %12 = vsyncpa %s11, 0
    %13 = vsyncpa [#allocation7], 0
    %14 = vsyncpa [#allocation10], 0
    %15 = vsyncpa [#allocation5], 0
    %s16 = scalar_lea.sflag [#allocation5], 1
    %17 = vsyncpa %s16, 0
    loop: start=0, step=1, limit=4
    $region2: #{tpu_custom_call.1} parent=1 // loop_pre_header
      _
    $region3: #{tpu_custom_call.1} parent=1 // loop_header
      %s19 = sphi 0, %s23
      %p20 = scmp.ge.s32.totalorder %s19, 4
      %s26 = sphi 0, %s38
      %s27 = sphi 0, %s34
      %s28 = sphi 0, %s26
      %s29 = sphi 0, %s27
      %s30 = sphi 0, %s28
      %s31 = sphi 0, %s29
      %s43 = sphi 0, %s45
      %s46 = sphi 0, %s43
      %s47 = sphi 0, %s46
      %s63 = sphi 0, %s47
      %s69 = sphi 0, %s71
      %s72 = sphi 0, %s69
      %s73 = sphi 0, %s72
      %s89 = sphi 0, %s73
      %s93 = sphi 0, %s93
      %s95 = sphi 0, %s93
      %s96 = sphi 0, %s95
      %s110 = sphi 0, %s96
      %s114 = sphi 0, %s114
      %s116 = sphi 0, %s114
      %s117 = sphi 0, %s116
      %s131 = sphi 0, %s117
      %s135 = sphi 0, %s135
      %s137 = sphi 0, %s135
      %s138 = sphi 0, %s137
      %s152 = sphi 0, %s138
      %s158 = sphi 0, %s160
      %s161 = sphi 0, %s158
      %s162 = sphi 0, %s161
      %s178 = sphi 0, %s162
    $region4: #{tpu_custom_call.1} parent=1 // loop_header_branch
      %22 = sbr.rel (%p20) target = $region8
    $region5: #{tpu_custom_call.1} parent=1 // loop_body
      %s24 = ssub.s32 %s19, 1
      %s25 = ssub.s32 %s19, 2
      %s32 = sadd.s32 1, %s27
      %p33 = scmp.ge.s32.totalorder %s32, 1
      %s34 = scalar_select %p33, 0, %s32
      %s35 = sadd.s32 1, %s26
      %s36 = scalar_select %p33, %s35, %s26
      %p37 = scmp.ge.s32.totalorder %s36, 2
      %s38 = scalar_select %p37, 0, %s36
      %s39 = ssub.s32 %s26, %s38
      %s40 = ssub.s32 %s27, %s34
      %s41 = sor.u32 %s39, %s40
      %p42 = scmp.eq.s32.totalorder %s41, 0
      %s44 = sadd.s32 %s43, 1
      %s45 = scalar_select %p42, %s43, %s44
      %p48 = pneg %p42
      %p49 = scmp.eq.s32.totalorder %s19, 1
      %p50 = por %p48, %p49
      %p51 = scmp.ne.s32.totalorder %s43, %s46
      %p52 = scmp.eq.s32.totalorder %s19, 0
      %p53 = por %p51, %p52
      %p54 = scmp.ne.s32.totalorder %s43, %s46
      %p55 = scmp.eq.s32.totalorder %s24, 1
      %p56 = por %p54, %p55
      %p57 = scmp.ne.s32.totalorder %s46, %s47
      %p58 = scmp.eq.s32.totalorder %s24, 0
      %p59 = por %p57, %p58
      %p60 = scmp.ne.s32.totalorder %s46, %s47
      %p61 = scmp.eq.s32.totalorder %s25, 1
      %p62 = por %p60, %p61
      %p64 = scmp.ne.s32.totalorder %s47, %s63
      %p65 = scmp.eq.s32.totalorder %s25, 0
      %p66 = por %p64, %p65
      %s67 = ssub.s32 %s27, %s34
      %p68 = scmp.eq.s32.totalorder %s67, 0
      %s70 = sadd.s32 %s69, 1
      %s71 = scalar_select %p68, %s69, %s70
      %p74 = pneg %p68
      %p75 = scmp.eq.s32.totalorder %s19, 1
      %p76 = por %p74, %p75
      %p77 = scmp.ne.s32.totalorder %s69, %s72
      %p78 = scmp.eq.s32.totalorder %s19, 0
      %p79 = por %p77, %p78
      %p80 = scmp.ne.s32.totalorder %s69, %s72
      %p81 = scmp.eq.s32.totalorder %s24, 1
      %p82 = por %p80, %p81
      %p83 = scmp.ne.s32.totalorder %s72, %s73
      %p84 = scmp.eq.s32.totalorder %s24, 0
      %p85 = por %p83, %p84
      %p86 = scmp.ne.s32.totalorder %s72, %s73
      %p87 = scmp.eq.s32.totalorder %s25, 1
      %p88 = por %p86, %p87
      %p90 = scmp.ne.s32.totalorder %s73, %s89
      %p91 = scmp.eq.s32.totalorder %s25, 0
      %p92 = por %p90, %p91
      %s94 = sadd.s32 %s93, 1
      %p97 = scmp.eq.s32.totalorder %s19, 1
      %p98 = scmp.ne.s32.totalorder %s93, %s95
      %p99 = scmp.eq.s32.totalorder %s19, 0
      %p100 = por %p98, %p99
      %p101 = scmp.ne.s32.totalorder %s93, %s95
      %p102 = scmp.eq.s32.totalorder %s24, 1
      %p103 = por %p101, %p102
      %p104 = scmp.ne.s32.totalorder %s95, %s96
      %p105 = scmp.eq.s32.totalorder %s24, 0
      %p106 = por %p104, %p105
      %p107 = scmp.ne.s32.totalorder %s95, %s96
      %p108 = scmp.eq.s32.totalorder %s25, 1
      %p109 = por %p107, %p108
      %p111 = scmp.ne.s32.totalorder %s96, %s110
      %p112 = scmp.eq.s32.totalorder %s25, 0
      %p113 = por %p111, %p112
      %s115 = sadd.s32 %s114, 1
      %p118 = scmp.eq.s32.totalorder %s19, 1
      %p119 = scmp.ne.s32.totalorder %s114, %s116
      %p120 = scmp.eq.s32.totalorder %s19, 0
      %p121 = por %p119, %p120
      %p122 = scmp.ne.s32.totalorder %s114, %s116
      %p123 = scmp.eq.s32.totalorder %s24, 1
      %p124 = por %p122, %p123
      %p125 = scmp.ne.s32.totalorder %s116, %s117
      %p126 = scmp.eq.s32.totalorder %s24, 0
      %p127 = por %p125, %p126
      %p128 = scmp.ne.s32.totalorder %s116, %s117
      %p129 = scmp.eq.s32.totalorder %s25, 1
      %p130 = por %p128, %p129
      %p132 = scmp.ne.s32.totalorder %s117, %s131
      %p133 = scmp.eq.s32.totalorder %s25, 0
      %p134 = por %p132, %p133
      %s136 = sadd.s32 %s135, 1
      %p139 = scmp.eq.s32.totalorder %s19, 1
      %p140 = scmp.ne.s32.totalorder %s135, %s137
      %p141 = scmp.eq.s32.totalorder %s19, 0
      %p142 = por %p140, %p141
      %p143 = scmp.ne.s32.totalorder %s135, %s137
      %p144 = scmp.eq.s32.totalorder %s24, 1
      %p145 = por %p143, %p144
      %p146 = scmp.ne.s32.totalorder %s137, %s138
      %p147 = scmp.eq.s32.totalorder %s24, 0
      %p148 = por %p146, %p147
      %p149 = scmp.ne.s32.totalorder %s137, %s138
      %p150 = scmp.eq.s32.totalorder %s25, 1
      %p151 = por %p149, %p150
      %p153 = scmp.ne.s32.totalorder %s138, %s152
      %p154 = scmp.eq.s32.totalorder %s25, 0
      %p155 = por %p153, %p154
      %s156 = ssub.s32 %s26, %s38
      %p157 = scmp.eq.s32.totalorder %s156, 0
      %s159 = sadd.s32 %s158, 1
      %s160 = scalar_select %p157, %s158, %s159
      %p163 = pneg %p157
      %p164 = scmp.eq.s32.totalorder %s19, 1
      %p165 = por %p163, %p164
      %p166 = scmp.ne.s32.totalorder %s158, %s161
      %p167 = scmp.eq.s32.totalorder %s19, 0
      %p168 = por %p166, %p167
      %p169 = scmp.ne.s32.totalorder %s158, %s161
      %p170 = scmp.eq.s32.totalorder %s24, 1
      %p171 = por %p169, %p170
      %p172 = scmp.ne.s32.totalorder %s161, %s162
      %p173 = scmp.eq.s32.totalorder %s24, 0
      %p174 = por %p172, %p173
      %p175 = scmp.ne.s32.totalorder %s161, %s162
      %p176 = scmp.eq.s32.totalorder %s25, 1
      %p177 = por %p175, %p176
      %p179 = scmp.ne.s32.totalorder %s162, %s178
      %p180 = scmp.eq.s32.totalorder %s25, 0
      %p181 = por %p179, %p180
      %p182 = scmp.le.s32.totalorder 1, %s19
      %p183 = scmp.lt.s32.totalorder %s19, 3
      %p184 = pnand %p182, %p183
      %p185 = pneg %p184
      // Predicated region
      $region9: #{tpu_custom_call.1} parent=5 // pred_check
        _
      $region10: #{tpu_custom_call.1} parent=5 // pred_check_branch
        %187 = sbr.rel (%p184) target = $region12
      $region11: #{tpu_custom_call.1} parent=5 // pred_region
        %s188 = ssub.s32 %s19, 1
        // Predicated region
        $region13: #{tpu_custom_call.1} parent=11 // pred_check
          %p189 = pneg %p85
        $region14: #{tpu_custom_call.1} parent=11 // pred_check_branch
          %191 = sbr.rel (%p189) target = $region16
        $region15: #{tpu_custom_call.1} parent=11 // pred_region
          %s192 = smul.u32 384, %s29
          %s194 = ssub.s32 24576, 24576
          %195 = vsyncadd [#allocation7], %s194
          %s196 = smul.addr %s192, 64
          %s197 = scalar_lea.hbm %s1, %s196
          %s198 = sshll.u32 [#allocation6], 4
          %s199 = int_to_ptr.vmem [resolvable:$true] %s198
          %204 = dma.hbm_to_vmem [thread:$0]  %s197, 24576, %s199, [#allocation7], 64, 64, 4
        $region16: #{tpu_custom_call.1} parent=11 // pred_fallthru
          _
        // Predicated region
        $region17: #{tpu_custom_call.1} parent=11 // pred_check
          %p205 = pneg %p106
        $region18: #{tpu_custom_call.1} parent=11 // pred_check_branch
          %207 = sbr.rel (%p205) target = $region20
        $region19: #{tpu_custom_call.1} parent=11 // pred_region
          %s209 = ssub.s32 16, 16
          %210 = vsyncadd [#allocation7], %s209
          %s212 = sshll.u32 [#allocation8], 4
          %s213 = int_to_ptr.vmem [resolvable:$true] %s212
          %215 = dma.hbm_to_vmem [thread:$0]  %s2, 16, %s213, [#allocation7]
        $region20: #{tpu_custom_call.1} parent=11 // pred_fallthru
          _
        // Predicated region
        $region21: #{tpu_custom_call.1} parent=11 // pred_check
          %p216 = pneg %p127
        $region22: #{tpu_custom_call.1} parent=11 // pred_check_branch
          %218 = sbr.rel (%p216) target = $region24
        $region23: #{tpu_custom_call.1} parent=11 // pred_region
          %s220 = ssub.s32 1024, 1024
          %221 = vsyncadd [#allocation10], %s220
          %s222 = sshll.u32 [#allocation9], 4
          %s223 = int_to_ptr.vmem [resolvable:$true] %s222
          %228 = dma.hbm_to_vmem [thread:$0]  %s3, 1024, %s223, [#allocation10], 64, 64, 4
        $region24: #{tpu_custom_call.1} parent=11 // pred_fallthru
          _
        // Predicated region
        $region25: #{tpu_custom_call.1} parent=11 // pred_check
          %p229 = pneg %p148
        $region26: #{tpu_custom_call.1} parent=11 // pred_check_branch
          %231 = sbr.rel (%p229) target = $region28
        $region27: #{tpu_custom_call.1} parent=11 // pred_region
          %s233 = ssub.s32 16, 16
          %234 = vsyncadd [#allocation10], %s233
          %s236 = sshll.u32 [#allocation11], 4
          %s237 = int_to_ptr.vmem [resolvable:$true] %s236
          %239 = dma.hbm_to_vmem [thread:$0]  %s4, 16, %s237, [#allocation10]
        $region28: #{tpu_custom_call.1} parent=11 // pred_fallthru
          _
      $region12: #{tpu_custom_call.1} parent=5 // pred_fallthru
        _
      %p240 = scmp.lt.s32.totalorder %s19, 2
      // Predicated region
      $region29: #{tpu_custom_call.1} parent=5 // pred_check
        %p241 = pneg %p240
      $region30: #{tpu_custom_call.1} parent=5 // pred_check_branch
        %243 = sbr.rel (%p241) target = $region32
      $region31: #{tpu_custom_call.1} parent=5 // pred_region
        // Predicated region
        $region33: #{tpu_custom_call.1} parent=31 // pred_check
          %p244 = pneg %p53
        $region34: #{tpu_custom_call.1} parent=31 // pred_check_branch
          %246 = sbr.rel (%p244) target = $region36
        $region35: #{tpu_custom_call.1} parent=31 // pred_region
          %s247 = sand.u32 %s43, 1
          %s248 = scalar_lea.sflag [#allocation4], %s247
          %s249 = sand.u32 %s43, 1
          %s250 = smul.addr %s249, 1536
          %s251 = scalar_lea.vmem [#allocation3], %s250
          %s252 = smul.u32 8, %s26
          %s253 = smul.u32 24, %s27
          %s255 = ssub.s32 24576, 24576
          %256 = vsyncadd %s248, %s255
          %s257 = smul.addr %s252, 24
          %s258 = sadd.s32 %s253, %s257
          %s259 = smul.addr %s258, 128
          %s260 = scalar_lea.hbm %s0, %s259
          %s261 = sshll.u32 %s251, 4
          %s262 = int_to_ptr.vmem [resolvable:$true] %s261
          %267 = dma.hbm_to_vmem [thread:$0]  %s260, 24576, %s262, %s248, 3072, 3072, 192
        $region36: #{tpu_custom_call.1} parent=31 // pred_fallthru
          _
      $region32: #{tpu_custom_call.1} parent=5 // pred_fallthru
        _
      %p268 = scmp.le.s32.totalorder 1, %s19
      %p269 = scmp.lt.s32.totalorder %s19, 3
      %p270 = pnand %p268, %p269
      %p271 = pneg %p270
      // Predicated region
      $region37: #{tpu_custom_call.1} parent=5 // pred_check
        _
      $region38: #{tpu_custom_call.1} parent=5 // pred_check_branch
        %273 = sbr.rel (%p270) target = $region40
      $region39: #{tpu_custom_call.1} parent=5 // pred_region
        %s274 = ssub.s32 %s19, 1
        %s275 = sand.u32 %s46, 1
        %s276 = scalar_lea.sflag [#allocation4], %s275
        %s277 = sand.u32 %s46, 1
        %s278 = smul.addr %s277, 1536
        %s279 = scalar_lea.vmem [#allocation3], %s278
        // Predicated region
        $region41: #{tpu_custom_call.1} parent=39 // pred_check
          %p280 = pneg %p59
        $region42: #{tpu_custom_call.1} parent=39 // pred_check_branch
          %282 = sbr.rel (%p280) target = $region44
        $region43: #{tpu_custom_call.1} parent=39 // pred_region
          %283 = dma.done %s276, 24576
        $region44: #{tpu_custom_call.1} parent=39 // pred_fallthru
          _
        // Predicated region
        $region45: #{tpu_custom_call.1} parent=39 // pred_check
          %p284 = pneg %p85
        $region46: #{tpu_custom_call.1} parent=39 // pred_check_branch
          %286 = sbr.rel (%p284) target = $region48
        $region47: #{tpu_custom_call.1} parent=39 // pred_region
          %287 = dma.done [#allocation7], 24576
        $region48: #{tpu_custom_call.1} parent=39 // pred_fallthru
          _
        // Predicated region
        $region49: #{tpu_custom_call.1} parent=39 // pred_check
          %p288 = pneg %p106
        $region50: #{tpu_custom_call.1} parent=39 // pred_check_branch
          %290 = sbr.rel (%p288) target = $region52
        $region51: #{tpu_custom_call.1} parent=39 // pred_region
          %291 = dma.done [#allocation7], 16
        $region52: #{tpu_custom_call.1} parent=39 // pred_fallthru
          _
        // Predicated region
        $region53: #{tpu_custom_call.1} parent=39 // pred_check
          %p292 = pneg %p127
        $region54: #{tpu_custom_call.1} parent=39 // pred_check_branch
          %294 = sbr.rel (%p292) target = $region56
        $region55: #{tpu_custom_call.1} parent=39 // pred_region
          %295 = dma.done [#allocation10], 1024
        $region56: #{tpu_custom_call.1} parent=39 // pred_fallthru
          _
        // Predicated region
        $region57: #{tpu_custom_call.1} parent=39 // pred_check
          %p296 = pneg %p148
        $region58: #{tpu_custom_call.1} parent=39 // pred_check_branch
          %298 = sbr.rel (%p296) target = $region60
        $region59: #{tpu_custom_call.1} parent=39 // pred_region
          %299 = dma.done [#allocation10], 16
        $region60: #{tpu_custom_call.1} parent=39 // pred_fallthru
          _
        %s300 = sand.u32 %s46, 1
        %s301 = scalar_lea.sflag [#allocation4], %s300
        %s302 = sand.u32 %s46, 1
        %s303 = smul.addr %s302, 1536
        %s304 = scalar_lea.vmem [#allocation3], %s303
        %p305 = pneg %p59
        %p306 = pneg %p56
        %p307 = pneg %p85
        %p308 = pneg %p82
        %p309 = pneg %p106
        %p310 = pneg %p103
        %p311 = pneg %p127
        %p312 = pneg %p124
        %p313 = pneg %p148
        %p314 = pneg %p145
        %p315 = pneg %p174
        %p316 = pneg %p171
        %s317 = sand.u32 %s161, 1
        %s318 = scalar_lea.sflag [#allocation5], %s317
        %s319 = sand.u32 %s161, 1
        %s320 = smul.addr %s319, 64
        %s321 = scalar_lea.vmem [#allocation12], %s320
        %s322 = smul.u32 8, %s28
        %s323 = smul.u32 24, %s29
        %s324 = smul.u32 384, %s29
        %s325 = smul.u32 8, %s28
        %p327 = scmp.eq.s32.totalorder %s29, 0
        // Predicated region
        $region61: #{tpu_custom_call.1} parent=39 // pred_check
          %p328 = pneg %p327
        $region62: #{tpu_custom_call.1} parent=39 // pred_check_branch
          %330 = sbr.rel (%p328) target = $region64
        $region63: #{tpu_custom_call.1} parent=39 // pred_region
          %331 = vst [vmem:[#allocation2] sm:$0xff] 0.0
          %332 = vst [vmem:[#allocation2 + $0x8] sm:$0xff] 0.0
          %333 = vst [vmem:[#allocation2 + $0x10] sm:$0xff] 0.0
          %334 = vst [vmem:[#allocation2 + $0x18] sm:$0xff] 0.0
          %335 = vst [vmem:[#allocation2 + $0x20] sm:$0xff] 0.0
          %336 = vst [vmem:[#allocation2 + $0x28] sm:$0xff] 0.0
          %337 = vst [vmem:[#allocation2 + $0x30] sm:$0xff] 0.0
          %338 = vst [vmem:[#allocation2 + $0x38] sm:$0xff] 0.0
        $region64: #{tpu_custom_call.1} parent=39 // pred_fallthru
          _
        %v339 = vld [vmem:[#allocation2] sm:$0xff]
        %v340 = vld [vmem:[#allocation2 + $0x8] sm:$0xff]
        %v341 = vld [vmem:[#allocation2 + $0x10] sm:$0xff]
        %v342 = vld [vmem:[#allocation2 + $0x18] sm:$0xff]
        %v343 = vld [vmem:[#allocation2 + $0x20] sm:$0xff]
        %v344 = vld [vmem:[#allocation2 + $0x28] sm:$0xff]
        %v345 = vld [vmem:[#allocation2 + $0x30] sm:$0xff]
        %v346 = vld [vmem:[#allocation2 + $0x38] sm:$0xff]
        %v347 = vld [vmem:[%s279] sm:$0xff]
        %v348 = vld [vmem:[%s279 + $0x8] sm:$0xff]
        %v349 = vld [vmem:[%s279 + $0x10] sm:$0xff]
        %v350 = vld [vmem:[%s279 + $0x18] sm:$0xff]
        %v351 = vld [vmem:[%s279 + $0x20] sm:$0xff]
        %v352 = vld [vmem:[%s279 + $0x28] sm:$0xff]
        %v353 = vld [vmem:[%s279 + $0x30] sm:$0xff]
        %v354 = vld [vmem:[%s279 + $0x38] sm:$0xff]
        %v355 = vld [vmem:[%s279 + $0x40] sm:$0xff]
        %v356 = vld [vmem:[%s279 + $0x48] sm:$0xff]
        %v357 = vld [vmem:[%s279 + $0x50] sm:$0xff]
        %v358 = vld [vmem:[%s279 + $0x58] sm:$0xff]
        %v359 = vld [vmem:[%s279 + $0x60] sm:$0xff]
        %v360 = vld [vmem:[%s279 + $0x68] sm:$0xff]
        %v361 = vld [vmem:[%s279 + $0x70] sm:$0xff]
        %v362 = vld [vmem:[%s279 + $0x78] sm:$0xff]
        %v363 = vld [vmem:[%s279 + $0x80] sm:$0xff]
        %v364 = vld [vmem:[%s279 + $0x88] sm:$0xff]
        %v365 = vld [vmem:[%s279 + $0x90] sm:$0xff]
        %v366 = vld [vmem:[%s279 + $0x98] sm:$0xff]
        %v367 = vld [vmem:[%s279 + $0xa0] sm:$0xff]
        %v368 = vld [vmem:[%s279 + $0xa8] sm:$0xff]
        %v369 = vld [vmem:[%s279 + $0xb0] sm:$0xff]
        %v370 = vld [vmem:[%s279 + $0xb8] sm:$0xff]
        %v371 = vld [vmem:[%s279 + $0xc0] sm:$0xff]
        %v372 = vld [vmem:[%s279 + $0xc8] sm:$0xff]
        %v373 = vld [vmem:[%s279 + $0xd0] sm:$0xff]
        %v374 = vld [vmem:[%s279 + $0xd8] sm:$0xff]
        %v375 = vld [vmem:[%s279 + $0xe0] sm:$0xff]
        %v376 = vld [vmem:[%s279 + $0xe8] sm:$0xff]
        %v377 = vld [vmem:[%s279 + $0xf0] sm:$0xff]
        %v378 = vld [vmem:[%s279 + $0xf8] sm:$0xff]
        %v379 = vld [vmem:[%s279 + $0x100] sm:$0xff]
        %v380 = vld [vmem:[%s279 + $0x108] sm:$0xff]
        %v381 = vld [vmem:[%s279 + $0x110] sm:$0xff]
        %v382 = vld [vmem:[%s279 + $0x118] sm:$0xff]
        %v383 = vld [vmem:[%s279 + $0x120] sm:$0xff]
        %v384 = vld [vmem:[%s279 + $0x128] sm:$0xff]
        %v385 = vld [vmem:[%s279 + $0x130] sm:$0xff]
        %v386 = vld [vmem:[%s279 + $0x138] sm:$0xff]
        %v387 = vld [vmem:[%s279 + $0x140] sm:$0xff]
        %v388 = vld [vmem:[%s279 + $0x148] sm:$0xff]
        %v389 = vld [vmem:[%s279 + $0x150] sm:$0xff]
        %v390 = vld [vmem:[%s279 + $0x158] sm:$0xff]
        %v391 = vld [vmem:[%s279 + $0x160] sm:$0xff]
        %v392 = vld [vmem:[%s279 + $0x168] sm:$0xff]
        %v393 = vld [vmem:[%s279 + $0x170] sm:$0xff]
        %v394 = vld [vmem:[%s279 + $0x178] sm:$0xff]
        %v395 = vld [vmem:[%s279 + $0x180] sm:$0xff]
        %v396 = vld [vmem:[%s279 + $0x188] sm:$0xff]
        %v397 = vld [vmem:[%s279 + $0x190] sm:$0xff]
        %v398 = vld [vmem:[%s279 + $0x198] sm:$0xff]
        %v399 = vld [vmem:[%s279 + $0x1a0] sm:$0xff]
        %v400 = vld [vmem:[%s279 + $0x1a8] sm:$0xff]
        %v401 = vld [vmem:[%s279 + $0x1b0] sm:$0xff]
        %v402 = vld [vmem:[%s279 + $0x1b8] sm:$0xff]
        %v403 = vld [vmem:[%s279 + $0x1c0] sm:$0xff]
        %v404 = vld [vmem:[%s279 + $0x1c8] sm:$0xff]
        %v405 = vld [vmem:[%s279 + $0x1d0] sm:$0xff]
        %v406 = vld [vmem:[%s279 + $0x1d8] sm:$0xff]
        %v407 = vld [vmem:[%s279 + $0x1e0] sm:$0xff]
        %v408 = vld [vmem:[%s279 + $0x1e8] sm:$0xff]
        %v409 = vld [vmem:[%s279 + $0x1f0] sm:$0xff]
        %v410 = vld [vmem:[%s279 + $0x1f8] sm:$0xff]
        %v411 = vld [vmem:[%s279 + $0x200] sm:$0xff]
        %v412 = vld [vmem:[%s279 + $0x208] sm:$0xff]
        %v413 = vld [vmem:[%s279 + $0x210] sm:$0xff]
        %v414 = vld [vmem:[%s279 + $0x218] sm:$0xff]
        %v415 = vld [vmem:[%s279 + $0x220] sm:$0xff]
        %v416 = vld [vmem:[%s279 + $0x228] sm:$0xff]
        %v417 = vld [vmem:[%s279 + $0x230] sm:$0xff]
        %v418 = vld [vmem:[%s279 + $0x238] sm:$0xff]
        %v419 = vld [vmem:[%s279 + $0x240] sm:$0xff]
        %v420 = vld [vmem:[%s279 + $0x248] sm:$0xff]
        %v421 = vld [vmem:[%s279 + $0x250] sm:$0xff]
        %v422 = vld [vmem:[%s279 + $0x258] sm:$0xff]
        %v423 = vld [vmem:[%s279 + $0x260] sm:$0xff]
        %v424 = vld [vmem:[%s279 + $0x268] sm:$0xff]
        %v425 = vld [vmem:[%s279 + $0x270] sm:$0xff]
        %v426 = vld [vmem:[%s279 + $0x278] sm:$0xff]
        %v427 = vld [vmem:[%s279 + $0x280] sm:$0xff]
        %v428 = vld [vmem:[%s279 + $0x288] sm:$0xff]
        %v429 = vld [vmem:[%s279 + $0x290] sm:$0xff]
        %v430 = vld [vmem:[%s279 + $0x298] sm:$0xff]
        %v431 = vld [vmem:[%s279 + $0x2a0] sm:$0xff]
        %v432 = vld [vmem:[%s279 + $0x2a8] sm:$0xff]
        %v433 = vld [vmem:[%s279 + $0x2b0] sm:$0xff]
        %v434 = vld [vmem:[%s279 + $0x2b8] sm:$0xff]
        %v435 = vld [vmem:[%s279 + $0x2c0] sm:$0xff]
        %v436 = vld [vmem:[%s279 + $0x2c8] sm:$0xff]
        %v437 = vld [vmem:[%s279 + $0x2d0] sm:$0xff]
        %v438 = vld [vmem:[%s279 + $0x2d8] sm:$0xff]
        %v439 = vld [vmem:[%s279 + $0x2e0] sm:$0xff]
        %v440 = vld [vmem:[%s279 + $0x2e8] sm:$0xff]
        %v441 = vld [vmem:[%s279 + $0x2f0] sm:$0xff]
        %v442 = vld [vmem:[%s279 + $0x2f8] sm:$0xff]
        %v443 = vld [vmem:[%s279 + $0x300] sm:$0xff]
        %v444 = vld [vmem:[%s279 + $0x308] sm:$0xff]
        %v445 = vld [vmem:[%s279 + $0x310] sm:$0xff]
        %v446 = vld [vmem:[%s279 + $0x318] sm:$0xff]
        %v447 = vld [vmem:[%s279 + $0x320] sm:$0xff]
        %v448 = vld [vmem:[%s279 + $0x328] sm:$0xff]
        %v449 = vld [vmem:[%s279 + $0x330] sm:$0xff]
        %v450 = vld [vmem:[%s279 + $0x338] sm:$0xff]
        %v451 = vld [vmem:[%s279 + $0x340] sm:$0xff]
        %v452 = vld [vmem:[%s279 + $0x348] sm:$0xff]
        %v453 = vld [vmem:[%s279 + $0x350] sm:$0xff]
        %v454 = vld [vmem:[%s279 + $0x358] sm:$0xff]
        %v455 = vld [vmem:[%s279 + $0x360] sm:$0xff]
        %v456 = vld [vmem:[%s279 + $0x368] sm:$0xff]
        %v457 = vld [vmem:[%s279 + $0x370] sm:$0xff]
        %v458 = vld [vmem:[%s279 + $0x378] sm:$0xff]
        %v459 = vld [vmem:[%s279 + $0x380] sm:$0xff]
        %v460 = vld [vmem:[%s279 + $0x388] sm:$0xff]
        %v461 = vld [vmem:[%s279 + $0x390] sm:$0xff]
        %v462 = vld [vmem:[%s279 + $0x398] sm:$0xff]
        %v463 = vld [vmem:[%s279 + $0x3a0] sm:$0xff]
        %v464 = vld [vmem:[%s279 + $0x3a8] sm:$0xff]
        %v465 = vld [vmem:[%s279 + $0x3b0] sm:$0xff]
        %v466 = vld [vmem:[%s279 + $0x3b8] sm:$0xff]
        %v467 = vld [vmem:[%s279 + $0x3c0] sm:$0xff]
        %v468 = vld [vmem:[%s279 + $0x3c8] sm:$0xff]
        %v469 = vld [vmem:[%s279 + $0x3d0] sm:$0xff]
        %v470 = vld [vmem:[%s279 + $0x3d8] sm:$0xff]
        %v471 = vld [vmem:[%s279 + $0x3e0] sm:$0xff]
        %v472 = vld [vmem:[%s279 + $0x3e8] sm:$0xff]
        %v473 = vld [vmem:[%s279 + $0x3f0] sm:$0xff]
        %v474 = vld [vmem:[%s279 + $0x3f8] sm:$0xff]
        %v475 = vld [vmem:[%s279 + $0x400] sm:$0xff]
        %v476 = vld [vmem:[%s279 + $0x408] sm:$0xff]
        %v477 = vld [vmem:[%s279 + $0x410] sm:$0xff]
        %v478 = vld [vmem:[%s279 + $0x418] sm:$0xff]
        %v479 = vld [vmem:[%s279 + $0x420] sm:$0xff]
        %v480 = vld [vmem:[%s279 + $0x428] sm:$0xff]
        %v481 = vld [vmem:[%s279 + $0x430] sm:$0xff]
        %v482 = vld [vmem:[%s279 + $0x438] sm:$0xff]
        %v483 = vld [vmem:[%s279 + $0x440] sm:$0xff]
        %v484 = vld [vmem:[%s279 + $0x448] sm:$0xff]
        %v485 = vld [vmem:[%s279 + $0x450] sm:$0xff]
        %v486 = vld [vmem:[%s279 + $0x458] sm:$0xff]
        %v487 = vld [vmem:[%s279 + $0x460] sm:$0xff]
        %v488 = vld [vmem:[%s279 + $0x468] sm:$0xff]
        %v489 = vld [vmem:[%s279 + $0x470] sm:$0xff]
        %v490 = vld [vmem:[%s279 + $0x478] sm:$0xff]
        %v491 = vld [vmem:[%s279 + $0x480] sm:$0xff]
        %v492 = vld [vmem:[%s279 + $0x488] sm:$0xff]
        %v493 = vld [vmem:[%s279 + $0x490] sm:$0xff]
        %v494 = vld [vmem:[%s279 + $0x498] sm:$0xff]
        %v495 = vld [vmem:[%s279 + $0x4a0] sm:$0xff]
        %v496 = vld [vmem:[%s279 + $0x4a8] sm:$0xff]
        %v497 = vld [vmem:[%s279 + $0x4b0] sm:$0xff]
        %v498 = vld [vmem:[%s279 + $0x4b8] sm:$0xff]
        %v499 = vld [vmem:[%s279 + $0x4c0] sm:$0xff]
        %v500 = vld [vmem:[%s279 + $0x4c8] sm:$0xff]
        %v501 = vld [vmem:[%s279 + $0x4d0] sm:$0xff]
        %v502 = vld [vmem:[%s279 + $0x4d8] sm:$0xff]
        %v503 = vld [vmem:[%s279 + $0x4e0] sm:$0xff]
        %v504 = vld [vmem:[%s279 + $0x4e8] sm:$0xff]
        %v505 = vld [vmem:[%s279 + $0x4f0] sm:$0xff]
        %v506 = vld [vmem:[%s279 + $0x4f8] sm:$0xff]
        %v507 = vld [vmem:[%s279 + $0x500] sm:$0xff]
        %v508 = vld [vmem:[%s279 + $0x508] sm:$0xff]
        %v509 = vld [vmem:[%s279 + $0x510] sm:$0xff]
        %v510 = vld [vmem:[%s279 + $0x518] sm:$0xff]
        %v511 = vld [vmem:[%s279 + $0x520] sm:$0xff]
        %v512 = vld [vmem:[%s279 + $0x528] sm:$0xff]
        %v513 = vld [vmem:[%s279 + $0x530] sm:$0xff]
        %v514 = vld [vmem:[%s279 + $0x538] sm:$0xff]
        %v515 = vld [vmem:[%s279 + $0x540] sm:$0xff]
        %v516 = vld [vmem:[%s279 + $0x548] sm:$0xff]
        %v517 = vld [vmem:[%s279 + $0x550] sm:$0xff]
        %v518 = vld [vmem:[%s279 + $0x558] sm:$0xff]
        %v519 = vld [vmem:[%s279 + $0x560] sm:$0xff]
        %v520 = vld [vmem:[%s279 + $0x568] sm:$0xff]
        %v521 = vld [vmem:[%s279 + $0x570] sm:$0xff]
        %v522 = vld [vmem:[%s279 + $0x578] sm:$0xff]
        %v523 = vld [vmem:[%s279 + $0x580] sm:$0xff]
        %v524 = vld [vmem:[%s279 + $0x588] sm:$0xff]
        %v525 = vld [vmem:[%s279 + $0x590] sm:$0xff]
        %v526 = vld [vmem:[%s279 + $0x598] sm:$0xff]
        %v527 = vld [vmem:[%s279 + $0x5a0] sm:$0xff]
        %v528 = vld [vmem:[%s279 + $0x5a8] sm:$0xff]
        %v529 = vld [vmem:[%s279 + $0x5b0] sm:$0xff]
        %v530 = vld [vmem:[%s279 + $0x5b8] sm:$0xff]
        %v531 = vld [vmem:[%s279 + $0x5c0] sm:$0xff]
        %v532 = vld [vmem:[%s279 + $0x5c8] sm:$0xff]
        %v533 = vld [vmem:[%s279 + $0x5d0] sm:$0xff]
        %v534 = vld [vmem:[%s279 + $0x5d8] sm:$0xff]
        %v535 = vld [vmem:[%s279 + $0x5e0] sm:$0xff]
        %v536 = vld [vmem:[%s279 + $0x5e8] sm:$0xff]
        %v537 = vld [vmem:[%s279 + $0x5f0] sm:$0xff]
        %v538 = vld [vmem:[%s279 + $0x5f8] sm:$0xff]
        %v539 = vpack.c.bf16 %v371, %v347
        %v540 = vpack.c.bf16 %v372, %v348
        %v541 = vpack.c.bf16 %v373, %v349
        %v542 = vpack.c.bf16 %v374, %v350
        %v543 = vpack.c.bf16 %v375, %v351
        %v544 = vpack.c.bf16 %v376, %v352
        %v545 = vpack.c.bf16 %v377, %v353
        %v546 = vpack.c.bf16 %v378, %v354
        %v547 = vpack.c.bf16 %v379, %v355
        %v548 = vpack.c.bf16 %v380, %v356
        %v549 = vpack.c.bf16 %v381, %v357
        %v550 = vpack.c.bf16 %v382, %v358
        %v551 = vpack.c.bf16 %v383, %v359
        %v552 = vpack.c.bf16 %v384, %v360
        %v553 = vpack.c.bf16 %v385, %v361
        %v554 = vpack.c.bf16 %v386, %v362
        %v555 = vpack.c.bf16 %v387, %v363
        %v556 = vpack.c.bf16 %v388, %v364
        %v557 = vpack.c.bf16 %v389, %v365
        %v558 = vpack.c.bf16 %v390, %v366
        %v559 = vpack.c.bf16 %v391, %v367
        %v560 = vpack.c.bf16 %v392, %v368
        %v561 = vpack.c.bf16 %v393, %v369
        %v562 = vpack.c.bf16 %v394, %v370
        %v563 = vpack.c.bf16 %v419, %v395
        %v564 = vpack.c.bf16 %v420, %v396
        %v565 = vpack.c.bf16 %v421, %v397
        %v566 = vpack.c.bf16 %v422, %v398
        %v567 = vpack.c.bf16 %v423, %v399
        %v568 = vpack.c.bf16 %v424, %v400
        %v569 = vpack.c.bf16 %v425, %v401
        %v570 = vpack.c.bf16 %v426, %v402
        %v571 = vpack.c.bf16 %v427, %v403
        %v572 = vpack.c.bf16 %v428, %v404
        %v573 = vpack.c.bf16 %v429, %v405
        %v574 = vpack.c.bf16 %v430, %v406
        %v575 = vpack.c.bf16 %v431, %v407
        %v576 = vpack.c.bf16 %v432, %v408
        %v577 = vpack.c.bf16 %v433, %v409
        %v578 = vpack.c.bf16 %v434, %v410
        %v579 = vpack.c.bf16 %v435, %v411
        %v580 = vpack.c.bf16 %v436, %v412
        %v581 = vpack.c.bf16 %v437, %v413
        %v582 = vpack.c.bf16 %v438, %v414
        %v583 = vpack.c.bf16 %v439, %v415
        %v584 = vpack.c.bf16 %v440, %v416
        %v585 = vpack.c.bf16 %v441, %v417
        %v586 = vpack.c.bf16 %v442, %v418
        %v587 = vpack.c.bf16 %v467, %v443
        %v588 = vpack.c.bf16 %v468, %v444
        %v589 = vpack.c.bf16 %v469, %v445
        %v590 = vpack.c.bf16 %v470, %v446
        %v591 = vpack.c.bf16 %v471, %v447
        %v592 = vpack.c.bf16 %v472, %v448
        %v593 = vpack.c.bf16 %v473, %v449
        %v594 = vpack.c.bf16 %v474, %v450
        %v595 = vpack.c.bf16 %v475, %v451
        %v596 = vpack.c.bf16 %v476, %v452
        %v597 = vpack.c.bf16 %v477, %v453
        %v598 = vpack.c.bf16 %v478, %v454
        %v599 = vpack.c.bf16 %v479, %v455
        %v600 = vpack.c.bf16 %v480, %v456
        %v601 = vpack.c.bf16 %v481, %v457
        %v602 = vpack.c.bf16 %v482, %v458
        %v603 = vpack.c.bf16 %v483, %v459
        %v604 = vpack.c.bf16 %v484, %v460
        %v605 = vpack.c.bf16 %v485, %v461
        %v606 = vpack.c.bf16 %v486, %v462
        %v607 = vpack.c.bf16 %v487, %v463
        %v608 = vpack.c.bf16 %v488, %v464
        %v609 = vpack.c.bf16 %v489, %v465
        %v610 = vpack.c.bf16 %v490, %v466
        %v611 = vpack.c.bf16 %v515, %v491
        %v612 = vpack.c.bf16 %v516, %v492
        %v613 = vpack.c.bf16 %v517, %v493
        %v614 = vpack.c.bf16 %v518, %v494
        %v615 = vpack.c.bf16 %v519, %v495
        %v616 = vpack.c.bf16 %v520, %v496
        %v617 = vpack.c.bf16 %v521, %v497
        %v618 = vpack.c.bf16 %v522, %v498
        %v619 = vpack.c.bf16 %v523, %v499
        %v620 = vpack.c.bf16 %v524, %v500
        %v621 = vpack.c.bf16 %v525, %v501
        %v622 = vpack.c.bf16 %v526, %v502
        %v623 = vpack.c.bf16 %v527, %v503
        %v624 = vpack.c.bf16 %v528, %v504
        %v625 = vpack.c.bf16 %v529, %v505
        %v626 = vpack.c.bf16 %v530, %v506
        %v627 = vpack.c.bf16 %v531, %v507
        %v628 = vpack.c.bf16 %v532, %v508
        %v629 = vpack.c.bf16 %v533, %v509
        %v630 = vpack.c.bf16 %v534, %v510
        %v631 = vpack.c.bf16 %v535, %v511
        %v632 = vpack.c.bf16 %v536, %v512
        %v633 = vpack.c.bf16 %v537, %v513
        %v634 = vpack.c.bf16 %v538, %v514
        %v635 = vld [vmem:[#allocation6] sm:$0xf]
        %v636 = vld [vmem:[#allocation6 + $0x4] sm:$0xf]
        %v637 = vld [vmem:[#allocation6 + $0x8] sm:$0xf]
        %v638 = vld [vmem:[#allocation6 + $0xc] sm:$0xf]
        %v639 = vld [vmem:[#allocation6 + $0x10] sm:$0xf]
        %v640 = vld [vmem:[#allocation6 + $0x14] sm:$0xf]
        %v641 = vld [vmem:[#allocation6 + $0x18] sm:$0xf]
        %v642 = vld [vmem:[#allocation6 + $0x1c] sm:$0xf]
        %v643 = vld [vmem:[#allocation6 + $0x20] sm:$0xf]
        %v644 = vld [vmem:[#allocation6 + $0x24] sm:$0xf]
        %v645 = vld [vmem:[#allocation6 + $0x28] sm:$0xf]
        %v646 = vld [vmem:[#allocation6 + $0x2c] sm:$0xf]
        %v647 = vld [vmem:[#allocation6 + $0x30] sm:$0xf]
        %v648 = vld [vmem:[#allocation6 + $0x34] sm:$0xf]
        %v649 = vld [vmem:[#allocation6 + $0x38] sm:$0xf]
        %v650 = vld [vmem:[#allocation6 + $0x3c] sm:$0xf]
        %v651 = vld [vmem:[#allocation6 + $0x40] sm:$0xf]
        %v652 = vld [vmem:[#allocation6 + $0x44] sm:$0xf]
        %v653 = vld [vmem:[#allocation6 + $0x48] sm:$0xf]
        %v654 = vld [vmem:[#allocation6 + $0x4c] sm:$0xf]
        %v655 = vld [vmem:[#allocation6 + $0x50] sm:$0xf]
        %v656 = vld [vmem:[#allocation6 + $0x54] sm:$0xf]
        %v657 = vld [vmem:[#allocation6 + $0x58] sm:$0xf]
        %v658 = vld [vmem:[#allocation6 + $0x5c] sm:$0xf]
        %v659 = vld [vmem:[#allocation6 + $0x60] sm:$0xf]
        %v660 = vld [vmem:[#allocation6 + $0x64] sm:$0xf]
        %v661 = vld [vmem:[#allocation6 + $0x68] sm:$0xf]
        %v662 = vld [vmem:[#allocation6 + $0x6c] sm:$0xf]
        %v663 = vld [vmem:[#allocation6 + $0x70] sm:$0xf]
        %v664 = vld [vmem:[#allocation6 + $0x74] sm:$0xf]
        %v665 = vld [vmem:[#allocation6 + $0x78] sm:$0xf]
        %v666 = vld [vmem:[#allocation6 + $0x7c] sm:$0xf]
        %v667 = vld [vmem:[#allocation6 + $0x80] sm:$0xf]
        %v668 = vld [vmem:[#allocation6 + $0x84] sm:$0xf]
        %v669 = vld [vmem:[#allocation6 + $0x88] sm:$0xf]
        %v670 = vld [vmem:[#allocation6 + $0x8c] sm:$0xf]
        %v671 = vld [vmem:[#allocation6 + $0x90] sm:$0xf]
        %v672 = vld [vmem:[#allocation6 + $0x94] sm:$0xf]
        %v673 = vld [vmem:[#allocation6 + $0x98] sm:$0xf]
        %v674 = vld [vmem:[#allocation6 + $0x9c] sm:$0xf]
        %v675 = vld [vmem:[#allocation6 + $0xa0] sm:$0xf]
        %v676 = vld [vmem:[#allocation6 + $0xa4] sm:$0xf]
        %v677 = vld [vmem:[#allocation6 + $0xa8] sm:$0xf]
        %v678 = vld [vmem:[#allocation6 + $0xac] sm:$0xf]
        %v679 = vld [vmem:[#allocation6 + $0xb0] sm:$0xf]
        %v680 = vld [vmem:[#allocation6 + $0xb4] sm:$0xf]
        %v681 = vld [vmem:[#allocation6 + $0xb8] sm:$0xf]
        %v682 = vld [vmem:[#allocation6 + $0xbc] sm:$0xf]
        %v683 = vld [vmem:[#allocation6 + $0xc0] sm:$0xf]
        %v684 = vld [vmem:[#allocation6 + $0xc4] sm:$0xf]
        %v685 = vld [vmem:[#allocation6 + $0xc8] sm:$0xf]
        %v686 = vld [vmem:[#allocation6 + $0xcc] sm:$0xf]
        %v687 = vld [vmem:[#allocation6 + $0xd0] sm:$0xf]
        %v688 = vld [vmem:[#allocation6 + $0xd4] sm:$0xf]
        %v689 = vld [vmem:[#allocation6 + $0xd8] sm:$0xf]
        %v690 = vld [vmem:[#allocation6 + $0xdc] sm:$0xf]
        %v691 = vld [vmem:[#allocation6 + $0xe0] sm:$0xf]
        %v692 = vld [vmem:[#allocation6 + $0xe4] sm:$0xf]
        %v693 = vld [vmem:[#allocation6 + $0xe8] sm:$0xf]
        %v694 = vld [vmem:[#allocation6 + $0xec] sm:$0xf]
        %v695 = vld [vmem:[#allocation6 + $0xf0] sm:$0xf]
        %v696 = vld [vmem:[#allocation6 + $0xf4] sm:$0xf]
        %v697 = vld [vmem:[#allocation6 + $0xf8] sm:$0xf]
        %v698 = vld [vmem:[#allocation6 + $0xfc] sm:$0xf]
        %v699 = vld [vmem:[#allocation6 + $0x100] sm:$0xf]
        %v700 = vld [vmem:[#allocation6 + $0x104] sm:$0xf]
        %v701 = vld [vmem:[#allocation6 + $0x108] sm:$0xf]
        %v702 = vld [vmem:[#allocation6 + $0x10c] sm:$0xf]
        %v703 = vld [vmem:[#allocation6 + $0x110] sm:$0xf]
        %v704 = vld [vmem:[#allocation6 + $0x114] sm:$0xf]
        %v705 = vld [vmem:[#allocation6 + $0x118] sm:$0xf]
        %v706 = vld [vmem:[#allocation6 + $0x11c] sm:$0xf]
        %v707 = vld [vmem:[#allocation6 + $0x120] sm:$0xf]
        %v708 = vld [vmem:[#allocation6 + $0x124] sm:$0xf]
        %v709 = vld [vmem:[#allocation6 + $0x128] sm:$0xf]
        %v710 = vld [vmem:[#allocation6 + $0x12c] sm:$0xf]
        %v711 = vld [vmem:[#allocation6 + $0x130] sm:$0xf]
        %v712 = vld [vmem:[#allocation6 + $0x134] sm:$0xf]
        %v713 = vld [vmem:[#allocation6 + $0x138] sm:$0xf]
        %v714 = vld [vmem:[#allocation6 + $0x13c] sm:$0xf]
        %v715 = vld [vmem:[#allocation6 + $0x140] sm:$0xf]
        %v716 = vld [vmem:[#allocation6 + $0x144] sm:$0xf]
        %v717 = vld [vmem:[#allocation6 + $0x148] sm:$0xf]
        %v718 = vld [vmem:[#allocation6 + $0x14c] sm:$0xf]
        %v719 = vld [vmem:[#allocation6 + $0x150] sm:$0xf]
        %v720 = vld [vmem:[#allocation6 + $0x154] sm:$0xf]
        %v721 = vld [vmem:[#allocation6 + $0x158] sm:$0xf]
        %v722 = vld [vmem:[#allocation6 + $0x15c] sm:$0xf]
        %v723 = vld [vmem:[#allocation6 + $0x160] sm:$0xf]
        %v724 = vld [vmem:[#allocation6 + $0x164] sm:$0xf]
        %v725 = vld [vmem:[#allocation6 + $0x168] sm:$0xf]
        %v726 = vld [vmem:[#allocation6 + $0x16c] sm:$0xf]
        %v727 = vld [vmem:[#allocation6 + $0x170] sm:$0xf]
        %v728 = vld [vmem:[#allocation6 + $0x174] sm:$0xf]
        %v729 = vld [vmem:[#allocation6 + $0x178] sm:$0xf]
        %v730 = vld [vmem:[#allocation6 + $0x17c] sm:$0xf]
        %v731 = vld [vmem:[#allocation6 + $0x180] sm:$0xf]
        %v732 = vld [vmem:[#allocation6 + $0x184] sm:$0xf]
        %v733 = vld [vmem:[#allocation6 + $0x188] sm:$0xf]
        %v734 = vld [vmem:[#allocation6 + $0x18c] sm:$0xf]
        %v735 = vld [vmem:[#allocation6 + $0x190] sm:$0xf]
        %v736 = vld [vmem:[#allocation6 + $0x194] sm:$0xf]
        %v737 = vld [vmem:[#allocation6 + $0x198] sm:$0xf]
        %v738 = vld [vmem:[#allocation6 + $0x19c] sm:$0xf]
        %v739 = vld [vmem:[#allocation6 + $0x1a0] sm:$0xf]
        %v740 = vld [vmem:[#allocation6 + $0x1a4] sm:$0xf]
        %v741 = vld [vmem:[#allocation6 + $0x1a8] sm:$0xf]
        %v742 = vld [vmem:[#allocation6 + $0x1ac] sm:$0xf]
        %v743 = vld [vmem:[#allocation6 + $0x1b0] sm:$0xf]
        %v744 = vld [vmem:[#allocation6 + $0x1b4] sm:$0xf]
        %v745 = vld [vmem:[#allocation6 + $0x1b8] sm:$0xf]
        %v746 = vld [vmem:[#allocation6 + $0x1bc] sm:$0xf]
        %v747 = vld [vmem:[#allocation6 + $0x1c0] sm:$0xf]
        %v748 = vld [vmem:[#allocation6 + $0x1c4] sm:$0xf]
        %v749 = vld [vmem:[#allocation6 + $0x1c8] sm:$0xf]
        %v750 = vld [vmem:[#allocation6 + $0x1cc] sm:$0xf]
        %v751 = vld [vmem:[#allocation6 + $0x1d0] sm:$0xf]
        %v752 = vld [vmem:[#allocation6 + $0x1d4] sm:$0xf]
        %v753 = vld [vmem:[#allocation6 + $0x1d8] sm:$0xf]
        %v754 = vld [vmem:[#allocation6 + $0x1dc] sm:$0xf]
        %v755 = vld [vmem:[#allocation6 + $0x1e0] sm:$0xf]
        %v756 = vld [vmem:[#allocation6 + $0x1e4] sm:$0xf]
        %v757 = vld [vmem:[#allocation6 + $0x1e8] sm:$0xf]
        %v758 = vld [vmem:[#allocation6 + $0x1ec] sm:$0xf]
        %v759 = vld [vmem:[#allocation6 + $0x1f0] sm:$0xf]
        %v760 = vld [vmem:[#allocation6 + $0x1f4] sm:$0xf]
        %v761 = vld [vmem:[#allocation6 + $0x1f8] sm:$0xf]
        %v762 = vld [vmem:[#allocation6 + $0x1fc] sm:$0xf]
        %v763 = vld [vmem:[#allocation6 + $0x200] sm:$0xf]
        %v764 = vld [vmem:[#allocation6 + $0x204] sm:$0xf]
        %v765 = vld [vmem:[#allocation6 + $0x208] sm:$0xf]
        %v766 = vld [vmem:[#allocation6 + $0x20c] sm:$0xf]
        %v767 = vld [vmem:[#allocation6 + $0x210] sm:$0xf]
        %v768 = vld [vmem:[#allocation6 + $0x214] sm:$0xf]
        %v769 = vld [vmem:[#allocation6 + $0x218] sm:$0xf]
        %v770 = vld [vmem:[#allocation6 + $0x21c] sm:$0xf]
        %v771 = vld [vmem:[#allocation6 + $0x220] sm:$0xf]
        %v772 = vld [vmem:[#allocation6 + $0x224] sm:$0xf]
        %v773 = vld [vmem:[#allocation6 + $0x228] sm:$0xf]
        %v774 = vld [vmem:[#allocation6 + $0x22c] sm:$0xf]
        %v775 = vld [vmem:[#allocation6 + $0x230] sm:$0xf]
        %v776 = vld [vmem:[#allocation6 + $0x234] sm:$0xf]
        %v777 = vld [vmem:[#allocation6 + $0x238] sm:$0xf]
        %v778 = vld [vmem:[#allocation6 + $0x23c] sm:$0xf]
        %v779 = vld [vmem:[#allocation6 + $0x240] sm:$0xf]
        %v780 = vld [vmem:[#allocation6 + $0x244] sm:$0xf]
        %v781 = vld [vmem:[#allocation6 + $0x248] sm:$0xf]
        %v782 = vld [vmem:[#allocation6 + $0x24c] sm:$0xf]
        %v783 = vld [vmem:[#allocation6 + $0x250] sm:$0xf]
        %v784 = vld [vmem:[#allocation6 + $0x254] sm:$0xf]
        %v785 = vld [vmem:[#allocation6 + $0x258] sm:$0xf]
        %v786 = vld [vmem:[#allocation6 + $0x25c] sm:$0xf]
        %v787 = vld [vmem:[#allocation6 + $0x260] sm:$0xf]
        %v788 = vld [vmem:[#allocation6 + $0x264] sm:$0xf]
        %v789 = vld [vmem:[#allocation6 + $0x268] sm:$0xf]
        %v790 = vld [vmem:[#allocation6 + $0x26c] sm:$0xf]
        %v791 = vld [vmem:[#allocation6 + $0x270] sm:$0xf]
        %v792 = vld [vmem:[#allocation6 + $0x274] sm:$0xf]
        %v793 = vld [vmem:[#allocation6 + $0x278] sm:$0xf]
        %v794 = vld [vmem:[#allocation6 + $0x27c] sm:$0xf]
        %v795 = vld [vmem:[#allocation6 + $0x280] sm:$0xf]
        %v796 = vld [vmem:[#allocation6 + $0x284] sm:$0xf]
        %v797 = vld [vmem:[#allocation6 + $0x288] sm:$0xf]
        %v798 = vld [vmem:[#allocation6 + $0x28c] sm:$0xf]
        %v799 = vld [vmem:[#allocation6 + $0x290] sm:$0xf]
        %v800 = vld [vmem:[#allocation6 + $0x294] sm:$0xf]
        %v801 = vld [vmem:[#allocation6 + $0x298] sm:$0xf]
        %v802 = vld [vmem:[#allocation6 + $0x29c] sm:$0xf]
        %v803 = vld [vmem:[#allocation6 + $0x2a0] sm:$0xf]
        %v804 = vld [vmem:[#allocation6 + $0x2a4] sm:$0xf]
        %v805 = vld [vmem:[#allocation6 + $0x2a8] sm:$0xf]
        %v806 = vld [vmem:[#allocation6 + $0x2ac] sm:$0xf]
        %v807 = vld [vmem:[#allocation6 + $0x2b0] sm:$0xf]
        %v808 = vld [vmem:[#allocation6 + $0x2b4] sm:$0xf]
        %v809 = vld [vmem:[#allocation6 + $0x2b8] sm:$0xf]
        %v810 = vld [vmem:[#allocation6 + $0x2bc] sm:$0xf]
        %v811 = vld [vmem:[#allocation6 + $0x2c0] sm:$0xf]
        %v812 = vld [vmem:[#allocation6 + $0x2c4] sm:$0xf]
        %v813 = vld [vmem:[#allocation6 + $0x2c8] sm:$0xf]
        %v814 = vld [vmem:[#allocation6 + $0x2cc] sm:$0xf]
        %v815 = vld [vmem:[#allocation6 + $0x2d0] sm:$0xf]
        %v816 = vld [vmem:[#allocation6 + $0x2d4] sm:$0xf]
        %v817 = vld [vmem:[#allocation6 + $0x2d8] sm:$0xf]
        %v818 = vld [vmem:[#allocation6 + $0x2dc] sm:$0xf]
        %v819 = vld [vmem:[#allocation6 + $0x2e0] sm:$0xf]
        %v820 = vld [vmem:[#allocation6 + $0x2e4] sm:$0xf]
        %v821 = vld [vmem:[#allocation6 + $0x2e8] sm:$0xf]
        %v822 = vld [vmem:[#allocation6 + $0x2ec] sm:$0xf]
        %v823 = vld [vmem:[#allocation6 + $0x2f0] sm:$0xf]
        %v824 = vld [vmem:[#allocation6 + $0x2f4] sm:$0xf]
        %v825 = vld [vmem:[#allocation6 + $0x2f8] sm:$0xf]
        %v826 = vld [vmem:[#allocation6 + $0x2fc] sm:$0xf]
        %v827 = vld [vmem:[#allocation6 + $0x300] sm:$0xf]
        %v828 = vld [vmem:[#allocation6 + $0x304] sm:$0xf]
        %v829 = vld [vmem:[#allocation6 + $0x308] sm:$0xf]
        %v830 = vld [vmem:[#allocation6 + $0x30c] sm:$0xf]
        %v831 = vld [vmem:[#allocation6 + $0x310] sm:$0xf]
        %v832 = vld [vmem:[#allocation6 + $0x314] sm:$0xf]
        %v833 = vld [vmem:[#allocation6 + $0x318] sm:$0xf]
        %v834 = vld [vmem:[#allocation6 + $0x31c] sm:$0xf]
        %v835 = vld [vmem:[#allocation6 + $0x320] sm:$0xf]
        %v836 = vld [vmem:[#allocation6 + $0x324] sm:$0xf]
        %v837 = vld [vmem:[#allocation6 + $0x328] sm:$0xf]
        %v838 = vld [vmem:[#allocation6 + $0x32c] sm:$0xf]
        %v839 = vld [vmem:[#allocation6 + $0x330] sm:$0xf]
        %v840 = vld [vmem:[#allocation6 + $0x334] sm:$0xf]
        %v841 = vld [vmem:[#allocation6 + $0x338] sm:$0xf]
        %v842 = vld [vmem:[#allocation6 + $0x33c] sm:$0xf]
        %v843 = vld [vmem:[#allocation6 + $0x340] sm:$0xf]
        %v844 = vld [vmem:[#allocation6 + $0x344] sm:$0xf]
        %v845 = vld [vmem:[#allocation6 + $0x348] sm:$0xf]
        %v846 = vld [vmem:[#allocation6 + $0x34c] sm:$0xf]
        %v847 = vld [vmem:[#allocation6 + $0x350] sm:$0xf]
        %v848 = vld [vmem:[#allocation6 + $0x354] sm:$0xf]
        %v849 = vld [vmem:[#allocation6 + $0x358] sm:$0xf]
        %v850 = vld [vmem:[#allocation6 + $0x35c] sm:$0xf]
        %v851 = vld [vmem:[#allocation6 + $0x360] sm:$0xf]
        %v852 = vld [vmem:[#allocation6 + $0x364] sm:$0xf]
        %v853 = vld [vmem:[#allocation6 + $0x368] sm:$0xf]
        %v854 = vld [vmem:[#allocation6 + $0x36c] sm:$0xf]
        %v855 = vld [vmem:[#allocation6 + $0x370] sm:$0xf]
        %v856 = vld [vmem:[#allocation6 + $0x374] sm:$0xf]
        %v857 = vld [vmem:[#allocation6 + $0x378] sm:$0xf]
        %v858 = vld [vmem:[#allocation6 + $0x37c] sm:$0xf]
        %v859 = vld [vmem:[#allocation6 + $0x380] sm:$0xf]
        %v860 = vld [vmem:[#allocation6 + $0x384] sm:$0xf]
        %v861 = vld [vmem:[#allocation6 + $0x388] sm:$0xf]
        %v862 = vld [vmem:[#allocation6 + $0x38c] sm:$0xf]
        %v863 = vld [vmem:[#allocation6 + $0x390] sm:$0xf]
        %v864 = vld [vmem:[#allocation6 + $0x394] sm:$0xf]
        %v865 = vld [vmem:[#allocation6 + $0x398] sm:$0xf]
        %v866 = vld [vmem:[#allocation6 + $0x39c] sm:$0xf]
        %v867 = vld [vmem:[#allocation6 + $0x3a0] sm:$0xf]
        %v868 = vld [vmem:[#allocation6 + $0x3a4] sm:$0xf]
        %v869 = vld [vmem:[#allocation6 + $0x3a8] sm:$0xf]
        %v870 = vld [vmem:[#allocation6 + $0x3ac] sm:$0xf]
        %v871 = vld [vmem:[#allocation6 + $0x3b0] sm:$0xf]
        %v872 = vld [vmem:[#allocation6 + $0x3b4] sm:$0xf]
        %v873 = vld [vmem:[#allocation6 + $0x3b8] sm:$0xf]
        %v874 = vld [vmem:[#allocation6 + $0x3bc] sm:$0xf]
        %v875 = vld [vmem:[#allocation6 + $0x3c0] sm:$0xf]
        %v876 = vld [vmem:[#allocation6 + $0x3c4] sm:$0xf]
        %v877 = vld [vmem:[#allocation6 + $0x3c8] sm:$0xf]
        %v878 = vld [vmem:[#allocation6 + $0x3cc] sm:$0xf]
        %v879 = vld [vmem:[#allocation6 + $0x3d0] sm:$0xf]
        %v880 = vld [vmem:[#allocation6 + $0x3d4] sm:$0xf]
        %v881 = vld [vmem:[#allocation6 + $0x3d8] sm:$0xf]
        %v882 = vld [vmem:[#allocation6 + $0x3dc] sm:$0xf]
        %v883 = vld [vmem:[#allocation6 + $0x3e0] sm:$0xf]
        %v884 = vld [vmem:[#allocation6 + $0x3e4] sm:$0xf]
        %v885 = vld [vmem:[#allocation6 + $0x3e8] sm:$0xf]
        %v886 = vld [vmem:[#allocation6 + $0x3ec] sm:$0xf]
        %v887 = vld [vmem:[#allocation6 + $0x3f0] sm:$0xf]
        %v888 = vld [vmem:[#allocation6 + $0x3f4] sm:$0xf]
        %v889 = vld [vmem:[#allocation6 + $0x3f8] sm:$0xf]
        %v890 = vld [vmem:[#allocation6 + $0x3fc] sm:$0xf]
        %v891 = vld [vmem:[#allocation6 + $0x400] sm:$0xf]
        %v892 = vld [vmem:[#allocation6 + $0x404] sm:$0xf]
        %v893 = vld [vmem:[#allocation6 + $0x408] sm:$0xf]
        %v894 = vld [vmem:[#allocation6 + $0x40c] sm:$0xf]
        %v895 = vld [vmem:[#allocation6 + $0x410] sm:$0xf]
        %v896 = vld [vmem:[#allocation6 + $0x414] sm:$0xf]
        %v897 = vld [vmem:[#allocation6 + $0x418] sm:$0xf]
        %v898 = vld [vmem:[#allocation6 + $0x41c] sm:$0xf]
        %v899 = vld [vmem:[#allocation6 + $0x420] sm:$0xf]
        %v900 = vld [vmem:[#allocation6 + $0x424] sm:$0xf]
        %v901 = vld [vmem:[#allocation6 + $0x428] sm:$0xf]
        %v902 = vld [vmem:[#allocation6 + $0x42c] sm:$0xf]
        %v903 = vld [vmem:[#allocation6 + $0x430] sm:$0xf]
        %v904 = vld [vmem:[#allocation6 + $0x434] sm:$0xf]
        %v905 = vld [vmem:[#allocation6 + $0x438] sm:$0xf]
        %v906 = vld [vmem:[#allocation6 + $0x43c] sm:$0xf]
        %v907 = vld [vmem:[#allocation6 + $0x440] sm:$0xf]
        %v908 = vld [vmem:[#allocation6 + $0x444] sm:$0xf]
        %v909 = vld [vmem:[#allocation6 + $0x448] sm:$0xf]
        %v910 = vld [vmem:[#allocation6 + $0x44c] sm:$0xf]
        %v911 = vld [vmem:[#allocation6 + $0x450] sm:$0xf]
        %v912 = vld [vmem:[#allocation6 + $0x454] sm:$0xf]
        %v913 = vld [vmem:[#allocation6 + $0x458] sm:$0xf]
        %v914 = vld [vmem:[#allocation6 + $0x45c] sm:$0xf]
        %v915 = vld [vmem:[#allocation6 + $0x460] sm:$0xf]
        %v916 = vld [vmem:[#allocation6 + $0x464] sm:$0xf]
        %v917 = vld [vmem:[#allocation6 + $0x468] sm:$0xf]
        %v918 = vld [vmem:[#allocation6 + $0x46c] sm:$0xf]
        %v919 = vld [vmem:[#allocation6 + $0x470] sm:$0xf]
        %v920 = vld [vmem:[#allocation6 + $0x474] sm:$0xf]
        %v921 = vld [vmem:[#allocation6 + $0x478] sm:$0xf]
        %v922 = vld [vmem:[#allocation6 + $0x47c] sm:$0xf]
        %v923 = vld [vmem:[#allocation6 + $0x480] sm:$0xf]
        %v924 = vld [vmem:[#allocation6 + $0x484] sm:$0xf]
        %v925 = vld [vmem:[#allocation6 + $0x488] sm:$0xf]
        %v926 = vld [vmem:[#allocation6 + $0x48c] sm:$0xf]
        %v927 = vld [vmem:[#allocation6 + $0x490] sm:$0xf]
        %v928 = vld [vmem:[#allocation6 + $0x494] sm:$0xf]
        %v929 = vld [vmem:[#allocation6 + $0x498] sm:$0xf]
        %v930 = vld [vmem:[#allocation6 + $0x49c] sm:$0xf]
        %v931 = vld [vmem:[#allocation6 + $0x4a0] sm:$0xf]
        %v932 = vld [vmem:[#allocation6 + $0x4a4] sm:$0xf]
        %v933 = vld [vmem:[#allocation6 + $0x4a8] sm:$0xf]
        %v934 = vld [vmem:[#allocation6 + $0x4ac] sm:$0xf]
        %v935 = vld [vmem:[#allocation6 + $0x4b0] sm:$0xf]
        %v936 = vld [vmem:[#allocation6 + $0x4b4] sm:$0xf]
        %v937 = vld [vmem:[#allocation6 + $0x4b8] sm:$0xf]
        %v938 = vld [vmem:[#allocation6 + $0x4bc] sm:$0xf]
        %v939 = vld [vmem:[#allocation6 + $0x4c0] sm:$0xf]
        %v940 = vld [vmem:[#allocation6 + $0x4c4] sm:$0xf]
        %v941 = vld [vmem:[#allocation6 + $0x4c8] sm:$0xf]
        %v942 = vld [vmem:[#allocation6 + $0x4cc] sm:$0xf]
        %v943 = vld [vmem:[#allocation6 + $0x4d0] sm:$0xf]
        %v944 = vld [vmem:[#allocation6 + $0x4d4] sm:$0xf]
        %v945 = vld [vmem:[#allocation6 + $0x4d8] sm:$0xf]
        %v946 = vld [vmem:[#allocation6 + $0x4dc] sm:$0xf]
        %v947 = vld [vmem:[#allocation6 + $0x4e0] sm:$0xf]
        %v948 = vld [vmem:[#allocation6 + $0x4e4] sm:$0xf]
        %v949 = vld [vmem:[#allocation6 + $0x4e8] sm:$0xf]
        %v950 = vld [vmem:[#allocation6 + $0x4ec] sm:$0xf]
        %v951 = vld [vmem:[#allocation6 + $0x4f0] sm:$0xf]
        %v952 = vld [vmem:[#allocation6 + $0x4f4] sm:$0xf]
        %v953 = vld [vmem:[#allocation6 + $0x4f8] sm:$0xf]
        %v954 = vld [vmem:[#allocation6 + $0x4fc] sm:$0xf]
        %v955 = vld [vmem:[#allocation6 + $0x500] sm:$0xf]
        %v956 = vld [vmem:[#allocation6 + $0x504] sm:$0xf]
        %v957 = vld [vmem:[#allocation6 + $0x508] sm:$0xf]
        %v958 = vld [vmem:[#allocation6 + $0x50c] sm:$0xf]
        %v959 = vld [vmem:[#allocation6 + $0x510] sm:$0xf]
        %v960 = vld [vmem:[#allocation6 + $0x514] sm:$0xf]
        %v961 = vld [vmem:[#allocation6 + $0x518] sm:$0xf]
        %v962 = vld [vmem:[#allocation6 + $0x51c] sm:$0xf]
        %v963 = vld [vmem:[#allocation6 + $0x520] sm:$0xf]
        %v964 = vld [vmem:[#allocation6 + $0x524] sm:$0xf]
        %v965 = vld [vmem:[#allocation6 + $0x528] sm:$0xf]
        %v966 = vld [vmem:[#allocation6 + $0x52c] sm:$0xf]
        %v967 = vld [vmem:[#allocation6 + $0x530] sm:$0xf]
        %v968 = vld [vmem:[#allocation6 + $0x534] sm:$0xf]
        %v969 = vld [vmem:[#allocation6 + $0x538] sm:$0xf]
        %v970 = vld [vmem:[#allocation6 + $0x53c] sm:$0xf]
        %v971 = vld [vmem:[#allocation6 + $0x540] sm:$0xf]
        %v972 = vld [vmem:[#allocation6 + $0x544] sm:$0xf]
        %v973 = vld [vmem:[#allocation6 + $0x548] sm:$0xf]
        %v974 = vld [vmem:[#allocation6 + $0x54c] sm:$0xf]
        %v975 = vld [vmem:[#allocation6 + $0x550] sm:$0xf]
        %v976 = vld [vmem:[#allocation6 + $0x554] sm:$0xf]
        %v977 = vld [vmem:[#allocation6 + $0x558] sm:$0xf]
        %v978 = vld [vmem:[#allocation6 + $0x55c] sm:$0xf]
        %v979 = vld [vmem:[#allocation6 + $0x560] sm:$0xf]
        %v980 = vld [vmem:[#allocation6 + $0x564] sm:$0xf]
        %v981 = vld [vmem:[#allocation6 + $0x568] sm:$0xf]
        %v982 = vld [vmem:[#allocation6 + $0x56c] sm:$0xf]
        %v983 = vld [vmem:[#allocation6 + $0x570] sm:$0xf]
        %v984 = vld [vmem:[#allocation6 + $0x574] sm:$0xf]
        %v985 = vld [vmem:[#allocation6 + $0x578] sm:$0xf]
        %v986 = vld [vmem:[#allocation6 + $0x57c] sm:$0xf]
        %v987 = vld [vmem:[#allocation6 + $0x580] sm:$0xf]
        %v988 = vld [vmem:[#allocation6 + $0x584] sm:$0xf]
        %v989 = vld [vmem:[#allocation6 + $0x588] sm:$0xf]
        %v990 = vld [vmem:[#allocation6 + $0x58c] sm:$0xf]
        %v991 = vld [vmem:[#allocation6 + $0x590] sm:$0xf]
        %v992 = vld [vmem:[#allocation6 + $0x594] sm:$0xf]
        %v993 = vld [vmem:[#allocation6 + $0x598] sm:$0xf]
        %v994 = vld [vmem:[#allocation6 + $0x59c] sm:$0xf]
        %v995 = vld [vmem:[#allocation6 + $0x5a0] sm:$0xf]
        %v996 = vld [vmem:[#allocation6 + $0x5a4] sm:$0xf]
        %v997 = vld [vmem:[#allocation6 + $0x5a8] sm:$0xf]
        %v998 = vld [vmem:[#allocation6 + $0x5ac] sm:$0xf]
        %v999 = vld [vmem:[#allocation6 + $0x5b0] sm:$0xf]
        %v1000 = vld [vmem:[#allocation6 + $0x5b4] sm:$0xf]
        %v1001 = vld [vmem:[#allocation6 + $0x5b8] sm:$0xf]
        %v1002 = vld [vmem:[#allocation6 + $0x5bc] sm:$0xf]
        %v1003 = vld [vmem:[#allocation6 + $0x5c0] sm:$0xf]
        %v1004 = vld [vmem:[#allocation6 + $0x5c4] sm:$0xf]
        %v1005 = vld [vmem:[#allocation6 + $0x5c8] sm:$0xf]
        %v1006 = vld [vmem:[#allocation6 + $0x5cc] sm:$0xf]
        %v1007 = vld [vmem:[#allocation6 + $0x5d0] sm:$0xf]
        %v1008 = vld [vmem:[#allocation6 + $0x5d4] sm:$0xf]
        %v1009 = vld [vmem:[#allocation6 + $0x5d8] sm:$0xf]
        %v1010 = vld [vmem:[#allocation6 + $0x5dc] sm:$0xf]
        %v1011 = vld [vmem:[#allocation6 + $0x5e0] sm:$0xf]
        %v1012 = vld [vmem:[#allocation6 + $0x5e4] sm:$0xf]
        %v1013 = vld [vmem:[#allocation6 + $0x5e8] sm:$0xf]
        %v1014 = vld [vmem:[#allocation6 + $0x5ec] sm:$0xf]
        %v1015 = vld [vmem:[#allocation6 + $0x5f0] sm:$0xf]
        %v1016 = vld [vmem:[#allocation6 + $0x5f4] sm:$0xf]
        %v1017 = vld [vmem:[#allocation6 + $0x5f8] sm:$0xf]
        %v1018 = vld [vmem:[#allocation6 + $0x5fc] sm:$0xf]
        %v1403 = vunpack.c.l.b16 %v635
        %v1404 = vunpack.c.l.b16 %v636
        %v1405 = vunpack.c.l.b16 %v637
        %v1406 = vunpack.c.l.b16 %v638
        %v1407 = vunpack.c.l.b16 %v639
        %v1408 = vunpack.c.l.b16 %v640
        %v1409 = vunpack.c.l.b16 %v641
        %v1410 = vunpack.c.l.b16 %v642
        %v1411 = vunpack.c.l.b16 %v643
        %v1412 = vunpack.c.l.b16 %v644
        %v1413 = vunpack.c.l.b16 %v645
        %v1414 = vunpack.c.l.b16 %v646
        %v1415 = vunpack.c.l.b16 %v647
        %v1416 = vunpack.c.l.b16 %v648
        %v1417 = vunpack.c.l.b16 %v649
        %v1418 = vunpack.c.l.b16 %v650
        %v1419 = vunpack.c.l.b16 %v651
        %v1420 = vunpack.c.l.b16 %v652
        %v1421 = vunpack.c.l.b16 %v653
        %v1422 = vunpack.c.l.b16 %v654
        %v1423 = vunpack.c.l.b16 %v655
        %v1424 = vunpack.c.l.b16 %v656
        %v1425 = vunpack.c.l.b16 %v657
        %v1426 = vunpack.c.l.b16 %v658
        %v1427 = vunpack.c.l.b16 %v659
        %v1428 = vunpack.c.l.b16 %v660
        %v1429 = vunpack.c.l.b16 %v661
        %v1430 = vunpack.c.l.b16 %v662
        %v1431 = vunpack.c.l.b16 %v663
        %v1432 = vunpack.c.l.b16 %v664
        %v1433 = vunpack.c.l.b16 %v665
        %v1434 = vunpack.c.l.b16 %v666
        %v1435 = vunpack.c.l.b16 %v667
        %v1436 = vunpack.c.l.b16 %v668
        %v1437 = vunpack.c.l.b16 %v669
        %v1438 = vunpack.c.l.b16 %v670
        %v1439 = vunpack.c.l.b16 %v671
        %v1440 = vunpack.c.l.b16 %v672
        %v1441 = vunpack.c.l.b16 %v673
        %v1442 = vunpack.c.l.b16 %v674
        %v1443 = vunpack.c.l.b16 %v675
        %v1444 = vunpack.c.l.b16 %v676
        %v1445 = vunpack.c.l.b16 %v677
        %v1446 = vunpack.c.l.b16 %v678
        %v1447 = vunpack.c.l.b16 %v679
        %v1448 = vunpack.c.l.b16 %v680
        %v1449 = vunpack.c.l.b16 %v681
        %v1450 = vunpack.c.l.b16 %v682
        %v1451 = vunpack.c.l.b16 %v683
        %v1452 = vunpack.c.l.b16 %v684
        %v1453 = vunpack.c.l.b16 %v685
        %v1454 = vunpack.c.l.b16 %v686
        %v1455 = vunpack.c.l.b16 %v687
        %v1456 = vunpack.c.l.b16 %v688
        %v1457 = vunpack.c.l.b16 %v689
        %v1458 = vunpack.c.l.b16 %v690
        %v1459 = vunpack.c.l.b16 %v691
        %v1460 = vunpack.c.l.b16 %v692
        %v1461 = vunpack.c.l.b16 %v693
        %v1462 = vunpack.c.l.b16 %v694
        %v1463 = vunpack.c.l.b16 %v695
        %v1464 = vunpack.c.l.b16 %v696
        %v1465 = vunpack.c.l.b16 %v697
        %v1466 = vunpack.c.l.b16 %v698
        %v1467 = vunpack.c.l.b16 %v699
        %v1468 = vunpack.c.l.b16 %v700
        %v1469 = vunpack.c.l.b16 %v701
        %v1470 = vunpack.c.l.b16 %v702
        %v1471 = vunpack.c.l.b16 %v703
        %v1472 = vunpack.c.l.b16 %v704
        %v1473 = vunpack.c.l.b16 %v705
        %v1474 = vunpack.c.l.b16 %v706
        %v1475 = vunpack.c.l.b16 %v707
        %v1476 = vunpack.c.l.b16 %v708
        %v1477 = vunpack.c.l.b16 %v709
        %v1478 = vunpack.c.l.b16 %v710
        %v1479 = vunpack.c.l.b16 %v711
        %v1480 = vunpack.c.l.b16 %v712
        %v1481 = vunpack.c.l.b16 %v713
        %v1482 = vunpack.c.l.b16 %v714
        %v1483 = vunpack.c.l.b16 %v715
        %v1484 = vunpack.c.l.b16 %v716
        %v1485 = vunpack.c.l.b16 %v717
        %v1486 = vunpack.c.l.b16 %v718
        %v1487 = vunpack.c.l.b16 %v719
        %v1488 = vunpack.c.l.b16 %v720
        %v1489 = vunpack.c.l.b16 %v721
        %v1490 = vunpack.c.l.b16 %v722
        %v1491 = vunpack.c.l.b16 %v723
        %v1492 = vunpack.c.l.b16 %v724
        %v1493 = vunpack.c.l.b16 %v725
        %v1494 = vunpack.c.l.b16 %v726
        %v1495 = vunpack.c.l.b16 %v727
        %v1496 = vunpack.c.l.b16 %v728
        %v1497 = vunpack.c.l.b16 %v729
        %v1498 = vunpack.c.l.b16 %v730
        %v1499 = vunpack.c.l.b16 %v731
        %v1500 = vunpack.c.l.b16 %v732
        %v1501 = vunpack.c.l.b16 %v733
        %v1502 = vunpack.c.l.b16 %v734
        %v1503 = vunpack.c.l.b16 %v735
        %v1504 = vunpack.c.l.b16 %v736
        %v1505 = vunpack.c.l.b16 %v737
        %v1506 = vunpack.c.l.b16 %v738
        %v1507 = vunpack.c.l.b16 %v739
        %v1508 = vunpack.c.l.b16 %v740
        %v1509 = vunpack.c.l.b16 %v741
        %v1510 = vunpack.c.l.b16 %v742
        %v1511 = vunpack.c.l.b16 %v743
        %v1512 = vunpack.c.l.b16 %v744
        %v1513 = vunpack.c.l.b16 %v745
        %v1514 = vunpack.c.l.b16 %v746
        %v1515 = vunpack.c.l.b16 %v747
        %v1516 = vunpack.c.l.b16 %v748
        %v1517 = vunpack.c.l.b16 %v749
        %v1518 = vunpack.c.l.b16 %v750
        %v1519 = vunpack.c.l.b16 %v751
        %v1520 = vunpack.c.l.b16 %v752
        %v1521 = vunpack.c.l.b16 %v753
        %v1522 = vunpack.c.l.b16 %v754
        %v1523 = vunpack.c.l.b16 %v755
        %v1524 = vunpack.c.l.b16 %v756
        %v1525 = vunpack.c.l.b16 %v757
        %v1526 = vunpack.c.l.b16 %v758
        %v1527 = vunpack.c.l.b16 %v759
        %v1528 = vunpack.c.l.b16 %v760
        %v1529 = vunpack.c.l.b16 %v761
        %v1530 = vunpack.c.l.b16 %v762
        %v1531 = vunpack.c.l.b16 %v763
        %v1532 = vunpack.c.l.b16 %v764
        %v1533 = vunpack.c.l.b16 %v765
        %v1534 = vunpack.c.l.b16 %v766
        %v1535 = vunpack.c.l.b16 %v767
        %v1536 = vunpack.c.l.b16 %v768
        %v1537 = vunpack.c.l.b16 %v769
        %v1538 = vunpack.c.l.b16 %v770
        %v1539 = vunpack.c.l.b16 %v771
        %v1540 = vunpack.c.l.b16 %v772
        %v1541 = vunpack.c.l.b16 %v773
        %v1542 = vunpack.c.l.b16 %v774
        %v1543 = vunpack.c.l.b16 %v775
        %v1544 = vunpack.c.l.b16 %v776
        %v1545 = vunpack.c.l.b16 %v777
        %v1546 = vunpack.c.l.b16 %v778
        %v1547 = vunpack.c.l.b16 %v779
        %v1548 = vunpack.c.l.b16 %v780
        %v1549 = vunpack.c.l.b16 %v781
        %v1550 = vunpack.c.l.b16 %v782
        %v1551 = vunpack.c.l.b16 %v783
        %v1552 = vunpack.c.l.b16 %v784
        %v1553 = vunpack.c.l.b16 %v785
        %v1554 = vunpack.c.l.b16 %v786
        %v1555 = vunpack.c.l.b16 %v787
        %v1556 = vunpack.c.l.b16 %v788
        %v1557 = vunpack.c.l.b16 %v789
        %v1558 = vunpack.c.l.b16 %v790
        %v1559 = vunpack.c.l.b16 %v791
        %v1560 = vunpack.c.l.b16 %v792
        %v1561 = vunpack.c.l.b16 %v793
        %v1562 = vunpack.c.l.b16 %v794
        %v1563 = vunpack.c.l.b16 %v795
        %v1564 = vunpack.c.l.b16 %v796
        %v1565 = vunpack.c.l.b16 %v797
        %v1566 = vunpack.c.l.b16 %v798
        %v1567 = vunpack.c.l.b16 %v799
        %v1568 = vunpack.c.l.b16 %v800
        %v1569 = vunpack.c.l.b16 %v801
        %v1570 = vunpack.c.l.b16 %v802
        %v1571 = vunpack.c.l.b16 %v803
        %v1572 = vunpack.c.l.b16 %v804
        %v1573 = vunpack.c.l.b16 %v805
        %v1574 = vunpack.c.l.b16 %v806
        %v1575 = vunpack.c.l.b16 %v807
        %v1576 = vunpack.c.l.b16 %v808
        %v1577 = vunpack.c.l.b16 %v809
        %v1578 = vunpack.c.l.b16 %v810
        %v1579 = vunpack.c.l.b16 %v811
        %v1580 = vunpack.c.l.b16 %v812
        %v1581 = vunpack.c.l.b16 %v813
        %v1582 = vunpack.c.l.b16 %v814
        %v1583 = vunpack.c.l.b16 %v815
        %v1584 = vunpack.c.l.b16 %v816
        %v1585 = vunpack.c.l.b16 %v817
        %v1586 = vunpack.c.l.b16 %v818
        %v1587 = vunpack.c.l.b16 %v819
        %v1588 = vunpack.c.l.b16 %v820
        %v1589 = vunpack.c.l.b16 %v821
        %v1590 = vunpack.c.l.b16 %v822
        %v1591 = vunpack.c.l.b16 %v823
        %v1592 = vunpack.c.l.b16 %v824
        %v1593 = vunpack.c.l.b16 %v825
        %v1594 = vunpack.c.l.b16 %v826
        %v1595 = vunpack.c.l.b16 %v827
        %v1596 = vunpack.c.l.b16 %v828
        %v1597 = vunpack.c.l.b16 %v829
        %v1598 = vunpack.c.l.b16 %v830
        %v1599 = vunpack.c.l.b16 %v831
        %v1600 = vunpack.c.l.b16 %v832
        %v1601 = vunpack.c.l.b16 %v833
        %v1602 = vunpack.c.l.b16 %v834
        %v1603 = vunpack.c.l.b16 %v835
        %v1604 = vunpack.c.l.b16 %v836
        %v1605 = vunpack.c.l.b16 %v837
        %v1606 = vunpack.c.l.b16 %v838
        %v1607 = vunpack.c.l.b16 %v839
        %v1608 = vunpack.c.l.b16 %v840
        %v1609 = vunpack.c.l.b16 %v841
        %v1610 = vunpack.c.l.b16 %v842
        %v1611 = vunpack.c.l.b16 %v843
        %v1612 = vunpack.c.l.b16 %v844
        %v1613 = vunpack.c.l.b16 %v845
        %v1614 = vunpack.c.l.b16 %v846
        %v1615 = vunpack.c.l.b16 %v847
        %v1616 = vunpack.c.l.b16 %v848
        %v1617 = vunpack.c.l.b16 %v849
        %v1618 = vunpack.c.l.b16 %v850
        %v1619 = vunpack.c.l.b16 %v851
        %v1620 = vunpack.c.l.b16 %v852
        %v1621 = vunpack.c.l.b16 %v853
        %v1622 = vunpack.c.l.b16 %v854
        %v1623 = vunpack.c.l.b16 %v855
        %v1624 = vunpack.c.l.b16 %v856
        %v1625 = vunpack.c.l.b16 %v857
        %v1626 = vunpack.c.l.b16 %v858
        %v1627 = vunpack.c.l.b16 %v859
        %v1628 = vunpack.c.l.b16 %v860
        %v1629 = vunpack.c.l.b16 %v861
        %v1630 = vunpack.c.l.b16 %v862
        %v1631 = vunpack.c.l.b16 %v863
        %v1632 = vunpack.c.l.b16 %v864
        %v1633 = vunpack.c.l.b16 %v865
        %v1634 = vunpack.c.l.b16 %v866
        %v1635 = vunpack.c.l.b16 %v867
        %v1636 = vunpack.c.l.b16 %v868
        %v1637 = vunpack.c.l.b16 %v869
        %v1638 = vunpack.c.l.b16 %v870
        %v1639 = vunpack.c.l.b16 %v871
        %v1640 = vunpack.c.l.b16 %v872
        %v1641 = vunpack.c.l.b16 %v873
        %v1642 = vunpack.c.l.b16 %v874
        %v1643 = vunpack.c.l.b16 %v875
        %v1644 = vunpack.c.l.b16 %v876
        %v1645 = vunpack.c.l.b16 %v877
        %v1646 = vunpack.c.l.b16 %v878
        %v1647 = vunpack.c.l.b16 %v879
        %v1648 = vunpack.c.l.b16 %v880
        %v1649 = vunpack.c.l.b16 %v881
        %v1650 = vunpack.c.l.b16 %v882
        %v1651 = vunpack.c.l.b16 %v883
        %v1652 = vunpack.c.l.b16 %v884
        %v1653 = vunpack.c.l.b16 %v885
        %v1654 = vunpack.c.l.b16 %v886
        %v1655 = vunpack.c.l.b16 %v887
        %v1656 = vunpack.c.l.b16 %v888
        %v1657 = vunpack.c.l.b16 %v889
        %v1658 = vunpack.c.l.b16 %v890
        %v1659 = vunpack.c.l.b16 %v891
        %v1660 = vunpack.c.l.b16 %v892
        %v1661 = vunpack.c.l.b16 %v893
        %v1662 = vunpack.c.l.b16 %v894
        %v1663 = vunpack.c.l.b16 %v895
        %v1664 = vunpack.c.l.b16 %v896
        %v1665 = vunpack.c.l.b16 %v897
        %v1666 = vunpack.c.l.b16 %v898
        %v1667 = vunpack.c.l.b16 %v899
        %v1668 = vunpack.c.l.b16 %v900
        %v1669 = vunpack.c.l.b16 %v901
        %v1670 = vunpack.c.l.b16 %v902
        %v1671 = vunpack.c.l.b16 %v903
        %v1672 = vunpack.c.l.b16 %v904
        %v1673 = vunpack.c.l.b16 %v905
        %v1674 = vunpack.c.l.b16 %v906
        %v1675 = vunpack.c.l.b16 %v907
        %v1676 = vunpack.c.l.b16 %v908
        %v1677 = vunpack.c.l.b16 %v909
        %v1678 = vunpack.c.l.b16 %v910
        %v1679 = vunpack.c.l.b16 %v911
        %v1680 = vunpack.c.l.b16 %v912
        %v1681 = vunpack.c.l.b16 %v913
        %v1682 = vunpack.c.l.b16 %v914
        %v1683 = vunpack.c.l.b16 %v915
        %v1684 = vunpack.c.l.b16 %v916
        %v1685 = vunpack.c.l.b16 %v917
        %v1686 = vunpack.c.l.b16 %v918
        %v1687 = vunpack.c.l.b16 %v919
        %v1688 = vunpack.c.l.b16 %v920
        %v1689 = vunpack.c.l.b16 %v921
        %v1690 = vunpack.c.l.b16 %v922
        %v1691 = vunpack.c.l.b16 %v923
        %v1692 = vunpack.c.l.b16 %v924
        %v1693 = vunpack.c.l.b16 %v925
        %v1694 = vunpack.c.l.b16 %v926
        %v1695 = vunpack.c.l.b16 %v927
        %v1696 = vunpack.c.l.b16 %v928
        %v1697 = vunpack.c.l.b16 %v929
        %v1698 = vunpack.c.l.b16 %v930
        %v1699 = vunpack.c.l.b16 %v931
        %v1700 = vunpack.c.l.b16 %v932
        %v1701 = vunpack.c.l.b16 %v933
        %v1702 = vunpack.c.l.b16 %v934
        %v1703 = vunpack.c.l.b16 %v935
        %v1704 = vunpack.c.l.b16 %v936
        %v1705 = vunpack.c.l.b16 %v937
        %v1706 = vunpack.c.l.b16 %v938
        %v1707 = vunpack.c.l.b16 %v939
        %v1708 = vunpack.c.l.b16 %v940
        %v1709 = vunpack.c.l.b16 %v941
        %v1710 = vunpack.c.l.b16 %v942
        %v1711 = vunpack.c.l.b16 %v943
        %v1712 = vunpack.c.l.b16 %v944
        %v1713 = vunpack.c.l.b16 %v945
        %v1714 = vunpack.c.l.b16 %v946
        %v1715 = vunpack.c.l.b16 %v947
        %v1716 = vunpack.c.l.b16 %v948
        %v1717 = vunpack.c.l.b16 %v949
        %v1718 = vunpack.c.l.b16 %v950
        %v1719 = vunpack.c.l.b16 %v951
        %v1720 = vunpack.c.l.b16 %v952
        %v1721 = vunpack.c.l.b16 %v953
        %v1722 = vunpack.c.l.b16 %v954
        %v1723 = vunpack.c.l.b16 %v955
        %v1724 = vunpack.c.l.b16 %v956
        %v1725 = vunpack.c.l.b16 %v957
        %v1726 = vunpack.c.l.b16 %v958
        %v1727 = vunpack.c.l.b16 %v959
        %v1728 = vunpack.c.l.b16 %v960
        %v1729 = vunpack.c.l.b16 %v961
        %v1730 = vunpack.c.l.b16 %v962
        %v1731 = vunpack.c.l.b16 %v963
        %v1732 = vunpack.c.l.b16 %v964
        %v1733 = vunpack.c.l.b16 %v965
        %v1734 = vunpack.c.l.b16 %v966
        %v1735 = vunpack.c.l.b16 %v967
        %v1736 = vunpack.c.l.b16 %v968
        %v1737 = vunpack.c.l.b16 %v969
        %v1738 = vunpack.c.l.b16 %v970
        %v1739 = vunpack.c.l.b16 %v971
        %v1740 = vunpack.c.l.b16 %v972
        %v1741 = vunpack.c.l.b16 %v973
        %v1742 = vunpack.c.l.b16 %v974
        %v1743 = vunpack.c.l.b16 %v975
        %v1744 = vunpack.c.l.b16 %v976
        %v1745 = vunpack.c.l.b16 %v977
        %v1746 = vunpack.c.l.b16 %v978
        %v1747 = vunpack.c.l.b16 %v979
        %v1748 = vunpack.c.l.b16 %v980
        %v1749 = vunpack.c.l.b16 %v981
        %v1750 = vunpack.c.l.b16 %v982
        %v1751 = vunpack.c.l.b16 %v983
        %v1752 = vunpack.c.l.b16 %v984
        %v1753 = vunpack.c.l.b16 %v985
        %v1754 = vunpack.c.l.b16 %v986
        %v1755 = vunpack.c.l.b16 %v987
        %v1756 = vunpack.c.l.b16 %v988
        %v1757 = vunpack.c.l.b16 %v989
        %v1758 = vunpack.c.l.b16 %v990
        %v1759 = vunpack.c.l.b16 %v991
        %v1760 = vunpack.c.l.b16 %v992
        %v1761 = vunpack.c.l.b16 %v993
        %v1762 = vunpack.c.l.b16 %v994
        %v1763 = vunpack.c.l.b16 %v995
        %v1764 = vunpack.c.l.b16 %v996
        %v1765 = vunpack.c.l.b16 %v997
        %v1766 = vunpack.c.l.b16 %v998
        %v1767 = vunpack.c.l.b16 %v999
        %v1768 = vunpack.c.l.b16 %v1000
        %v1769 = vunpack.c.l.b16 %v1001
        %v1770 = vunpack.c.l.b16 %v1002
        %v1771 = vunpack.c.l.b16 %v1003
        %v1772 = vunpack.c.l.b16 %v1004
        %v1773 = vunpack.c.l.b16 %v1005
        %v1774 = vunpack.c.l.b16 %v1006
        %v1775 = vunpack.c.l.b16 %v1007
        %v1776 = vunpack.c.l.b16 %v1008
        %v1777 = vunpack.c.l.b16 %v1009
        %v1778 = vunpack.c.l.b16 %v1010
        %v1779 = vunpack.c.l.b16 %v1011
        %v1780 = vunpack.c.l.b16 %v1012
        %v1781 = vunpack.c.l.b16 %v1013
        %v1782 = vunpack.c.l.b16 %v1014
        %v1783 = vunpack.c.l.b16 %v1015
        %v1784 = vunpack.c.l.b16 %v1016
        %v1785 = vunpack.c.l.b16 %v1017
        %v1786 = vunpack.c.l.b16 %v1018
        %v1787 = vpack.c.b16 %v1404, %v1403
        %v1788 = vpack.c.b16 %v1406, %v1405
        %v1789 = vpack.c.b16 %v1408, %v1407
        %v1790 = vpack.c.b16 %v1410, %v1409
        %v1791 = vpack.c.b16 %v1412, %v1411
        %v1792 = vpack.c.b16 %v1414, %v1413
        %v1793 = vpack.c.b16 %v1416, %v1415
        %v1794 = vpack.c.b16 %v1418, %v1417
        %v1795 = vpack.c.b16 %v1420, %v1419
        %v1796 = vpack.c.b16 %v1422, %v1421
        %v1797 = vpack.c.b16 %v1424, %v1423
        %v1798 = vpack.c.b16 %v1426, %v1425
        %v1799 = vpack.c.b16 %v1428, %v1427
        %v1800 = vpack.c.b16 %v1430, %v1429
        %v1801 = vpack.c.b16 %v1432, %v1431
        %v1802 = vpack.c.b16 %v1434, %v1433
        %v1803 = vpack.c.b16 %v1436, %v1435
        %v1804 = vpack.c.b16 %v1438, %v1437
        %v1805 = vpack.c.b16 %v1440, %v1439
        %v1806 = vpack.c.b16 %v1442, %v1441
        %v1807 = vpack.c.b16 %v1444, %v1443
        %v1808 = vpack.c.b16 %v1446, %v1445
        %v1809 = vpack.c.b16 %v1448, %v1447
        %v1810 = vpack.c.b16 %v1450, %v1449
        %v1811 = vpack.c.b16 %v1452, %v1451
        %v1812 = vpack.c.b16 %v1454, %v1453
        %v1813 = vpack.c.b16 %v1456, %v1455
        %v1814 = vpack.c.b16 %v1458, %v1457
        %v1815 = vpack.c.b16 %v1460, %v1459
        %v1816 = vpack.c.b16 %v1462, %v1461
        %v1817 = vpack.c.b16 %v1464, %v1463
        %v1818 = vpack.c.b16 %v1466, %v1465
        %v1819 = vpack.c.b16 %v1468, %v1467
        %v1820 = vpack.c.b16 %v1470, %v1469
        %v1821 = vpack.c.b16 %v1472, %v1471
        %v1822 = vpack.c.b16 %v1474, %v1473
        %v1823 = vpack.c.b16 %v1476, %v1475
        %v1824 = vpack.c.b16 %v1478, %v1477
        %v1825 = vpack.c.b16 %v1480, %v1479
        %v1826 = vpack.c.b16 %v1482, %v1481
        %v1827 = vpack.c.b16 %v1484, %v1483
        %v1828 = vpack.c.b16 %v1486, %v1485
        %v1829 = vpack.c.b16 %v1488, %v1487
        %v1830 = vpack.c.b16 %v1490, %v1489
        %v1831 = vpack.c.b16 %v1492, %v1491
        %v1832 = vpack.c.b16 %v1494, %v1493
        %v1833 = vpack.c.b16 %v1496, %v1495
        %v1834 = vpack.c.b16 %v1498, %v1497
        %v1835 = vpack.c.b16 %v1500, %v1499
        %v1836 = vpack.c.b16 %v1502, %v1501
        %v1837 = vpack.c.b16 %v1504, %v1503
        %v1838 = vpack.c.b16 %v1506, %v1505
        %v1839 = vpack.c.b16 %v1508, %v1507
        %v1840 = vpack.c.b16 %v1510, %v1509
        %v1841 = vpack.c.b16 %v1512, %v1511
        %v1842 = vpack.c.b16 %v1514, %v1513
        %v1843 = vpack.c.b16 %v1516, %v1515
        %v1844 = vpack.c.b16 %v1518, %v1517
        %v1845 = vpack.c.b16 %v1520, %v1519
        %v1846 = vpack.c.b16 %v1522, %v1521
        %v1847 = vpack.c.b16 %v1524, %v1523
        %v1848 = vpack.c.b16 %v1526, %v1525
        %v1849 = vpack.c.b16 %v1528, %v1527
        %v1850 = vpack.c.b16 %v1530, %v1529
        %v1851 = vpack.c.b16 %v1532, %v1531
        %v1852 = vpack.c.b16 %v1534, %v1533
        %v1853 = vpack.c.b16 %v1536, %v1535
        %v1854 = vpack.c.b16 %v1538, %v1537
        %v1855 = vpack.c.b16 %v1540, %v1539
        %v1856 = vpack.c.b16 %v1542, %v1541
        %v1857 = vpack.c.b16 %v1544, %v1543
        %v1858 = vpack.c.b16 %v1546, %v1545
        %v1859 = vpack.c.b16 %v1548, %v1547
        %v1860 = vpack.c.b16 %v1550, %v1549
        %v1861 = vpack.c.b16 %v1552, %v1551
        %v1862 = vpack.c.b16 %v1554, %v1553
        %v1863 = vpack.c.b16 %v1556, %v1555
        %v1864 = vpack.c.b16 %v1558, %v1557
        %v1865 = vpack.c.b16 %v1560, %v1559
        %v1866 = vpack.c.b16 %v1562, %v1561
        %v1867 = vpack.c.b16 %v1564, %v1563
        %v1868 = vpack.c.b16 %v1566, %v1565
        %v1869 = vpack.c.b16 %v1568, %v1567
        %v1870 = vpack.c.b16 %v1570, %v1569
        %v1871 = vpack.c.b16 %v1572, %v1571
        %v1872 = vpack.c.b16 %v1574, %v1573
        %v1873 = vpack.c.b16 %v1576, %v1575
        %v1874 = vpack.c.b16 %v1578, %v1577
        %v1875 = vpack.c.b16 %v1580, %v1579
        %v1876 = vpack.c.b16 %v1582, %v1581
        %v1877 = vpack.c.b16 %v1584, %v1583
        %v1878 = vpack.c.b16 %v1586, %v1585
        %v1879 = vpack.c.b16 %v1588, %v1587
        %v1880 = vpack.c.b16 %v1590, %v1589
        %v1881 = vpack.c.b16 %v1592, %v1591
        %v1882 = vpack.c.b16 %v1594, %v1593
        %v1883 = vpack.c.b16 %v1596, %v1595
        %v1884 = vpack.c.b16 %v1598, %v1597
        %v1885 = vpack.c.b16 %v1600, %v1599
        %v1886 = vpack.c.b16 %v1602, %v1601
        %v1887 = vpack.c.b16 %v1604, %v1603
        %v1888 = vpack.c.b16 %v1606, %v1605
        %v1889 = vpack.c.b16 %v1608, %v1607
        %v1890 = vpack.c.b16 %v1610, %v1609
        %v1891 = vpack.c.b16 %v1612, %v1611
        %v1892 = vpack.c.b16 %v1614, %v1613
        %v1893 = vpack.c.b16 %v1616, %v1615
        %v1894 = vpack.c.b16 %v1618, %v1617
        %v1895 = vpack.c.b16 %v1620, %v1619
        %v1896 = vpack.c.b16 %v1622, %v1621
        %v1897 = vpack.c.b16 %v1624, %v1623
        %v1898 = vpack.c.b16 %v1626, %v1625
        %v1899 = vpack.c.b16 %v1628, %v1627
        %v1900 = vpack.c.b16 %v1630, %v1629
        %v1901 = vpack.c.b16 %v1632, %v1631
        %v1902 = vpack.c.b16 %v1634, %v1633
        %v1903 = vpack.c.b16 %v1636, %v1635
        %v1904 = vpack.c.b16 %v1638, %v1637
        %v1905 = vpack.c.b16 %v1640, %v1639
        %v1906 = vpack.c.b16 %v1642, %v1641
        %v1907 = vpack.c.b16 %v1644, %v1643
        %v1908 = vpack.c.b16 %v1646, %v1645
        %v1909 = vpack.c.b16 %v1648, %v1647
        %v1910 = vpack.c.b16 %v1650, %v1649
        %v1911 = vpack.c.b16 %v1652, %v1651
        %v1912 = vpack.c.b16 %v1654, %v1653
        %v1913 = vpack.c.b16 %v1656, %v1655
        %v1914 = vpack.c.b16 %v1658, %v1657
        %v1915 = vpack.c.b16 %v1660, %v1659
        %v1916 = vpack.c.b16 %v1662, %v1661
        %v1917 = vpack.c.b16 %v1664, %v1663
        %v1918 = vpack.c.b16 %v1666, %v1665
        %v1919 = vpack.c.b16 %v1668, %v1667
        %v1920 = vpack.c.b16 %v1670, %v1669
        %v1921 = vpack.c.b16 %v1672, %v1671
        %v1922 = vpack.c.b16 %v1674, %v1673
        %v1923 = vpack.c.b16 %v1676, %v1675
        %v1924 = vpack.c.b16 %v1678, %v1677
        %v1925 = vpack.c.b16 %v1680, %v1679
        %v1926 = vpack.c.b16 %v1682, %v1681
        %v1927 = vpack.c.b16 %v1684, %v1683
        %v1928 = vpack.c.b16 %v1686, %v1685
        %v1929 = vpack.c.b16 %v1688, %v1687
        %v1930 = vpack.c.b16 %v1690, %v1689
        %v1931 = vpack.c.b16 %v1692, %v1691
        %v1932 = vpack.c.b16 %v1694, %v1693
        %v1933 = vpack.c.b16 %v1696, %v1695
        %v1934 = vpack.c.b16 %v1698, %v1697
        %v1935 = vpack.c.b16 %v1700, %v1699
        %v1936 = vpack.c.b16 %v1702, %v1701
        %v1937 = vpack.c.b16 %v1704, %v1703
        %v1938 = vpack.c.b16 %v1706, %v1705
        %v1939 = vpack.c.b16 %v1708, %v1707
        %v1940 = vpack.c.b16 %v1710, %v1709
        %v1941 = vpack.c.b16 %v1712, %v1711
        %v1942 = vpack.c.b16 %v1714, %v1713
        %v1943 = vpack.c.b16 %v1716, %v1715
        %v1944 = vpack.c.b16 %v1718, %v1717
        %v1945 = vpack.c.b16 %v1720, %v1719
        %v1946 = vpack.c.b16 %v1722, %v1721
        %v1947 = vpack.c.b16 %v1724, %v1723
        %v1948 = vpack.c.b16 %v1726, %v1725
        %v1949 = vpack.c.b16 %v1728, %v1727
        %v1950 = vpack.c.b16 %v1730, %v1729
        %v1951 = vpack.c.b16 %v1732, %v1731
        %v1952 = vpack.c.b16 %v1734, %v1733
        %v1953 = vpack.c.b16 %v1736, %v1735
        %v1954 = vpack.c.b16 %v1738, %v1737
        %v1955 = vpack.c.b16 %v1740, %v1739
        %v1956 = vpack.c.b16 %v1742, %v1741
        %v1957 = vpack.c.b16 %v1744, %v1743
        %v1958 = vpack.c.b16 %v1746, %v1745
        %v1959 = vpack.c.b16 %v1748, %v1747
        %v1960 = vpack.c.b16 %v1750, %v1749
        %v1961 = vpack.c.b16 %v1752, %v1751
        %v1962 = vpack.c.b16 %v1754, %v1753
        %v1963 = vpack.c.b16 %v1756, %v1755
        %v1964 = vpack.c.b16 %v1758, %v1757
        %v1965 = vpack.c.b16 %v1760, %v1759
        %v1966 = vpack.c.b16 %v1762, %v1761
        %v1967 = vpack.c.b16 %v1764, %v1763
        %v1968 = vpack.c.b16 %v1766, %v1765
        %v1969 = vpack.c.b16 %v1768, %v1767
        %v1970 = vpack.c.b16 %v1770, %v1769
        %v1971 = vpack.c.b16 %v1772, %v1771
        %v1972 = vpack.c.b16 %v1774, %v1773
        %v1973 = vpack.c.b16 %v1776, %v1775
        %v1974 = vpack.c.b16 %v1778, %v1777
        %v1975 = vpack.c.b16 %v1780, %v1779
        %v1976 = vpack.c.b16 %v1782, %v1781
        %v1977 = vpack.c.b16 %v1784, %v1783
        %v1978 = vpack.c.b16 %v1786, %v1785
        %2171 = vmatprep.subr.bf16.mxu0 0
        %2172 = vmatpush1.bf16.msra.mxu0 %v1787
        %2173 = vmatprep.subr.bf16.mxu0 0
        %2174 = vmatpush1.bf16.msra.mxu0 %v1788
        %2175 = vmatprep.subr.bf16.mxu0 0
        %2176 = vmatpush1.bf16.msra.mxu0 %v1789
        %2177 = vmatprep.subr.bf16.mxu0 0
        %2178 = vmatpush1.bf16.msra.mxu0 %v1790
        %2179 = vmatprep.subr.bf16.mxu0 0
        %2180 = vmatpush1.bf16.msra.mxu0 %v1791
        %2181 = vmatprep.subr.bf16.mxu0 0
        %2182 = vmatpush1.bf16.msra.mxu0 %v1792
        %2183 = vmatprep.subr.bf16.mxu0 0
        %2184 = vmatpush1.bf16.msra.mxu0 %v1793
        %2185 = vmatprep.subr.bf16.mxu0 0
        %2186 = vmatpush1.bf16.msra.mxu0 %v1794
        %2187 = vmatprep.subr.bf16.mxu0 0
        %2188 = vmatpush1.bf16.msra.mxu0 %v1795
        %2189 = vmatprep.subr.bf16.mxu0 0
        %2190 = vmatpush1.bf16.msra.mxu0 %v1796
        %2191 = vmatprep.subr.bf16.mxu0 0
        %2192 = vmatpush1.bf16.msra.mxu0 %v1797
        %2193 = vmatprep.subr.bf16.mxu0 0
        %2194 = vmatpush1.bf16.msra.mxu0 %v1798
        %2195 = vmatprep.subr.bf16.mxu0 0
        %2196 = vmatpush1.bf16.msra.mxu0 %v1799
        %2197 = vmatprep.subr.bf16.mxu0 0
        %2198 = vmatpush1.bf16.msra.mxu0 %v1800
        %2199 = vmatprep.subr.bf16.mxu0 0
        %2200 = vmatpush1.bf16.msra.mxu0 %v1801
        %2201 = vmatprep.subr.bf16.mxu0 0
        %2202 = vmatpush1.bf16.msra.mxu0 %v1802
        %2203 = vmatprep.mubr.bf16.mxu0 %v540
        %2204 = vmatmul.mubr.bf16.gmra.mrb[0].mxu0 %v539
        %v2205 = vpop.f32.mrb[0].mxu0
        %v2206 = vadd.f32 0.0, %v2205
        %v2207 = vpop.f32.mrb[0].mxu0
        %v2208 = vpop.f32.mrb[0].mxu0
        %v2209 = vadd.f32 0.0, %v2208
        %v2210 = vpop.f32.mrb[0].mxu0
        %2211 = vmatprep.mubr.bf16.mxu0 %v564
        %2212 = vmatmul.mubr.bf16.gmra.mrb[0].mxu0 %v563
        %v2213 = vpop.f32.mrb[0].mxu0
        %v2214 = vadd.f32 0.0, %v2213
        %v2215 = vpop.f32.mrb[0].mxu0
        %v2216 = vpop.f32.mrb[0].mxu0
        %v2217 = vadd.f32 0.0, %v2216
        %v2218 = vpop.f32.mrb[0].mxu0
        %2219 = vmatprep.mubr.bf16.mxu0 %v588
        %2220 = vmatmul.mubr.bf16.gmra.mrb[0].mxu0 %v587
        %v2221 = vpop.f32.mrb[0].mxu0
        %v2222 = vadd.f32 0.0, %v2221
        %v2223 = vpop.f32.mrb[0].mxu0
        %v2224 = vpop.f32.mrb[0].mxu0
        %v2225 = vadd.f32 0.0, %v2224
        %v2226 = vpop.f32.mrb[0].mxu0
        %2227 = vmatprep.mubr.bf16.mxu0 %v612
        %2228 = vmatmul.mubr.bf16.gmra.mrb[0].mxu0 %v611
        %v2229 = vpop.f32.mrb[0].mxu0
        %v2230 = vadd.f32 0.0, %v2229
        %v2231 = vpop.f32.mrb[0].mxu0
        %v2232 = vpop.f32.mrb[0].mxu0
        %v2233 = vadd.f32 0.0, %v2232
        %v2234 = vpop.f32.mrb[0].mxu0
        %2235 = vdwg.mxu0
        %2236 = vmatprep.subr.bf16.mxu0 0
        %2237 = vmatpush1.bf16.msra.mxu0 %v1803
        %2238 = vmatprep.subr.bf16.mxu0 0
        %2239 = vmatpush1.bf16.msra.mxu0 %v1804
        %2240 = vmatprep.subr.bf16.mxu0 0
        %2241 = vmatpush1.bf16.msra.mxu0 %v1805
        %2242 = vmatprep.subr.bf16.mxu0 0
        %2243 = vmatpush1.bf16.msra.mxu0 %v1806
        %2244 = vmatprep.subr.bf16.mxu0 0
        %2245 = vmatpush1.bf16.msra.mxu0 %v1807
        %2246 = vmatprep.subr.bf16.mxu0 0
        %2247 = vmatpush1.bf16.msra.mxu0 %v1808
        %2248 = vmatprep.subr.bf16.mxu0 0
        %2249 = vmatpush1.bf16.msra.mxu0 %v1809
        %2250 = vmatprep.subr.bf16.mxu0 0
        %2251 = vmatpush1.bf16.msra.mxu0 %v1810
        %2252 = vmatprep.subr.bf16.mxu0 0
        %2253 = vmatpush1.bf16.msra.mxu0 %v1811
        %2254 = vmatprep.subr.bf16.mxu0 0
        %2255 = vmatpush1.bf16.msra.mxu0 %v1812
        %2256 = vmatprep.subr.bf16.mxu0 0
        %2257 = vmatpush1.bf16.msra.mxu0 %v1813
        %2258 = vmatprep.subr.bf16.mxu0 0
        %2259 = vmatpush1.bf16.msra.mxu0 %v1814
        %2260 = vmatprep.subr.bf16.mxu0 0
        %2261 = vmatpush1.bf16.msra.mxu0 %v1815
        %2262 = vmatprep.subr.bf16.mxu0 0
        %2263 = vmatpush1.bf16.msra.mxu0 %v1816
        %2264 = vmatprep.subr.bf16.mxu0 0
        %2265 = vmatpush1.bf16.msra.mxu0 %v1817
        %2266 = vmatprep.subr.bf16.mxu0 0
        %2267 = vmatpush1.bf16.msra.mxu0 %v1818
        %2268 = vmatprep.mubr.bf16.mxu0 %v542
        %2269 = vmatmul.mubr.bf16.gmra.mrb[0].mxu0 %v541
        %v2270 = vpop.f32.mrb[0].mxu0
        %v2271 = vadd.f32 %v2206, %v2270
        %v2272 = vpop.f32.mrb[0].mxu0
        %v2273 = vpop.f32.mrb[0].mxu0
        %v2274 = vadd.f32 %v2209, %v2273
        %v2275 = vpop.f32.mrb[0].mxu0
        %2276 = vmatprep.mubr.bf16.mxu0 %v566
        %2277 = vmatmul.mubr.bf16.gmra.mrb[0].mxu0 %v565
        %v2278 = vpop.f32.mrb[0].mxu0
        %v2279 = vadd.f32 %v2214, %v2278
        %v2280 = vpop.f32.mrb[0].mxu0
        %v2281 = vpop.f32.mrb[0].mxu0
        %v2282 = vadd.f32 %v2217, %v2281
        %v2283 = vpop.f32.mrb[0].mxu0
        %2284 = vmatprep.mubr.bf16.mxu0 %v590
        %2285 = vmatmul.mubr.bf16.gmra.mrb[0].mxu0 %v589
        %v2286 = vpop.f32.mrb[0].mxu0
        %v2287 = vadd.f32 %v2222, %v2286
        %v2288 = vpop.f32.mrb[0].mxu0
        %v2289 = vpop.f32.mrb[0].mxu0
        %v2290 = vadd.f32 %v2225, %v2289
        %v2291 = vpop.f32.mrb[0].mxu0
        %2292 = vmatprep.mubr.bf16.mxu0 %v614
        %2293 = vmatmul.mubr.bf16.gmra.mrb[0].mxu0 %v613
        %v2294 = vpop.f32.mrb[0].mxu0
        %v2295 = vadd.f32 %v2230, %v2294
        %v2296 = vpop.f32.mrb[0].mxu0
        %v2297 = vpop.f32.mrb[0].mxu0
        %v2298 = vadd.f32 %v2233, %v2297
        %v2299 = vpop.f32.mrb[0].mxu0
        %2300 = vdwg.mxu0
        %2301 = vmatprep.subr.bf16.mxu0 0
        %2302 = vmatpush1.bf16.msra.mxu0 %v1819
        %2303 = vmatprep.subr.bf16.mxu0 0
        %2304 = vmatpush1.bf16.msra.mxu0 %v1820
        %2305 = vmatprep.subr.bf16.mxu0 0
        %2306 = vmatpush1.bf16.msra.mxu0 %v1821
        %2307 = vmatprep.subr.bf16.mxu0 0
        %2308 = vmatpush1.bf16.msra.mxu0 %v1822
        %2309 = vmatprep.subr.bf16.mxu0 0
        %2310 = vmatpush1.bf16.msra.mxu0 %v1823
        %2311 = vmatprep.subr.bf16.mxu0 0
        %2312 = vmatpush1.bf16.msra.mxu0 %v1824
        %2313 = vmatprep.subr.bf16.mxu0 0
        %2314 = vmatpush1.bf16.msra.mxu0 %v1825
        %2315 = vmatprep.subr.bf16.mxu0 0
        %2316 = vmatpush1.bf16.msra.mxu0 %v1826
        %2317 = vmatprep.subr.bf16.mxu0 0
        %2318 = vmatpush1.bf16.msra.mxu0 %v1827
        %2319 = vmatprep.subr.bf16.mxu0 0
        %2320 = vmatpush1.bf16.msra.mxu0 %v1828
        %2321 = vmatprep.subr.bf16.mxu0 0
        %2322 = vmatpush1.bf16.msra.mxu0 %v1829
        %2323 = vmatprep.subr.bf16.mxu0 0
        %2324 = vmatpush1.bf16.msra.mxu0 %v1830
        %2325 = vmatprep.subr.bf16.mxu0 0
        %2326 = vmatpush1.bf16.msra.mxu0 %v1831
        %2327 = vmatprep.subr.bf16.mxu0 0
        %2328 = vmatpush1.bf16.msra.mxu0 %v1832
        %2329 = vmatprep.subr.bf16.mxu0 0
        %2330 = vmatpush1.bf16.msra.mxu0 %v1833
        %2331 = vmatprep.subr.bf16.mxu0 0
        %2332 = vmatpush1.bf16.msra.mxu0 %v1834
        %2333 = vmatprep.mubr.bf16.mxu0 %v544
        %2334 = vmatmul.mubr.bf16.gmra.mrb[0].mxu0 %v543
        %v2335 = vpop.f32.mrb[0].mxu0
        %v2336 = vadd.f32 %v2271, %v2335
        %v2337 = vpop.f32.mrb[0].mxu0
        %v2338 = vpop.f32.mrb[0].mxu0
        %v2339 = vadd.f32 %v2274, %v2338
        %v2340 = vpop.f32.mrb[0].mxu0
        %2341 = vmatprep.mubr.bf16.mxu0 %v568
        %2342 = vmatmul.mubr.bf16.gmra.mrb[0].mxu0 %v567
        %v2343 = vpop.f32.mrb[0].mxu0
        %v2344 = vadd.f32 %v2279, %v2343
        %v2345 = vpop.f32.mrb[0].mxu0
        %v2346 = vpop.f32.mrb[0].mxu0
        %v2347 = vadd.f32 %v2282, %v2346
        %v2348 = vpop.f32.mrb[0].mxu0
        %2349 = vmatprep.mubr.bf16.mxu0 %v592
        %2350 = vmatmul.mubr.bf16.gmra.mrb[0].mxu0 %v591
        %v2351 = vpop.f32.mrb[0].mxu0
        %v2352 = vadd.f32 %v2287, %v2351
        %v2353 = vpop.f32.mrb[0].mxu0
        %v2354 = vpop.f32.mrb[0].mxu0
        %v2355 = vadd.f32 %v2290, %v2354
        %v2356 = vpop.f32.mrb[0].mxu0
        %2357 = vmatprep.mubr.bf16.mxu0 %v616
        %2358 = vmatmul.mubr.bf16.gmra.mrb[0].mxu0 %v615
        %v2359 = vpop.f32.mrb[0].mxu0
        %v2360 = vadd.f32 %v2295, %v2359
        %v2361 = vpop.f32.mrb[0].mxu0
        %v2362 = vpop.f32.mrb[0].mxu0
        %v2363 = vadd.f32 %v2298, %v2362
        %v2364 = vpop.f32.mrb[0].mxu0
        %2365 = vdwg.mxu0
        %2366 = vmatprep.subr.bf16.mxu0 0
        %2367 = vmatpush1.bf16.msra.mxu0 %v1835
        %2368 = vmatprep.subr.bf16.mxu0 0
        %2369 = vmatpush1.bf16.msra.mxu0 %v1836
        %2370 = vmatprep.subr.bf16.mxu0 0
        %2371 = vmatpush1.bf16.msra.mxu0 %v1837
        %2372 = vmatprep.subr.bf16.mxu0 0
        %2373 = vmatpush1.bf16.msra.mxu0 %v1838
        %2374 = vmatprep.subr.bf16.mxu0 0
        %2375 = vmatpush1.bf16.msra.mxu0 %v1839
        %2376 = vmatprep.subr.bf16.mxu0 0
        %2377 = vmatpush1.bf16.msra.mxu0 %v1840
        %2378 = vmatprep.subr.bf16.mxu0 0
        %2379 = vmatpush1.bf16.msra.mxu0 %v1841
        %2380 = vmatprep.subr.bf16.mxu0 0
        %2381 = vmatpush1.bf16.msra.mxu0 %v1842
        %2382 = vmatprep.subr.bf16.mxu0 0
        %2383 = vmatpush1.bf16.msra.mxu0 %v1843
        %2384 = vmatprep.subr.bf16.mxu0 0
        %2385 = vmatpush1.bf16.msra.mxu0 %v1844
        %2386 = vmatprep.subr.bf16.mxu0 0
        %2387 = vmatpush1.bf16.msra.mxu0 %v1845
        %2388 = vmatprep.subr.bf16.mxu0 0
        %2389 = vmatpush1.bf16.msra.mxu0 %v1846
        %2390 = vmatprep.subr.bf16.mxu0 0
        %2391 = vmatpush1.bf16.msra.mxu0 %v1847
        %2392 = vmatprep.subr.bf16.mxu0 0
        %2393 = vmatpush1.bf16.msra.mxu0 %v1848
        %2394 = vmatprep.subr.bf16.mxu0 0
        %2395 = vmatpush1.bf16.msra.mxu0 %v1849
        %2396 = vmatprep.subr.bf16.mxu0 0
        %2397 = vmatpush1.bf16.msra.mxu0 %v1850
        %2398 = vmatprep.mubr.bf16.mxu0 %v546
        %2399 = vmatmul.mubr.bf16.gmra.mrb[0].mxu0 %v545
        %v2400 = vpop.f32.mrb[0].mxu0
        %v2401 = vadd.f32 %v2336, %v2400
        %v2402 = vpop.f32.mrb[0].mxu0
        %v2403 = vpop.f32.mrb[0].mxu0
        %v2404 = vadd.f32 %v2339, %v2403
        %v2405 = vpop.f32.mrb[0].mxu0
        %2406 = vmatprep.mubr.bf16.mxu0 %v570
        %2407 = vmatmul.mubr.bf16.gmra.mrb[0].mxu0 %v569
        %v2408 = vpop.f32.mrb[0].mxu0
        %v2409 = vadd.f32 %v2344, %v2408
        %v2410 = vpop.f32.mrb[0].mxu0
        %v2411 = vpop.f32.mrb[0].mxu0
        %v2412 = vadd.f32 %v2347, %v2411
        %v2413 = vpop.f32.mrb[0].mxu0
        %2414 = vmatprep.mubr.bf16.mxu0 %v594
        %2415 = vmatmul.mubr.bf16.gmra.mrb[0].mxu0 %v593
        %v2416 = vpop.f32.mrb[0].mxu0
        %v2417 = vadd.f32 %v2352, %v2416
        %v2418 = vpop.f32.mrb[0].mxu0
        %v2419 = vpop.f32.mrb[0].mxu0
        %v2420 = vadd.f32 %v2355, %v2419
        %v2421 = vpop.f32.mrb[0].mxu0
        %2422 = vmatprep.mubr.bf16.mxu0 %v618
        %2423 = vmatmul.mubr.bf16.gmra.mrb[0].mxu0 %v617
        %v2424 = vpop.f32.mrb[0].mxu0
        %v2425 = vadd.f32 %v2360, %v2424
        %v2426 = vpop.f32.mrb[0].mxu0
        %v2427 = vpop.f32.mrb[0].mxu0
        %v2428 = vadd.f32 %v2363, %v2427
        %v2429 = vpop.f32.mrb[0].mxu0
        %2430 = vdwg.mxu0
        %2431 = vmatprep.subr.bf16.mxu0 0
        %2432 = vmatpush1.bf16.msra.mxu0 %v1851
        %2433 = vmatprep.subr.bf16.mxu0 0
        %2434 = vmatpush1.bf16.msra.mxu0 %v1852
        %2435 = vmatprep.subr.bf16.mxu0 0
        %2436 = vmatpush1.bf16.msra.mxu0 %v1853
        %2437 = vmatprep.subr.bf16.mxu0 0
        %2438 = vmatpush1.bf16.msra.mxu0 %v1854
        %2439 = vmatprep.subr.bf16.mxu0 0
        %2440 = vmatpush1.bf16.msra.mxu0 %v1855
        %2441 = vmatprep.subr.bf16.mxu0 0
        %2442 = vmatpush1.bf16.msra.mxu0 %v1856
        %2443 = vmatprep.subr.bf16.mxu0 0
        %2444 = vmatpush1.bf16.msra.mxu0 %v1857
        %2445 = vmatprep.subr.bf16.mxu0 0
        %2446 = vmatpush1.bf16.msra.mxu0 %v1858
        %2447 = vmatprep.subr.bf16.mxu0 0
        %2448 = vmatpush1.bf16.msra.mxu0 %v1859
        %2449 = vmatprep.subr.bf16.mxu0 0
        %2450 = vmatpush1.bf16.msra.mxu0 %v1860
        %2451 = vmatprep.subr.bf16.mxu0 0
        %2452 = vmatpush1.bf16.msra.mxu0 %v1861
        %2453 = vmatprep.subr.bf16.mxu0 0
        %2454 = vmatpush1.bf16.msra.mxu0 %v1862
        %2455 = vmatprep.subr.bf16.mxu0 0
        %2456 = vmatpush1.bf16.msra.mxu0 %v1863
        %2457 = vmatprep.subr.bf16.mxu0 0
        %2458 = vmatpush1.bf16.msra.mxu0 %v1864
        %2459 = vmatprep.subr.bf16.mxu0 0
        %2460 = vmatpush1.bf16.msra.mxu0 %v1865
        %2461 = vmatprep.subr.bf16.mxu0 0
        %2462 = vmatpush1.bf16.msra.mxu0 %v1866
        %2463 = vmatprep.mubr.bf16.mxu0 %v548
        %2464 = vmatmul.mubr.bf16.gmra.mrb[0].mxu0 %v547
        %v2465 = vpop.f32.mrb[0].mxu0
        %v2466 = vadd.f32 %v2401, %v2465
        %v2467 = vpop.f32.mrb[0].mxu0
        %v2468 = vpop.f32.mrb[0].mxu0
        %v2469 = vadd.f32 %v2404, %v2468
        %v2470 = vpop.f32.mrb[0].mxu0
        %2471 = vmatprep.mubr.bf16.mxu0 %v572
        %2472 = vmatmul.mubr.bf16.gmra.mrb[0].mxu0 %v571
        %v2473 = vpop.f32.mrb[0].mxu0
        %v2474 = vadd.f32 %v2409, %v2473
        %v2475 = vpop.f32.mrb[0].mxu0
        %v2476 = vpop.f32.mrb[0].mxu0
        %v2477 = vadd.f32 %v2412, %v2476
        %v2478 = vpop.f32.mrb[0].mxu0
        %2479 = vmatprep.mubr.bf16.mxu0 %v596
        %2480 = vmatmul.mubr.bf16.gmra.mrb[0].mxu0 %v595
        %v2481 = vpop.f32.mrb[0].mxu0
        %v2482 = vadd.f32 %v2417, %v2481
        %v2483 = vpop.f32.mrb[0].mxu0
        %v2484 = vpop.f32.mrb[0].mxu0
        %v2485 = vadd.f32 %v2420, %v2484
        %v2486 = vpop.f32.mrb[0].mxu0
        %2487 = vmatprep.mubr.bf16.mxu0 %v620
        %2488 = vmatmul.mubr.bf16.gmra.mrb[0].mxu0 %v619
        %v2489 = vpop.f32.mrb[0].mxu0
        %v2490 = vadd.f32 %v2425, %v2489
        %v2491 = vpop.f32.mrb[0].mxu0
        %v2492 = vpop.f32.mrb[0].mxu0
        %v2493 = vadd.f32 %v2428, %v2492
        %v2494 = vpop.f32.mrb[0].mxu0
        %2495 = vdwg.mxu0
        %2496 = vmatprep.subr.bf16.mxu0 0
        %2497 = vmatpush1.bf16.msra.mxu0 %v1867
        %2498 = vmatprep.subr.bf16.mxu0 0
        %2499 = vmatpush1.bf16.msra.mxu0 %v1868
        %2500 = vmatprep.subr.bf16.mxu0 0
        %2501 = vmatpush1.bf16.msra.mxu0 %v1869
        %2502 = vmatprep.subr.bf16.mxu0 0
        %2503 = vmatpush1.bf16.msra.mxu0 %v1870
        %2504 = vmatprep.subr.bf16.mxu0 0
        %2505 = vmatpush1.bf16.msra.mxu0 %v1871
        %2506 = vmatprep.subr.bf16.mxu0 0
        %2507 = vmatpush1.bf16.msra.mxu0 %v1872
        %2508 = vmatprep.subr.bf16.mxu0 0
        %2509 = vmatpush1.bf16.msra.mxu0 %v1873
        %2510 = vmatprep.subr.bf16.mxu0 0
        %2511 = vmatpush1.bf16.msra.mxu0 %v1874
        %2512 = vmatprep.subr.bf16.mxu0 0
        %2513 = vmatpush1.bf16.msra.mxu0 %v1875
        %2514 = vmatprep.subr.bf16.mxu0 0
        %2515 = vmatpush1.bf16.msra.mxu0 %v1876
        %2516 = vmatprep.subr.bf16.mxu0 0
        %2517 = vmatpush1.bf16.msra.mxu0 %v1877
        %2518 = vmatprep.subr.bf16.mxu0 0
        %2519 = vmatpush1.bf16.msra.mxu0 %v1878
        %2520 = vmatprep.subr.bf16.mxu0 0
        %2521 = vmatpush1.bf16.msra.mxu0 %v1879
        %2522 = vmatprep.subr.bf16.mxu0 0
        %2523 = vmatpush1.bf16.msra.mxu0 %v1880
        %2524 = vmatprep.subr.bf16.mxu0 0
        %2525 = vmatpush1.bf16.msra.mxu0 %v1881
        %2526 = vmatprep.subr.bf16.mxu0 0
        %2527 = vmatpush1.bf16.msra.mxu0 %v1882
        %2528 = vmatprep.mubr.bf16.mxu0 %v550
        %2529 = vmatmul.mubr.bf16.gmra.mrb[0].mxu0 %v549
        %v2530 = vpop.f32.mrb[0].mxu0
        %v2531 = vadd.f32 %v2466, %v2530
        %v2532 = vpop.f32.mrb[0].mxu0
        %v2533 = vpop.f32.mrb[0].mxu0
        %v2534 = vadd.f32 %v2469, %v2533
        %v2535 = vpop.f32.mrb[0].mxu0
        %2536 = vmatprep.mubr.bf16.mxu0 %v574
        %2537 = vmatmul.mubr.bf16.gmra.mrb[0].mxu0 %v573
        %v2538 = vpop.f32.mrb[0].mxu0
        %v2539 = vadd.f32 %v2474, %v2538
        %v2540 = vpop.f32.mrb[0].mxu0
        %v2541 = vpop.f32.mrb[0].mxu0
        %v2542 = vadd.f32 %v2477, %v2541
        %v2543 = vpop.f32.mrb[0].mxu0
        %2544 = vmatprep.mubr.bf16.mxu0 %v598
        %2545 = vmatmul.mubr.bf16.gmra.mrb[0].mxu0 %v597
        %v2546 = vpop.f32.mrb[0].mxu0
        %v2547 = vadd.f32 %v2482, %v2546
        %v2548 = vpop.f32.mrb[0].mxu0
        %v2549 = vpop.f32.mrb[0].mxu0
        %v2550 = vadd.f32 %v2485, %v2549
        %v2551 = vpop.f32.mrb[0].mxu0
        %2552 = vmatprep.mubr.bf16.mxu0 %v622
        %2553 = vmatmul.mubr.bf16.gmra.mrb[0].mxu0 %v621
        %v2554 = vpop.f32.mrb[0].mxu0
        %v2555 = vadd.f32 %v2490, %v2554
        %v2556 = vpop.f32.mrb[0].mxu0
        %v2557 = vpop.f32.mrb[0].mxu0
        %v2558 = vadd.f32 %v2493, %v2557
        %v2559 = vpop.f32.mrb[0].mxu0
        %2560 = vdwg.mxu0
        %2561 = vmatprep.subr.bf16.mxu0 0
        %2562 = vmatpush1.bf16.msra.mxu0 %v1883
        %2563 = vmatprep.subr.bf16.mxu0 0
        %2564 = vmatpush1.bf16.msra.mxu0 %v1884
        %2565 = vmatprep.subr.bf16.mxu0 0
        %2566 = vmatpush1.bf16.msra.mxu0 %v1885
        %2567 = vmatprep.subr.bf16.mxu0 0
        %2568 = vmatpush1.bf16.msra.mxu0 %v1886
        %2569 = vmatprep.subr.bf16.mxu0 0
        %2570 = vmatpush1.bf16.msra.mxu0 %v1887
        %2571 = vmatprep.subr.bf16.mxu0 0
        %2572 = vmatpush1.bf16.msra.mxu0 %v1888
        %2573 = vmatprep.subr.bf16.mxu0 0
        %2574 = vmatpush1.bf16.msra.mxu0 %v1889
        %2575 = vmatprep.subr.bf16.mxu0 0
        %2576 = vmatpush1.bf16.msra.mxu0 %v1890
        %2577 = vmatprep.subr.bf16.mxu0 0
        %2578 = vmatpush1.bf16.msra.mxu0 %v1891
        %2579 = vmatprep.subr.bf16.mxu0 0
        %2580 = vmatpush1.bf16.msra.mxu0 %v1892
        %2581 = vmatprep.subr.bf16.mxu0 0
        %2582 = vmatpush1.bf16.msra.mxu0 %v1893
        %2583 = vmatprep.subr.bf16.mxu0 0
        %2584 = vmatpush1.bf16.msra.mxu0 %v1894
        %2585 = vmatprep.subr.bf16.mxu0 0
        %2586 = vmatpush1.bf16.msra.mxu0 %v1895
        %2587 = vmatprep.subr.bf16.mxu0 0
        %2588 = vmatpush1.bf16.msra.mxu0 %v1896
        %2589 = vmatprep.subr.bf16.mxu0 0
        %2590 = vmatpush1.bf16.msra.mxu0 %v1897
        %2591 = vmatprep.subr.bf16.mxu0 0
        %2592 = vmatpush1.bf16.msra.mxu0 %v1898
        %2593 = vmatprep.mubr.bf16.mxu0 %v552
        %2594 = vmatmul.mubr.bf16.gmra.mrb[0].mxu0 %v551
        %v2595 = vpop.f32.mrb[0].mxu0
        %v2596 = vadd.f32 %v2531, %v2595
        %v2597 = vpop.f32.mrb[0].mxu0
        %v2598 = vpop.f32.mrb[0].mxu0
        %v2599 = vadd.f32 %v2534, %v2598
        %v2600 = vpop.f32.mrb[0].mxu0
        %2601 = vmatprep.mubr.bf16.mxu0 %v576
        %2602 = vmatmul.mubr.bf16.gmra.mrb[0].mxu0 %v575
        %v2603 = vpop.f32.mrb[0].mxu0
        %v2604 = vadd.f32 %v2539, %v2603
        %v2605 = vpop.f32.mrb[0].mxu0
        %v2606 = vpop.f32.mrb[0].mxu0
        %v2607 = vadd.f32 %v2542, %v2606
        %v2608 = vpop.f32.mrb[0].mxu0
        %2609 = vmatprep.mubr.bf16.mxu0 %v600
        %2610 = vmatmul.mubr.bf16.gmra.mrb[0].mxu0 %v599
        %v2611 = vpop.f32.mrb[0].mxu0
        %v2612 = vadd.f32 %v2547, %v2611
        %v2613 = vpop.f32.mrb[0].mxu0
        %v2614 = vpop.f32.mrb[0].mxu0
        %v2615 = vadd.f32 %v2550, %v2614
        %v2616 = vpop.f32.mrb[0].mxu0
        %2617 = vmatprep.mubr.bf16.mxu0 %v624
        %2618 = vmatmul.mubr.bf16.gmra.mrb[0].mxu0 %v623
        %v2619 = vpop.f32.mrb[0].mxu0
        %v2620 = vadd.f32 %v2555, %v2619
        %v2621 = vpop.f32.mrb[0].mxu0
        %v2622 = vpop.f32.mrb[0].mxu0
        %v2623 = vadd.f32 %v2558, %v2622
        %v2624 = vpop.f32.mrb[0].mxu0
        %2625 = vdwg.mxu0
        %2626 = vmatprep.subr.bf16.mxu0 0
        %2627 = vmatpush1.bf16.msra.mxu0 %v1899
        %2628 = vmatprep.subr.bf16.mxu0 0
        %2629 = vmatpush1.bf16.msra.mxu0 %v1900
        %2630 = vmatprep.subr.bf16.mxu0 0
        %2631 = vmatpush1.bf16.msra.mxu0 %v1901
        %2632 = vmatprep.subr.bf16.mxu0 0
        %2633 = vmatpush1.bf16.msra.mxu0 %v1902
        %2634 = vmatprep.subr.bf16.mxu0 0
        %2635 = vmatpush1.bf16.msra.mxu0 %v1903
        %2636 = vmatprep.subr.bf16.mxu0 0
        %2637 = vmatpush1.bf16.msra.mxu0 %v1904
        %2638 = vmatprep.subr.bf16.mxu0 0
        %2639 = vmatpush1.bf16.msra.mxu0 %v1905
        %2640 = vmatprep.subr.bf16.mxu0 0
        %2641 = vmatpush1.bf16.msra.mxu0 %v1906
        %2642 = vmatprep.subr.bf16.mxu0 0
        %2643 = vmatpush1.bf16.msra.mxu0 %v1907
        %2644 = vmatprep.subr.bf16.mxu0 0
        %2645 = vmatpush1.bf16.msra.mxu0 %v1908
        %2646 = vmatprep.subr.bf16.mxu0 0
        %2647 = vmatpush1.bf16.msra.mxu0 %v1909
        %2648 = vmatprep.subr.bf16.mxu0 0
        %2649 = vmatpush1.bf16.msra.mxu0 %v1910
        %2650 = vmatprep.subr.bf16.mxu0 0
        %2651 = vmatpush1.bf16.msra.mxu0 %v1911
        %2652 = vmatprep.subr.bf16.mxu0 0
        %2653 = vmatpush1.bf16.msra.mxu0 %v1912
        %2654 = vmatprep.subr.bf16.mxu0 0
        %2655 = vmatpush1.bf16.msra.mxu0 %v1913
        %2656 = vmatprep.subr.bf16.mxu0 0
        %2657 = vmatpush1.bf16.msra.mxu0 %v1914
        %2658 = vmatprep.mubr.bf16.mxu0 %v554
        %2659 = vmatmul.mubr.bf16.gmra.mrb[0].mxu0 %v553
        %v2660 = vpop.f32.mrb[0].mxu0
        %v2661 = vadd.f32 %v2596, %v2660
        %v2662 = vpop.f32.mrb[0].mxu0
        %v2663 = vpop.f32.mrb[0].mxu0
        %v2664 = vadd.f32 %v2599, %v2663
        %v2665 = vpop.f32.mrb[0].mxu0
        %2666 = vmatprep.mubr.bf16.mxu0 %v578
        %2667 = vmatmul.mubr.bf16.gmra.mrb[0].mxu0 %v577
        %v2668 = vpop.f32.mrb[0].mxu0
        %v2669 = vadd.f32 %v2604, %v2668
        %v2670 = vpop.f32.mrb[0].mxu0
        %v2671 = vpop.f32.mrb[0].mxu0
        %v2672 = vadd.f32 %v2607, %v2671
        %v2673 = vpop.f32.mrb[0].mxu0
        %2674 = vmatprep.mubr.bf16.mxu0 %v602
        %2675 = vmatmul.mubr.bf16.gmra.mrb[0].mxu0 %v601
        %v2676 = vpop.f32.mrb[0].mxu0
        %v2677 = vadd.f32 %v2612, %v2676
        %v2678 = vpop.f32.mrb[0].mxu0
        %v2679 = vpop.f32.mrb[0].mxu0
        %v2680 = vadd.f32 %v2615, %v2679
        %v2681 = vpop.f32.mrb[0].mxu0
        %2682 = vmatprep.mubr.bf16.mxu0 %v626
        %2683 = vmatmul.mubr.bf16.gmra.mrb[0].mxu0 %v625
        %v2684 = vpop.f32.mrb[0].mxu0
        %v2685 = vadd.f32 %v2620, %v2684
        %v2686 = vpop.f32.mrb[0].mxu0
        %v2687 = vpop.f32.mrb[0].mxu0
        %v2688 = vadd.f32 %v2623, %v2687
        %v2689 = vpop.f32.mrb[0].mxu0
        %2690 = vdwg.mxu0
        %2691 = vmatprep.subr.bf16.mxu0 0
        %2692 = vmatpush1.bf16.msra.mxu0 %v1915
        %2693 = vmatprep.subr.bf16.mxu0 0
        %2694 = vmatpush1.bf16.msra.mxu0 %v1916
        %2695 = vmatprep.subr.bf16.mxu0 0
        %2696 = vmatpush1.bf16.msra.mxu0 %v1917
        %2697 = vmatprep.subr.bf16.mxu0 0
        %2698 = vmatpush1.bf16.msra.mxu0 %v1918
        %2699 = vmatprep.subr.bf16.mxu0 0
        %2700 = vmatpush1.bf16.msra.mxu0 %v1919
        %2701 = vmatprep.subr.bf16.mxu0 0
        %2702 = vmatpush1.bf16.msra.mxu0 %v1920
        %2703 = vmatprep.subr.bf16.mxu0 0
        %2704 = vmatpush1.bf16.msra.mxu0 %v1921
        %2705 = vmatprep.subr.bf16.mxu0 0
        %2706 = vmatpush1.bf16.msra.mxu0 %v1922
        %2707 = vmatprep.subr.bf16.mxu0 0
        %2708 = vmatpush1.bf16.msra.mxu0 %v1923
        %2709 = vmatprep.subr.bf16.mxu0 0
        %2710 = vmatpush1.bf16.msra.mxu0 %v1924
        %2711 = vmatprep.subr.bf16.mxu0 0
        %2712 = vmatpush1.bf16.msra.mxu0 %v1925
        %2713 = vmatprep.subr.bf16.mxu0 0
        %2714 = vmatpush1.bf16.msra.mxu0 %v1926
        %2715 = vmatprep.subr.bf16.mxu0 0
        %2716 = vmatpush1.bf16.msra.mxu0 %v1927
        %2717 = vmatprep.subr.bf16.mxu0 0
        %2718 = vmatpush1.bf16.msra.mxu0 %v1928
        %2719 = vmatprep.subr.bf16.mxu0 0
        %2720 = vmatpush1.bf16.msra.mxu0 %v1929
        %2721 = vmatprep.subr.bf16.mxu0 0
        %2722 = vmatpush1.bf16.msra.mxu0 %v1930
        %2723 = vmatprep.mubr.bf16.mxu0 %v556
        %2724 = vmatmul.mubr.bf16.gmra.mrb[0].mxu0 %v555
        %v2725 = vpop.f32.mrb[0].mxu0
        %v2726 = vadd.f32 %v2661, %v2725
        %v2727 = vpop.f32.mrb[0].mxu0
        %v2728 = vpop.f32.mrb[0].mxu0
        %v2729 = vadd.f32 %v2664, %v2728
        %v2730 = vpop.f32.mrb[0].mxu0
        %2731 = vmatprep.mubr.bf16.mxu0 %v580
        %2732 = vmatmul.mubr.bf16.gmra.mrb[0].mxu0 %v579
        %v2733 = vpop.f32.mrb[0].mxu0
        %v2734 = vadd.f32 %v2669, %v2733
        %v2735 = vpop.f32.mrb[0].mxu0
        %v2736 = vpop.f32.mrb[0].mxu0
        %v2737 = vadd.f32 %v2672, %v2736
        %v2738 = vpop.f32.mrb[0].mxu0
        %2739 = vmatprep.mubr.bf16.mxu0 %v604
        %2740 = vmatmul.mubr.bf16.gmra.mrb[0].mxu0 %v603
        %v2741 = vpop.f32.mrb[0].mxu0
        %v2742 = vadd.f32 %v2677, %v2741
        %v2743 = vpop.f32.mrb[0].mxu0
        %v2744 = vpop.f32.mrb[0].mxu0
        %v2745 = vadd.f32 %v2680, %v2744
        %v2746 = vpop.f32.mrb[0].mxu0
        %2747 = vmatprep.mubr.bf16.mxu0 %v628
        %2748 = vmatmul.mubr.bf16.gmra.mrb[0].mxu0 %v627
        %v2749 = vpop.f32.mrb[0].mxu0
        %v2750 = vadd.f32 %v2685, %v2749
        %v2751 = vpop.f32.mrb[0].mxu0
        %v2752 = vpop.f32.mrb[0].mxu0
        %v2753 = vadd.f32 %v2688, %v2752
        %v2754 = vpop.f32.mrb[0].mxu0
        %2755 = vdwg.mxu0
        %2756 = vmatprep.subr.bf16.mxu0 0
        %2757 = vmatpush1.bf16.msra.mxu0 %v1931
        %2758 = vmatprep.subr.bf16.mxu0 0
        %2759 = vmatpush1.bf16.msra.mxu0 %v1932
        %2760 = vmatprep.subr.bf16.mxu0 0
        %2761 = vmatpush1.bf16.msra.mxu0 %v1933
        %2762 = vmatprep.subr.bf16.mxu0 0
        %2763 = vmatpush1.bf16.msra.mxu0 %v1934
        %2764 = vmatprep.subr.bf16.mxu0 0
        %2765 = vmatpush1.bf16.msra.mxu0 %v1935
        %2766 = vmatprep.subr.bf16.mxu0 0
        %2767 = vmatpush1.bf16.msra.mxu0 %v1936
        %2768 = vmatprep.subr.bf16.mxu0 0
        %2769 = vmatpush1.bf16.msra.mxu0 %v1937
        %2770 = vmatprep.subr.bf16.mxu0 0
        %2771 = vmatpush1.bf16.msra.mxu0 %v1938
        %2772 = vmatprep.subr.bf16.mxu0 0
        %2773 = vmatpush1.bf16.msra.mxu0 %v1939
        %2774 = vmatprep.subr.bf16.mxu0 0
        %2775 = vmatpush1.bf16.msra.mxu0 %v1940
        %2776 = vmatprep.subr.bf16.mxu0 0
        %2777 = vmatpush1.bf16.msra.mxu0 %v1941
        %2778 = vmatprep.subr.bf16.mxu0 0
        %2779 = vmatpush1.bf16.msra.mxu0 %v1942
        %2780 = vmatprep.subr.bf16.mxu0 0
        %2781 = vmatpush1.bf16.msra.mxu0 %v1943
        %2782 = vmatprep.subr.bf16.mxu0 0
        %2783 = vmatpush1.bf16.msra.mxu0 %v1944
        %2784 = vmatprep.subr.bf16.mxu0 0
        %2785 = vmatpush1.bf16.msra.mxu0 %v1945
        %2786 = vmatprep.subr.bf16.mxu0 0
        %2787 = vmatpush1.bf16.msra.mxu0 %v1946
        %2788 = vmatprep.mubr.bf16.mxu0 %v558
        %2789 = vmatmul.mubr.bf16.gmra.mrb[0].mxu0 %v557
        %v2790 = vpop.f32.mrb[0].mxu0
        %v2791 = vadd.f32 %v2726, %v2790
        %v2792 = vpop.f32.mrb[0].mxu0
        %v2793 = vpop.f32.mrb[0].mxu0
        %v2794 = vadd.f32 %v2729, %v2793
        %v2795 = vpop.f32.mrb[0].mxu0
        %2796 = vmatprep.mubr.bf16.mxu0 %v582
        %2797 = vmatmul.mubr.bf16.gmra.mrb[0].mxu0 %v581
        %v2798 = vpop.f32.mrb[0].mxu0
        %v2799 = vadd.f32 %v2734, %v2798
        %v2800 = vpop.f32.mrb[0].mxu0
        %v2801 = vpop.f32.mrb[0].mxu0
        %v2802 = vadd.f32 %v2737, %v2801
        %v2803 = vpop.f32.mrb[0].mxu0
        %2804 = vmatprep.mubr.bf16.mxu0 %v606
        %2805 = vmatmul.mubr.bf16.gmra.mrb[0].mxu0 %v605
        %v2806 = vpop.f32.mrb[0].mxu0
        %v2807 = vadd.f32 %v2742, %v2806
        %v2808 = vpop.f32.mrb[0].mxu0
        %v2809 = vpop.f32.mrb[0].mxu0
        %v2810 = vadd.f32 %v2745, %v2809
        %v2811 = vpop.f32.mrb[0].mxu0
        %2812 = vmatprep.mubr.bf16.mxu0 %v630
        %2813 = vmatmul.mubr.bf16.gmra.mrb[0].mxu0 %v629
        %v2814 = vpop.f32.mrb[0].mxu0
        %v2815 = vadd.f32 %v2750, %v2814
        %v2816 = vpop.f32.mrb[0].mxu0
        %v2817 = vpop.f32.mrb[0].mxu0
        %v2818 = vadd.f32 %v2753, %v2817
        %v2819 = vpop.f32.mrb[0].mxu0
        %2820 = vdwg.mxu0
        %2821 = vmatprep.subr.bf16.mxu0 0
        %2822 = vmatpush1.bf16.msra.mxu0 %v1947
        %2823 = vmatprep.subr.bf16.mxu0 0
        %2824 = vmatpush1.bf16.msra.mxu0 %v1948
        %2825 = vmatprep.subr.bf16.mxu0 0
        %2826 = vmatpush1.bf16.msra.mxu0 %v1949
        %2827 = vmatprep.subr.bf16.mxu0 0
        %2828 = vmatpush1.bf16.msra.mxu0 %v1950
        %2829 = vmatprep.subr.bf16.mxu0 0
        %2830 = vmatpush1.bf16.msra.mxu0 %v1951
        %2831 = vmatprep.subr.bf16.mxu0 0
        %2832 = vmatpush1.bf16.msra.mxu0 %v1952
        %2833 = vmatprep.subr.bf16.mxu0 0
        %2834 = vmatpush1.bf16.msra.mxu0 %v1953
        %2835 = vmatprep.subr.bf16.mxu0 0
        %2836 = vmatpush1.bf16.msra.mxu0 %v1954
        %2837 = vmatprep.subr.bf16.mxu0 0
        %2838 = vmatpush1.bf16.msra.mxu0 %v1955
        %2839 = vmatprep.subr.bf16.mxu0 0
        %2840 = vmatpush1.bf16.msra.mxu0 %v1956
        %2841 = vmatprep.subr.bf16.mxu0 0
        %2842 = vmatpush1.bf16.msra.mxu0 %v1957
        %2843 = vmatprep.subr.bf16.mxu0 0
        %2844 = vmatpush1.bf16.msra.mxu0 %v1958
        %2845 = vmatprep.subr.bf16.mxu0 0
        %2846 = vmatpush1.bf16.msra.mxu0 %v1959
        %2847 = vmatprep.subr.bf16.mxu0 0
        %2848 = vmatpush1.bf16.msra.mxu0 %v1960
        %2849 = vmatprep.subr.bf16.mxu0 0
        %2850 = vmatpush1.bf16.msra.mxu0 %v1961
        %2851 = vmatprep.subr.bf16.mxu0 0
        %2852 = vmatpush1.bf16.msra.mxu0 %v1962
        %2853 = vmatprep.mubr.bf16.mxu0 %v560
        %2854 = vmatmul.mubr.bf16.gmra.mrb[0].mxu0 %v559
        %v2855 = vpop.f32.mrb[0].mxu0
        %v2856 = vadd.f32 %v2791, %v2855
        %v2857 = vpop.f32.mrb[0].mxu0
        %v2858 = vpop.f32.mrb[0].mxu0
        %v2859 = vadd.f32 %v2794, %v2858
        %v2860 = vpop.f32.mrb[0].mxu0
        %2861 = vmatprep.mubr.bf16.mxu0 %v584
        %2862 = vmatmul.mubr.bf16.gmra.mrb[0].mxu0 %v583
        %v2863 = vpop.f32.mrb[0].mxu0
        %v2864 = vadd.f32 %v2799, %v2863
        %v2865 = vpop.f32.mrb[0].mxu0
        %v2866 = vpop.f32.mrb[0].mxu0
        %v2867 = vadd.f32 %v2802, %v2866
        %v2868 = vpop.f32.mrb[0].mxu0
        %2869 = vmatprep.mubr.bf16.mxu0 %v608
        %2870 = vmatmul.mubr.bf16.gmra.mrb[0].mxu0 %v607
        %v2871 = vpop.f32.mrb[0].mxu0
        %v2872 = vadd.f32 %v2807, %v2871
        %v2873 = vpop.f32.mrb[0].mxu0
        %v2874 = vpop.f32.mrb[0].mxu0
        %v2875 = vadd.f32 %v2810, %v2874
        %v2876 = vpop.f32.mrb[0].mxu0
        %2877 = vmatprep.mubr.bf16.mxu0 %v632
        %2878 = vmatmul.mubr.bf16.gmra.mrb[0].mxu0 %v631
        %v2879 = vpop.f32.mrb[0].mxu0
        %v2880 = vadd.f32 %v2815, %v2879
        %v2881 = vpop.f32.mrb[0].mxu0
        %v2882 = vpop.f32.mrb[0].mxu0
        %v2883 = vadd.f32 %v2818, %v2882
        %v2884 = vpop.f32.mrb[0].mxu0
        %2885 = vdwg.mxu0
        %2886 = vmatprep.subr.bf16.mxu0 0
        %2887 = vmatpush1.bf16.msra.mxu0 %v1963
        %2888 = vmatprep.subr.bf16.mxu0 0
        %2889 = vmatpush1.bf16.msra.mxu0 %v1964
        %2890 = vmatprep.subr.bf16.mxu0 0
        %2891 = vmatpush1.bf16.msra.mxu0 %v1965
        %2892 = vmatprep.subr.bf16.mxu0 0
        %2893 = vmatpush1.bf16.msra.mxu0 %v1966
        %2894 = vmatprep.subr.bf16.mxu0 0
        %2895 = vmatpush1.bf16.msra.mxu0 %v1967
        %2896 = vmatprep.subr.bf16.mxu0 0
        %2897 = vmatpush1.bf16.msra.mxu0 %v1968
        %2898 = vmatprep.subr.bf16.mxu0 0
        %2899 = vmatpush1.bf16.msra.mxu0 %v1969
        %2900 = vmatprep.subr.bf16.mxu0 0
        %2901 = vmatpush1.bf16.msra.mxu0 %v1970
        %2902 = vmatprep.subr.bf16.mxu0 0
        %2903 = vmatpush1.bf16.msra.mxu0 %v1971
        %2904 = vmatprep.subr.bf16.mxu0 0
        %2905 = vmatpush1.bf16.msra.mxu0 %v1972
        %2906 = vmatprep.subr.bf16.mxu0 0
        %2907 = vmatpush1.bf16.msra.mxu0 %v1973
        %2908 = vmatprep.subr.bf16.mxu0 0
        %2909 = vmatpush1.bf16.msra.mxu0 %v1974
        %2910 = vmatprep.subr.bf16.mxu0 0
        %2911 = vmatpush1.bf16.msra.mxu0 %v1975
        %2912 = vmatprep.subr.bf16.mxu0 0
        %2913 = vmatpush1.bf16.msra.mxu0 %v1976
        %2914 = vmatprep.subr.bf16.mxu0 0
        %2915 = vmatpush1.bf16.msra.mxu0 %v1977
        %2916 = vmatprep.subr.bf16.mxu0 0
        %2917 = vmatpush1.bf16.msra.mxu0 %v1978
        %2918 = vmatprep.mubr.bf16.mxu0 %v562
        %2919 = vmatmul.mubr.bf16.gmra.mrb[0].mxu0 %v561
        %v2920 = vpop.f32.mrb[0].mxu0
        %v2921 = vadd.f32 %v2856, %v2920
        %v2922 = vpop.f32.mrb[0].mxu0
        %v2923 = vpop.f32.mrb[0].mxu0
        %v2924 = vadd.f32 %v2859, %v2923
        %v2925 = vpop.f32.mrb[0].mxu0
        %2926 = vmatprep.mubr.bf16.mxu0 %v586
        %2927 = vmatmul.mubr.bf16.gmra.mrb[0].mxu0 %v585
        %v2928 = vpop.f32.mrb[0].mxu0
        %v2929 = vadd.f32 %v2864, %v2928
        %v2930 = vpop.f32.mrb[0].mxu0
        %v2931 = vpop.f32.mrb[0].mxu0
        %v2932 = vadd.f32 %v2867, %v2931
        %v2933 = vpop.f32.mrb[0].mxu0
        %2934 = vmatprep.mubr.bf16.mxu0 %v610
        %2935 = vmatmul.mubr.bf16.gmra.mrb[0].mxu0 %v609
        %v2936 = vpop.f32.mrb[0].mxu0
        %v2937 = vadd.f32 %v2872, %v2936
        %v2938 = vpop.f32.mrb[0].mxu0
        %v2939 = vpop.f32.mrb[0].mxu0
        %v2940 = vadd.f32 %v2875, %v2939
        %v2941 = vpop.f32.mrb[0].mxu0
        %2942 = vmatprep.mubr.bf16.mxu0 %v634
        %2943 = vmatmul.mubr.bf16.gmra.mrb[0].mxu0 %v633
        %v2944 = vpop.f32.mrb[0].mxu0
        %v2945 = vadd.f32 %v2880, %v2944
        %v2946 = vpop.f32.mrb[0].mxu0
        %v2947 = vpop.f32.mrb[0].mxu0
        %v2948 = vadd.f32 %v2883, %v2947
        %v2949 = vpop.f32.mrb[0].mxu0
        %2950 = vdwg.mxu0
        %v2951 = vadd.f32 %v339, %v2921
        %v2952 = vadd.f32 %v340, %v2924
        %v2953 = vadd.f32 %v341, %v2929
        %v2954 = vadd.f32 %v342, %v2932
        %v2955 = vadd.f32 %v343, %v2937
        %v2956 = vadd.f32 %v344, %v2940
        %v2957 = vadd.f32 %v345, %v2945
        %v2958 = vadd.f32 %v346, %v2948
        %2959 = vst [vmem:[#allocation2] sm:$0xff] %v2951
        %2960 = vst [vmem:[#allocation2 + $0x8] sm:$0xff] %v2952
        %2961 = vst [vmem:[#allocation2 + $0x10] sm:$0xff] %v2953
        %2962 = vst [vmem:[#allocation2 + $0x18] sm:$0xff] %v2954
        %2963 = vst [vmem:[#allocation2 + $0x20] sm:$0xff] %v2955
        %2964 = vst [vmem:[#allocation2 + $0x28] sm:$0xff] %v2956
        %2965 = vst [vmem:[#allocation2 + $0x30] sm:$0xff] %v2957
        %2966 = vst [vmem:[#allocation2 + $0x38] sm:$0xff] %v2958
        // Predicated region
        $region65: #{tpu_custom_call.1} parent=39 // pred_check
          %p2967 = pneg %p327
        $region66: #{tpu_custom_call.1} parent=39 // pred_check_branch
          %2969 = sbr.rel (%p2967) target = $region68
        $region67: #{tpu_custom_call.1} parent=39 // pred_region
          %v2970 = vld [vmem:[#allocation2] sm:$0xff]
          %v2971 = vld [vmem:[#allocation2 + $0x8] sm:$0xff]
          %v2972 = vld [vmem:[#allocation2 + $0x10] sm:$0xff]
          %v2973 = vld [vmem:[#allocation2 + $0x18] sm:$0xff]
          %v2974 = vld [vmem:[#allocation2 + $0x20] sm:$0xff]
          %v2975 = vld [vmem:[#allocation2 + $0x28] sm:$0xff]
          %v2976 = vld [vmem:[#allocation2 + $0x30] sm:$0xff]
          %v2977 = vld [vmem:[#allocation2 + $0x38] sm:$0xff]
          %v2978 = vld [vmem:[#allocation8] sm:$0x1]
          %v2980 = vlaneseq
          %v2981 = vshrl.u32 %v2980, 7
          %v2982 = vsub.s32 0, %v2981
          %v2983 = vrot.slane %v2978, %v2982
          %v2985 = vadd.f32 %v2970, %v2983
          %v2986 = vadd.f32 %v2971, %v2983
          %v2987 = vadd.f32 %v2972, %v2983
          %v2988 = vadd.f32 %v2973, %v2983
          %v2989 = vadd.f32 %v2974, %v2983
          %v2990 = vadd.f32 %v2975, %v2983
          %v2991 = vadd.f32 %v2976, %v2983
          %v2992 = vadd.f32 %v2977, %v2983
          %v2993 = vld [vmem:[#allocation9] sm:$0xf]
          %v2994 = vld [vmem:[#allocation9 + $0x4] sm:$0xf]
          %v2995 = vld [vmem:[#allocation9 + $0x8] sm:$0xf]
          %v2996 = vld [vmem:[#allocation9 + $0xc] sm:$0xf]
          %v2997 = vld [vmem:[#allocation9 + $0x10] sm:$0xf]
          %v2998 = vld [vmem:[#allocation9 + $0x14] sm:$0xf]
          %v2999 = vld [vmem:[#allocation9 + $0x18] sm:$0xf]
          %v3000 = vld [vmem:[#allocation9 + $0x1c] sm:$0xf]
          %v3001 = vld [vmem:[#allocation9 + $0x20] sm:$0xf]
          %v3002 = vld [vmem:[#allocation9 + $0x24] sm:$0xf]
          %v3003 = vld [vmem:[#allocation9 + $0x28] sm:$0xf]
          %v3004 = vld [vmem:[#allocation9 + $0x2c] sm:$0xf]
          %v3005 = vld [vmem:[#allocation9 + $0x30] sm:$0xf]
          %v3006 = vld [vmem:[#allocation9 + $0x34] sm:$0xf]
          %v3007 = vld [vmem:[#allocation9 + $0x38] sm:$0xf]
          %v3008 = vld [vmem:[#allocation9 + $0x3c] sm:$0xf]
          %v3009 = vld [vmem:[#allocation11] sm:$0x1]
          %v3010 = vpack.c.bf16 %v2986, %v2985
          %v3011 = vpack.c.bf16 %v2988, %v2987
          %v3012 = vpack.c.bf16 %v2990, %v2989
          %v3013 = vpack.c.bf16 %v2992, %v2991
          %v3015 = vlaneseq
          %v3016 = vshrl.u32 %v3015, 7
          %v3017 = vsub.s32 0, %v3016
          %v3018 = vrot.slane %v3009, %v3017
          %v3036 = vunpack.c.l.b16 %v2993
          %v3037 = vunpack.c.l.b16 %v2994
          %v3038 = vunpack.c.l.b16 %v2995
          %v3039 = vunpack.c.l.b16 %v2996
          %v3040 = vunpack.c.l.b16 %v2997
          %v3041 = vunpack.c.l.b16 %v2998
          %v3042 = vunpack.c.l.b16 %v2999
          %v3043 = vunpack.c.l.b16 %v3000
          %v3044 = vunpack.c.l.b16 %v3001
          %v3045 = vunpack.c.l.b16 %v3002
          %v3046 = vunpack.c.l.b16 %v3003
          %v3047 = vunpack.c.l.b16 %v3004
          %v3048 = vunpack.c.l.b16 %v3005
          %v3049 = vunpack.c.l.b16 %v3006
          %v3050 = vunpack.c.l.b16 %v3007
          %v3051 = vunpack.c.l.b16 %v3008
          %v3052 = vpack.c.b16 %v3037, %v3036
          %v3053 = vpack.c.b16 %v3039, %v3038
          %v3054 = vpack.c.b16 %v3041, %v3040
          %v3055 = vpack.c.b16 %v3043, %v3042
          %v3056 = vpack.c.b16 %v3045, %v3044
          %v3057 = vpack.c.b16 %v3047, %v3046
          %v3058 = vpack.c.b16 %v3049, %v3048
          %v3059 = vpack.c.b16 %v3051, %v3050
          %3068 = vmatprep.subr.bf16.mxu0 0
          %3069 = vmatpush1.bf16.msra.mxu0 %v3052
          %3070 = vmatprep.subr.bf16.mxu0 0
          %3071 = vmatpush1.bf16.msra.mxu0 %v3053
          %3072 = vmatprep.subr.bf16.mxu0 0
          %3073 = vmatpush1.bf16.msra.mxu0 %v3054
          %3074 = vmatprep.subr.bf16.mxu0 0
          %3075 = vmatpush1.bf16.msra.mxu0 %v3055
          %3076 = vmatprep.subr.bf16.mxu0 0
          %3077 = vmatpush1.bf16.msra.mxu0 %v3056
          %3078 = vmatprep.subr.bf16.mxu0 0
          %3079 = vmatpush1.bf16.msra.mxu0 %v3057
          %3080 = vmatprep.subr.bf16.mxu0 0
          %3081 = vmatpush1.bf16.msra.mxu0 %v3058
          %3082 = vmatprep.subr.bf16.mxu0 0
          %3083 = vmatpush1.bf16.msra.mxu0 %v3059
          %3084 = vmatprep.subr.bf16.mxu0 0
          %3085 = vmatpush1.bf16.msra.mxu0 0
          %3086 = vmatprep.subr.bf16.mxu0 0
          %3087 = vmatpush1.bf16.msra.mxu0 0
          %3088 = vmatprep.subr.bf16.mxu0 0
          %3089 = vmatpush1.bf16.msra.mxu0 0
          %3090 = vmatprep.subr.bf16.mxu0 0
          %3091 = vmatpush1.bf16.msra.mxu0 0
          %3092 = vmatprep.subr.bf16.mxu0 0
          %3093 = vmatpush1.bf16.msra.mxu0 0
          %3094 = vmatprep.subr.bf16.mxu0 0
          %3095 = vmatpush1.bf16.msra.mxu0 0
          %3096 = vmatprep.subr.bf16.mxu0 0
          %3097 = vmatpush1.bf16.msra.mxu0 0
          %3098 = vmatprep.subr.bf16.mxu0 0
          %3099 = vmatpush1.bf16.msra.mxu0 0
          %3100 = vmatprep.mubr.bf16.mxu0 0
          %3101 = vmatmul.mubr.bf16.gmra.mrb[0].mxu0 %v3010
          %v3102 = vpop.f32.mrb[0].mxu0
          %v3103 = vadd.f32 %v3018, %v3102
          %v3104 = vpop.f32.mrb[0].mxu0
          %v3105 = vpop.f32.mrb[0].mxu0
          %v3106 = vadd.f32 %v3018, %v3105
          %v3107 = vpop.f32.mrb[0].mxu0
          %3108 = vmatprep.mubr.bf16.mxu0 0
          %3109 = vmatmul.mubr.bf16.gmra.mrb[0].mxu0 %v3011
          %v3110 = vpop.f32.mrb[0].mxu0
          %v3111 = vadd.f32 %v3018, %v3110
          %v3112 = vpop.f32.mrb[0].mxu0
          %v3113 = vpop.f32.mrb[0].mxu0
          %v3114 = vadd.f32 %v3018, %v3113
          %v3115 = vpop.f32.mrb[0].mxu0
          %3116 = vmatprep.mubr.bf16.mxu0 0
          %3117 = vmatmul.mubr.bf16.gmra.mrb[0].mxu0 %v3012
          %v3118 = vpop.f32.mrb[0].mxu0
          %v3119 = vadd.f32 %v3018, %v3118
          %v3120 = vpop.f32.mrb[0].mxu0
          %v3121 = vpop.f32.mrb[0].mxu0
          %v3122 = vadd.f32 %v3018, %v3121
          %v3123 = vpop.f32.mrb[0].mxu0
          %3124 = vmatprep.mubr.bf16.mxu0 0
          %3125 = vmatmul.mubr.bf16.gmra.mrb[0].mxu0 %v3013
          %v3126 = vpop.f32.mrb[0].mxu0
          %v3127 = vadd.f32 %v3018, %v3126
          %v3128 = vpop.f32.mrb[0].mxu0
          %v3129 = vpop.f32.mrb[0].mxu0
          %v3130 = vadd.f32 %v3018, %v3129
          %v3131 = vpop.f32.mrb[0].mxu0
          %3132 = vdwg.mxu0
          %3133 = vmax.xlane.f32.xlu0 %v3103
          %v3134 = vpop.xlane.xlu0 %3133
          %3135 = vmax.xlane.f32.xlu0 %v3106
          %v3136 = vpop.xlane.xlu0 %3135
          %3137 = vmax.xlane.f32.xlu0 %v3111
          %v3138 = vpop.xlane.xlu0 %3137
          %3139 = vmax.xlane.f32.xlu0 %v3114
          %v3140 = vpop.xlane.xlu0 %3139
          %3141 = vmax.xlane.f32.xlu0 %v3119
          %v3142 = vpop.xlane.xlu0 %3141
          %3143 = vmax.xlane.f32.xlu0 %v3122
          %v3144 = vpop.xlane.xlu0 %3143
          %3145 = vmax.xlane.f32.xlu0 %v3127
          %v3146 = vpop.xlane.xlu0 %3145
          %3147 = vmax.xlane.f32.xlu0 %v3130
          %v3148 = vpop.xlane.xlu0 %3147
          %v3149 = vsub.f32 %v3103, %v3134
          %v3150 = vsub.f32 %v3106, %v3136
          %v3151 = vsub.f32 %v3111, %v3138
          %v3152 = vsub.f32 %v3114, %v3140
          %v3153 = vsub.f32 %v3119, %v3142
          %v3154 = vsub.f32 %v3122, %v3144
          %v3155 = vsub.f32 %v3127, %v3146
          %v3156 = vsub.f32 %v3130, %v3148
          %v3157 = vmul.f32 %v3149, 1.442695
          %v3158 = vpow.pop %v3157
          %v3159 = vmul.f32 %v3150, 1.442695
          %v3160 = vpow.pop %v3159
          %v3161 = vmul.f32 %v3151, 1.442695
          %v3162 = vpow.pop %v3161
          %v3163 = vmul.f32 %v3152, 1.442695
          %v3164 = vpow.pop %v3163
          %v3165 = vmul.f32 %v3153, 1.442695
          %v3166 = vpow.pop %v3165
          %v3167 = vmul.f32 %v3154, 1.442695
          %v3168 = vpow.pop %v3167
          %v3169 = vmul.f32 %v3155, 1.442695
          %v3170 = vpow.pop %v3169
          %v3171 = vmul.f32 %v3156, 1.442695
          %v3172 = vpow.pop %v3171
          %3173 = vadd.xlane.f32.xlu0 %v3158
          %v3174 = vpop.xlane.xlu0 %3173
          %3175 = vadd.xlane.f32.xlu0 %v3160
          %v3176 = vpop.xlane.xlu0 %3175
          %3177 = vadd.xlane.f32.xlu0 %v3162
          %v3178 = vpop.xlane.xlu0 %3177
          %3179 = vadd.xlane.f32.xlu0 %v3164
          %v3180 = vpop.xlane.xlu0 %3179
          %3181 = vadd.xlane.f32.xlu0 %v3166
          %v3182 = vpop.xlane.xlu0 %3181
          %3183 = vadd.xlane.f32.xlu0 %v3168
          %v3184 = vpop.xlane.xlu0 %3183
          %3185 = vadd.xlane.f32.xlu0 %v3170
          %v3186 = vpop.xlane.xlu0 %3185
          %3187 = vadd.xlane.f32.xlu0 %v3172
          %v3188 = vpop.xlane.xlu0 %3187
          %v3189 = vrcp.pop %v3174
          %v3190 = vrcp.pop %v3176
          %v3191 = vrcp.pop %v3178
          %v3192 = vrcp.pop %v3180
          %v3193 = vrcp.pop %v3182
          %v3194 = vrcp.pop %v3184
          %v3195 = vrcp.pop %v3186
          %v3196 = vrcp.pop %v3188
          %v3197 = vmul.f32 %v3158, %v3189
          %v3198 = vmul.f32 %v3160, %v3190
          %v3199 = vmul.f32 %v3162, %v3191
          %v3200 = vmul.f32 %v3164, %v3192
          %v3201 = vmul.f32 %v3166, %v3193
          %v3202 = vmul.f32 %v3168, %v3194
          %v3203 = vmul.f32 %v3170, %v3195
          %v3204 = vmul.f32 %v3172, %v3196
          %3205 = vadd.xlane.f32.xlu0 %v3197
          %v3206 = vpop.xlane.xlu0 %3205
          %3207 = vadd.xlane.f32.xlu0 %v3198
          %v3208 = vpop.xlane.xlu0 %3207
          %3209 = vadd.xlane.f32.xlu0 %v3199
          %v3210 = vpop.xlane.xlu0 %3209
          %3211 = vadd.xlane.f32.xlu0 %v3200
          %v3212 = vpop.xlane.xlu0 %3211
          %3213 = vadd.xlane.f32.xlu0 %v3201
          %v3214 = vpop.xlane.xlu0 %3213
          %3215 = vadd.xlane.f32.xlu0 %v3202
          %v3216 = vpop.xlane.xlu0 %3215
          %3217 = vadd.xlane.f32.xlu0 %v3203
          %v3218 = vpop.xlane.xlu0 %3217
          %3219 = vadd.xlane.f32.xlu0 %v3204
          %v3220 = vpop.xlane.xlu0 %3219
          %v3221 = vmul.f32 %v3206, %v2970
          %v3222 = vmul.f32 %v3208, %v2971
          %v3223 = vmul.f32 %v3210, %v2972
          %v3224 = vmul.f32 %v3212, %v2973
          %v3225 = vmul.f32 %v3214, %v2974
          %v3226 = vmul.f32 %v3216, %v2975
          %v3227 = vmul.f32 %v3218, %v2976
          %v3228 = vmul.f32 %v3220, %v2977
          %v3229 = vadd.f32 %v3221, %v2983
          %v3230 = vadd.f32 %v3222, %v2983
          %v3231 = vadd.f32 %v3223, %v2983
          %v3232 = vadd.f32 %v3224, %v2983
          %v3233 = vadd.f32 %v3225, %v2983
          %v3234 = vadd.f32 %v3226, %v2983
          %v3235 = vadd.f32 %v3227, %v2983
          %v3236 = vadd.f32 %v3228, %v2983
          %3237 = vst [vmem:[%s321] sm:$0xff] %v3229
          %3238 = vst [vmem:[%s321 + $0x8] sm:$0xff] %v3230
          %3239 = vst [vmem:[%s321 + $0x10] sm:$0xff] %v3231
          %3240 = vst [vmem:[%s321 + $0x18] sm:$0xff] %v3232
          %3241 = vst [vmem:[%s321 + $0x20] sm:$0xff] %v3233
          %3242 = vst [vmem:[%s321 + $0x28] sm:$0xff] %v3234
          %3243 = vst [vmem:[%s321 + $0x30] sm:$0xff] %v3235
          %3244 = vst [vmem:[%s321 + $0x38] sm:$0xff] %v3236
        $region68: #{tpu_custom_call.1} parent=39 // pred_fallthru
          _
        %s3245 = sand.u32 %s161, 1
        %s3246 = scalar_lea.sflag [#allocation5], %s3245
        %s3247 = sand.u32 %s161, 1
        %s3248 = smul.addr %s3247, 64
        %s3249 = scalar_lea.vmem [#allocation12], %s3248
        // Predicated region
        $region69: #{tpu_custom_call.1} parent=39 // pred_check
          %p3250 = pneg %p171
        $region70: #{tpu_custom_call.1} parent=39 // pred_check_branch
          %3252 = sbr.rel (%p3250) target = $region72
        $region71: #{tpu_custom_call.1} parent=39 // pred_region
          %s3253 = smul.u32 8, %s28
          %s3255 = ssub.s32 1024, 1024
          %3256 = vsyncadd %s3246, %s3255
          %s3257 = smul.addr %s3253, 128
          %s3258 = scalar_lea.hbm %s5, %s3257
          %s3259 = sshll.u32 %s3249, 4
          %s3260 = int_to_ptr.vmem [resolvable:$true] %s3259
          %3265 = dma.vmem_to_hbm [thread:$0]  %s3260, 1024, %s3258, %s3246, 128, 128, 8
        $region72: #{tpu_custom_call.1} parent=39 // pred_fallthru
          _
      $region40: #{tpu_custom_call.1} parent=5 // pred_fallthru
        _
      %p3266 = scmp.le.s32.totalorder 2, %s19
      // Predicated region
      $region73: #{tpu_custom_call.1} parent=5 // pred_check
        %p3267 = pneg %p3266
      $region74: #{tpu_custom_call.1} parent=5 // pred_check_branch
        %3269 = sbr.rel (%p3267) target = $region76
      $region75: #{tpu_custom_call.1} parent=5 // pred_region
        %s3270 = ssub.s32 %s19, 2
        // Predicated region
        $region77: #{tpu_custom_call.1} parent=75 // pred_check
          %p3271 = pneg %p177
        $region78: #{tpu_custom_call.1} parent=75 // pred_check_branch
          %3273 = sbr.rel (%p3271) target = $region80
        $region79: #{tpu_custom_call.1} parent=75 // pred_region
          %s3274 = sand.u32 %s162, 1
          %s3275 = scalar_lea.sflag [#allocation5], %s3274
          %s3276 = sand.u32 %s162, 1
          %s3277 = smul.addr %s3276, 64
          %s3278 = scalar_lea.vmem [#allocation12], %s3277
          %3279 = dma.done %s3275, 1024
        $region80: #{tpu_custom_call.1} parent=75 // pred_fallthru
          _
      $region76: #{tpu_custom_call.1} parent=5 // pred_fallthru
        _
    $region6: #{tpu_custom_call.1} parent=1 // loop_footer
      %s23 = sadd.s32 1, %s19
    $region7: #{tpu_custom_call.1} parent=1 // loop_footer_branch
      %18 = sbr.rel target = $region3
    $region8: #{tpu_custom_call.1} parent=1 // loop_exit
      _
    %3280 = vsyncpa [#allocation4], 1
    %s3281 = scalar_lea.sflag [#allocation4], 1
    %3282 = vsyncpa %s3281, 1
    %3283 = vsyncpa [#allocation7], 1
    %3284 = vsyncpa [#allocation10], 1
    %3285 = vsyncpa [#allocation5], 1
    %s3286 = scalar_lea.sflag [#allocation5], 1
    %3287 = vsyncpa %s3286, 1

</llo_original>
